<compile_context>
chip_gen: v7x
topology: tpu7x:2x2x1
jax: 0.10.0
libtpu: 0.0.40
codegen_flags: <defaults>
</compile_context>

<pallas_src>
import functools

import jax
import jax.numpy as jnp
import numpy as np
from jax.experimental import pallas as pl
from jax.experimental.pallas import tpu as pltpu


def _round_up(v, m):
    return (v + m - 1) // m * m


def _flow_reversal_kernel(tbl_ref, cnt_ref, x_ref, y_ref, img_ref, out_ref,
                          *, Hd, Wd, tile_T, n_t, max_k):
    b = pl.program_id(0)
    ti = pl.program_id(1)   # destination-pixel tile
    k = pl.program_id(2)    # index into this (b, ti)'s overlap list (reduction axis)

    @pl.when(k == 0)
    def _():
        out_ref[...] = jnp.zeros_like(out_ref)

    count = cnt_ref[b * n_t + ti]

    @pl.when(k < count)
    def _():
        x = x_ref[0]          # (1, tile_S) pixel x-coords, lane-dense
        y = y_ref[0]          # (1, tile_S)
        img = img_ref[0]      # (C1_pad, tile_S); row C is all ones, rows > C are zeros
        tile_S = x.shape[1]

        x1 = jnp.floor(x)
        y1 = jnp.floor(y)
        fx = x - x1
        fy = y - y1
        x1i = x1.astype(jnp.int32)    # coords were clamped in the wrapper -> small ints
        y1i = y1.astype(jnp.int32)

        t_start = ti * tile_T

        # Separable Gaussian: 4 + 4 exps instead of 16.
        wxs, txs, vxs = [], [], []
        for dx in range(4):
            off = dx - 1
            txi = x1i + off
            vxs.append(jnp.logical_and(txi >= 0, txi < Wd))
            wxs.append(jnp.exp(-(fx - float(off)) ** 2))
            txs.append(txi)
        wys, tys, vys = [], [], []
        for dy in range(4):
            off = dy - 1
            tyi = y1i + off
            vys.append(jnp.logical_and(tyi >= 0, tyi < Hd))
            wys.append(jnp.exp(-(fy - float(off)) ** 2))
            tys.append(tyi * Wd - t_start)   # local flattened row base

        # Local destination index on the sublane axis; broadcast inside the compare
        # (no materialized (tile_T, tile_S) iota).
        row = jax.lax.broadcasted_iota(jnp.int32, (tile_T, 1), 0)

        # The 16 stencil taps of one source pixel hit 16 *distinct* flattened targets
        # (guaranteed for Wd >= 4; invalid taps are forced to -1), so the select chain is
        # equivalent to summing one-hot contributions.
        A = jnp.zeros((tile_T, tile_S), jnp.float32)
        for dy in range(4):
            for dx in range(4):
                valid = jnp.logical_and(vxs[dx], vys[dy])
                t = jnp.where(valid, tys[dy] + txs[dx], -1)     # (1, tile_S)
                wv = wxs[dx] * wys[dy]                          # (1, tile_S)
                A = jnp.where(t == row, wv, A)

        # (C1_pad, tile_S) x (tile_T, tile_S)^T -> (C1_pad, tile_T) on the MXU.
        acc = jax.lax.dot_general(
            img, A,
            dimension_numbers=(((1,), (1,)), ((), ())),
            preferred_element_type=jnp.float32)
        out_ref[0] += acc


def flow_reversal(src_img, src_flo, dst_img_shape=None, max_overlaps=None):
    """src_img: (B, C, Hs, Ws); src_flo: (B, Hs, Ws, 2) normalized to [-1, 1].
    Returns (imgw, o), each (B, C, Hd, Wd) — matching FlowReversal.forward."""
    B, C, Hs, Ws = src_img.shape
    if dst_img_shape is None:
        Hd, Wd = Hs, Ws
    else:
        Hd, Wd = dst_img_shape
    # Select-chain splat assumes the 16 stencil targets per source pixel are distinct.
    assert Wd >= 4, "FlowReversal Pallas kernel requires destination width >= 4"

    S = Hs * Ws
    T = Hd * Wd
    C1 = C + 1
    C1_pad = max(_round_up(C1, 8), 8)     # ones row + zero rows -> full (8,*) sublane tiles

    tile_S = min(1024, _round_up(S, 128))
    tile_T = min(256, _round_up(T, 128))  # smaller tile_T: the A-build cost scales with it
    S_pad = _round_up(S, tile_S)
    T_pad = _round_up(T, tile_T)
    n_s = S_pad // tile_S
    n_t = T_pad // tile_T

    # --- normalized flow -> pixel coords, clamp, flatten, pad -------------------------
    x = (src_flo[..., 0].astype(jnp.float32) + 1.0) / 2.0 * Wd
    y = (src_flo[..., 1].astype(jnp.float32) + 1.0) / 2.0 * Hd
    x = x.reshape(B, S)
    y = y.reshape(B, S)
    # Clamp to a small off-image band: preserves every valid target (valid needs
    # x in (-3, Wd+2), y in (-3, Hd+2)) and keeps all int32 target math small.
    x = jnp.clip(x, -4.0, Wd + 4.0)
    y = jnp.clip(y, -4.0, Hd + 4.0)
    SENTINEL = -4.0   # padded sources land off-image -> zero contribution
    if S_pad != S:
        pad = ((0, 0), (0, S_pad - S))
        x = jnp.pad(x, pad, constant_values=SENTINEL)
        y = jnp.pad(y, pad, constant_values=SENTINEL)

    # Image with an appended ones-channel (occupancy) + zero channels up to C1_pad.
    img = jnp.concatenate([
        src_img.astype(jnp.float32).reshape(B, C, S),
        jnp.ones((B, 1, S), jnp.float32),
        jnp.zeros((B, C1_pad - C1, S), jnp.float32),
    ], axis=1)                                                   # (B, C1_pad, S)
    if S_pad != S:
        img = jnp.pad(img, ((0, 0), (0, 0), (0, S_pad - S)))

    # --- coarse per-source-tile target bounds (padding lanes masked out) --------------
    y1i = jnp.floor(y).astype(jnp.int32)                         # (B, S_pad)
    lane_valid = (jnp.arange(S_pad) < S)[None, :]
    y_for_min = jnp.where(lane_valid, y1i, Hd + 4).reshape(B, n_s, tile_S)
    y_for_max = jnp.where(lane_valid, y1i, -8).reshape(B, n_s, tile_S)
    ty_lo = jnp.clip(jnp.min(y_for_min, axis=-1) - 1, 0, Hd - 1)
    ty_hi = jnp.clip(jnp.max(y_for_max, axis=-1) + 2, 0, Hd - 1)
    t_lo = ty_lo * Wd                                            # (B, n_s)
    t_hi = ty_hi * Wd + (Wd - 1)

    # --- overlap table per (b, ti): packed list of overlapping source tiles -----------
    t_start = jnp.arange(n_t, dtype=jnp.int32)[None, :, None] * tile_T     # (1, n_t, 1)
    overlap = jnp.logical_and(t_lo[:, None, :] < t_start + tile_T,
                              t_hi[:, None, :] >= t_start)                 # (B, n_t, n_s)
    counts = jnp.sum(overlap.astype(jnp.int32), axis=-1)                   # (B, n_t)
    # Stable ascending argsort of (not overlap) -> overlapping si first, in order.
    order = jnp.argsort(jnp.logical_not(overlap).astype(jnp.int32), axis=-1)

    if max_overlaps is None:
        try:
            max_k = max(int(jax.device_get(jnp.max(counts))), 1)
        except Exception:   # traced under jit -> conservative static worst case
            max_k = n_s
    else:
        max_k = int(max_overlaps)
    max_k = min(max(max_k, 1), n_s)
    counts = jnp.minimum(counts, max_k)

    # Pad each (b, ti) list by repeating its last valid entry so padded grid steps keep
    # the same block index (Pallas then skips the input DMA for those steps).
    pad_idx = jnp.maximum(counts - 1, 0)[..., None]                         # (B, n_t, 1)
    k_idx = jnp.minimum(jnp.arange(max_k, dtype=jnp.int32)[None, None, :], pad_idx)
    si_table = jnp.take_along_axis(order, k_idx, axis=-1).astype(jnp.int32)  # (B, n_t, max_k)

    # Flatten SMEM scalars to 1-D (avoids (.., small-last-dim) SMEM padding blowup).
    si_table_flat = si_table.reshape(B * n_t * max_k)
    counts_flat = counts.reshape(B * n_t).astype(jnp.int32)

    x_in = x.reshape(B, 1, S_pad)
    y_in = y.reshape(B, 1, S_pad)

    kernel = functools.partial(_flow_reversal_kernel, Hd=Hd, Wd=Wd,
                               tile_T=tile_T, n_t=n_t, max_k=max_k)

    def src_map(b, ti, k, tbl, cnt):
        return (b, 0, tbl[(b * n_t + ti) * max_k + k])

    out = pl.pallas_call(
        kernel,
        out_shape=jax.ShapeDtypeStruct((B, C1_pad, T_pad), jnp.float32),
        grid_spec=pltpu.PrefetchScalarGridSpec(
            num_scalar_prefetch=2,
            grid=(B, n_t, max_k),
            in_specs=[
                pl.BlockSpec((1, 1, tile_S), src_map),
                pl.BlockSpec((1, 1, tile_S), src_map),
                pl.BlockSpec((1, C1_pad, tile_S), src_map),
            ],
            out_specs=pl.BlockSpec((1, C1_pad, tile_T),
                                   lambda b, ti, k, tbl, cnt: (b, 0, ti)),
        ),
        compiler_params=pltpu.CompilerParams(
            dimension_semantics=("parallel", "parallel", "arbitrary"),
        ),
    )(si_table_flat, counts_flat, x_in, y_in, img)

    out = out[:, :, :T]                                       # drop destination padding
    imgw = out[:, :C].reshape(B, C, Hd, Wd)
    o = jnp.broadcast_to(out[:, C:C + 1].reshape(B, 1, Hd, Wd), (B, C, Hd, Wd))
    return imgw, o


def _reference(src_img, src_flo, dst_hw=None):
    """Pure-JAX reference mirroring the PyTorch scatter semantics."""
    B, C, Hs, Ws = src_img.shape
    Hd, Wd = (Hs, Ws) if dst_hw is None else dst_hw
    x = (src_flo[..., 0].astype(jnp.float32) + 1.0) / 2.0 * Wd
    y = (src_flo[..., 1].astype(jnp.float32) + 1.0) / 2.0 * Hd
    x1 = jnp.floor(x)
    y1 = jnp.floor(y)
    imgw = jnp.zeros((B, C, Hd, Wd), jnp.float32)
    o = jnp.zeros((B, C, Hd, Wd), jnp.float32)
    b_idx = jnp.arange(B)[:, None, None, None]
    c_idx = jnp.arange(C)[None, :, None, None]
    for dy in range(4):
        for dx in range(4):
            tx = x1 + (dx - 1.0)
            ty = y1 + (dy - 1.0)
            w = jnp.exp(-((x - tx) ** 2 + (y - ty) ** 2))
            txi = tx.astype(jnp.int32)
            tyi = ty.astype(jnp.int32)
            valid = (txi >= 0) & (txi < Wd) & (tyi >= 0) & (tyi < Hd)
            wv = jnp.where(valid, w, 0.0)[:, None]                 # (B,1,Hs,Ws)
            txc = jnp.where(valid, txi, 0)[:, None]
            tyc = jnp.where(valid, tyi, 0)[:, None]
            imgw = imgw.at[b_idx, c_idx, tyc, txc].add(src_img.astype(jnp.float32) * wv)
            o = o.at[b_idx, c_idx, tyc, txc].add(jnp.broadcast_to(wv, (B, C, Hs, Ws)))
    return imgw, o


if __name__ == "__main__":
    key = jax.random.PRNGKey(0)
    k1, k2, k3, k4, k5, k6 = jax.random.split(key, 6)

    # Case 1: aligned shapes, dst == src.
    B, C, H, W = 2, 4, 16, 16
    src_img = jax.random.normal(k1, (B, C, H, W), dtype=jnp.float32)
    src_flo = jax.random.uniform(k2, (B, H, W, 2), dtype=jnp.float32, minval=-1.0, maxval=1.0)
    imgw, o = flow_reversal(src_img, src_flo)
    jax.block_until_ready((imgw, o))
    imgw_r, o_r = _reference(src_img, src_flo)
    np.testing.assert_allclose(np.asarray(imgw), np.asarray(imgw_r), rtol=1e-4, atol=1e-4)
    np.testing.assert_allclose(np.asarray(o), np.asarray(o_r), rtol=1e-4, atol=1e-4)

    # Case 2: ragged spatial sizes + different destination shape (exercises padding path).
    B2, C2, H2, W2 = 1, 3, 12, 12
    dst_hw = (20, 20)
    src_img2 = jax.random.normal(k3, (B2, C2, H2, W2), dtype=jnp.float32)
    src_flo2 = jax.random.uniform(k4, (B2, H2, W2, 2), dtype=jnp.float32, minval=-1.0, maxval=1.0)
    imgw2, o2 = flow_reversal(src_img2, src_flo2, dst_img_shape=dst_hw)
    jax.block_until_ready((imgw2, o2))
    imgw2_r, o2_r = _reference(src_img2, src_flo2, dst_hw=dst_hw)
    np.testing.assert_allclose(np.asarray(imgw2), np.asarray(imgw2_r), rtol=1e-4, atol=1e-4)
    np.testing.assert_allclose(np.asarray(o2), np.asarray(o2_r), rtol=1e-4, atol=1e-4)

    # Case 3: multiple source & destination tiles with near-identity flow — exercises the
    # scalar-prefetched overlap table and the repeated-block-index (DMA-skip) padding.
    B3, C3, H3, W3 = 1, 2, 40, 40
    xs = (jnp.arange(W3, dtype=jnp.float32) + 0.5) / W3 * 2.0 - 1.0
    ys = (jnp.arange(H3, dtype=jnp.float32) + 0.5) / H3 * 2.0 - 1.0
    base = jnp.stack([jnp.broadcast_to(xs[None, :], (H3, W3)),
                      jnp.broadcast_to(ys[:, None], (H3, W3))], axis=-1)
    src_flo3 = (base + 0.05 * jax.random.normal(k5, (H3, W3, 2), dtype=jnp.float32))[None]
    src_img3 = jax.random.normal(k6, (B3, C3, H3, W3), dtype=jnp.float32)
    imgw3, o3 = flow_reversal(src_img3, src_flo3)
    jax.block_until_ready((imgw3, o3))
    imgw3_r, o3_r = _reference(src_img3, src_flo3)
    np.testing.assert_allclose(np.asarray(imgw3), np.asarray(imgw3_r), rtol=1e-4, atol=1e-4)
    np.testing.assert_allclose(np.asarray(o3), np.asarray(o3_r), rtol=1e-4, atol=1e-4)

    print("KERNEL_OK")
</pallas_src>

<mosaic_0001>
module attributes {stable_mosaic.version = 11 : i64} {
  func.func @_flow_reversal_kernel(%arg0: i32, %arg1: i32, %arg2: i32, %arg3: memref<2xi32, #tpu.memory_space<smem>>, %arg4: memref<2xi32, #tpu.memory_space<smem>>, %arg5: memref<1x1x256xf32, #tpu.memory_space<vmem>>, %arg6: memref<1x1x256xf32, #tpu.memory_space<vmem>>, %arg7: memref<1x8x256xf32, #tpu.memory_space<vmem>>, %arg8: memref<1x8x256xf32, #tpu.memory_space<vmem>>) attributes {dimension_semantics = [#tpu.dimension_semantics<parallel>, #tpu.dimension_semantics<parallel>, #tpu.dimension_semantics<arbitrary>], iteration_bounds = array<i64: 2, 1, 1>, scalar_prefetch = 2 : i64, scratch_operands = 0 : i64, tpu.core_type = #tpu.core_type<tc>, window_params = [{transform_indices = @transform_0, window_bounds = array<i64: 1, 1, 256>}, {transform_indices = @transform_1, window_bounds = array<i64: 1, 1, 256>}, {transform_indices = @transform_2, window_bounds = array<i64: 1, 8, 256>}, {transform_indices = @transform_3, window_bounds = array<i64: 1, 8, 256>}]} {
    %c0_i32 = arith.constant 0 : i32
    %0 = arith.cmpi eq, %arg2, %c0_i32 : i32
    %1 = arith.extui %0 : i1 to i32
    %c0_i32_0 = arith.constant 0 : i32
    %2 = arith.cmpi ne, %1, %c0_i32_0 : i32
    scf.if %2 {
      %cst = arith.constant 0.000000e+00 : f32
      %10 = vector.broadcast %cst : f32 to vector<1x8x256xf32>
      %c0 = arith.constant 0 : index
      %c0_2 = arith.constant 0 : index
      %c0_3 = arith.constant 0 : index
      %11 = vector.load %arg8[%c0, %c0_2, %c0_3] : memref<1x8x256xf32, #tpu.memory_space<vmem>>, vector<1x8x256xf32>
      tpu.vector_store %arg8[%c0, %c0_2, %c0_3], %10 {strides = array<i32>} : memref<1x8x256xf32, #tpu.memory_space<vmem>>, vector<1x8x256xf32>,
    } else {
    }
    %c1_i32 = arith.constant 1 : i32
    %3 = arith.muli %arg0, %c1_i32 : i32
    %4 = arith.addi %3, %arg1 : i32
    %5 = arith.index_cast %4 : i32 to index
    %6 = memref.load %arg4[%5] : memref<2xi32, #tpu.memory_space<smem>>
    %7 = arith.cmpi slt, %arg2, %6 : i32
    %8 = arith.extui %7 : i1 to i32
    %c0_i32_1 = arith.constant 0 : i32
    %9 = arith.cmpi ne, %8, %c0_i32_1 : i32
    scf.if %9 {
      %c0 = arith.constant 0 : index
      %c0_2 = arith.constant 0 : index
      %c0_3 = arith.constant 0 : index
      %10 = vector.load %arg5[%c0, %c0_2, %c0_3] : memref<1x1x256xf32, #tpu.memory_space<vmem>>, vector<1x1x256xf32>
      %11 = vector.shape_cast %10 : vector<1x1x256xf32> to vector<1x256xf32>
      %c0_4 = arith.constant 0 : index
      %c0_5 = arith.constant 0 : index
      %c0_6 = arith.constant 0 : index
      %12 = vector.load %arg6[%c0_4, %c0_5, %c0_6] : memref<1x1x256xf32, #tpu.memory_space<vmem>>, vector<1x1x256xf32>
      %13 = vector.shape_cast %12 : vector<1x1x256xf32> to vector<1x256xf32>
      %c0_7 = arith.constant 0 : index
      %c0_8 = arith.constant 0 : index
      %c0_9 = arith.constant 0 : index
      %14 = vector.load %arg7[%c0_7, %c0_8, %c0_9] : memref<1x8x256xf32, #tpu.memory_space<vmem>>, vector<1x8x256xf32>
      %15 = vector.shape_cast %14 : vector<1x8x256xf32> to vector<8x256xf32>
      %16 = math.floor %11 : vector<1x256xf32>
      %17 = math.floor %13 : vector<1x256xf32>
      %18 = arith.subf %11, %16 : vector<1x256xf32>
      %19 = arith.subf %13, %17 : vector<1x256xf32>
      %20 = arith.fptosi %16 : vector<1x256xf32> to vector<1x256xi32>
      %21 = arith.fptosi %17 : vector<1x256xf32> to vector<1x256xi32>
      %c256_i32 = arith.constant 256 : i32
      %22 = arith.muli %arg1, %c256_i32 : i32
      %c-1_i32 = arith.constant -1 : i32
      %23 = vector.broadcast %c-1_i32 : i32 to vector<1x256xi32>
      %24 = arith.addi %20, %23 : vector<1x256xi32>
      %c0_i32_10 = arith.constant 0 : i32
      %25 = vector.broadcast %c0_i32_10 : i32 to vector<1x256xi32>
      %26 = arith.cmpi sge, %24, %25 : vector<1x256xi32>
      %c16_i32 = arith.constant 16 : i32
      %27 = vector.broadcast %c16_i32 : i32 to vector<1x256xi32>
      %28 = arith.cmpi slt, %24, %27 : vector<1x256xi32>
      %29 = arith.andi %26, %28 : vector<1x256xi1>
      %cst = arith.constant -1.000000e+00 : f32
      %30 = vector.broadcast %cst : f32 to vector<1x256xf32>
      %31 = arith.subf %18, %30 : vector<1x256xf32>
      %32 = arith.mulf %31, %31 : vector<1x256xf32>
      %cst_11 = arith.constant 0.000000e+00 : f32
      %33 = vector.broadcast %cst_11 : f32 to vector<1x256xf32>
      %34 = arith.subf %33, %32 : vector<1x256xf32>
      %35 = math.exp %34 : vector<1x256xf32>
      %c0_i32_12 = arith.constant 0 : i32
      %36 = vector.broadcast %c0_i32_12 : i32 to vector<1x256xi32>
      %37 = arith.addi %20, %36 : vector<1x256xi32>
      %c0_i32_13 = arith.constant 0 : i32
      %38 = vector.broadcast %c0_i32_13 : i32 to vector<1x256xi32>
      %39 = arith.cmpi sge, %37, %38 : vector<1x256xi32>
      %c16_i32_14 = arith.constant 16 : i32
      %40 = vector.broadcast %c16_i32_14 : i32 to vector<1x256xi32>
      %41 = arith.cmpi slt, %37, %40 : vector<1x256xi32>
      %42 = arith.andi %39, %41 : vector<1x256xi1>
      %cst_15 = arith.constant 0.000000e+00 : f32
      %43 = vector.broadcast %cst_15 : f32 to vector<1x256xf32>
      %44 = arith.subf %18, %43 : vector<1x256xf32>
      %45 = arith.mulf %44, %44 : vector<1x256xf32>
      %cst_16 = arith.constant 0.000000e+00 : f32
      %46 = vector.broadcast %cst_16 : f32 to vector<1x256xf32>
      %47 = arith.subf %46, %45 : vector<1x256xf32>
      %48 = math.exp %47 : vector<1x256xf32>
      %c1_i32_17 = arith.constant 1 : i32
      %49 = vector.broadcast %c1_i32_17 : i32 to vector<1x256xi32>
      %50 = arith.addi %20, %49 : vector<1x256xi32>
      %c0_i32_18 = arith.constant 0 : i32
      %51 = vector.broadcast %c0_i32_18 : i32 to vector<1x256xi32>
      %52 = arith.cmpi sge, %50, %51 : vector<1x256xi32>
      %c16_i32_19 = arith.constant 16 : i32
      %53 = vector.broadcast %c16_i32_19 : i32 to vector<1x256xi32>
      %54 = arith.cmpi slt, %50, %53 : vector<1x256xi32>
      %55 = arith.andi %52, %54 : vector<1x256xi1>
      %cst_20 = arith.constant 1.000000e+00 : f32
      %56 = vector.broadcast %cst_20 : f32 to vector<1x256xf32>
      %57 = arith.subf %18, %56 : vector<1x256xf32>
      %58 = arith.mulf %57, %57 : vector<1x256xf32>
      %cst_21 = arith.constant 0.000000e+00 : f32
      %59 = vector.broadcast %cst_21 : f32 to vector<1x256xf32>
      %60 = arith.subf %59, %58 : vector<1x256xf32>
      %61 = math.exp %60 : vector<1x256xf32>
      %c2_i32 = arith.constant 2 : i32
      %62 = vector.broadcast %c2_i32 : i32 to vector<1x256xi32>
      %63 = arith.addi %20, %62 : vector<1x256xi32>
      %c0_i32_22 = arith.constant 0 : i32
      %64 = vector.broadcast %c0_i32_22 : i32 to vector<1x256xi32>
      %65 = arith.cmpi sge, %63, %64 : vector<1x256xi32>
      %c16_i32_23 = arith.constant 16 : i32
      %66 = vector.broadcast %c16_i32_23 : i32 to vector<1x256xi32>
      %67 = arith.cmpi slt, %63, %66 : vector<1x256xi32>
      %68 = arith.andi %65, %67 : vector<1x256xi1>
      %cst_24 = arith.constant 2.000000e+00 : f32
      %69 = vector.broadcast %cst_24 : f32 to vector<1x256xf32>
      %70 = arith.subf %18, %69 : vector<1x256xf32>
      %71 = arith.mulf %70, %70 : vector<1x256xf32>
      %cst_25 = arith.constant 0.000000e+00 : f32
      %72 = vector.broadcast %cst_25 : f32 to vector<1x256xf32>
      %73 = arith.subf %72, %71 : vector<1x256xf32>
      %74 = math.exp %73 : vector<1x256xf32>
      %c-1_i32_26 = arith.constant -1 : i32
      %75 = vector.broadcast %c-1_i32_26 : i32 to vector<1x256xi32>
      %76 = arith.addi %21, %75 : vector<1x256xi32>
      %c0_i32_27 = arith.constant 0 : i32
      %77 = vector.broadcast %c0_i32_27 : i32 to vector<1x256xi32>
      %78 = arith.cmpi sge, %76, %77 : vector<1x256xi32>
      %c16_i32_28 = arith.constant 16 : i32
      %79 = vector.broadcast %c16_i32_28 : i32 to vector<1x256xi32>
      %80 = arith.cmpi slt, %76, %79 : vector<1x256xi32>
      %81 = arith.andi %78, %80 : vector<1x256xi1>
      %cst_29 = arith.constant -1.000000e+00 : f32
      %82 = vector.broadcast %cst_29 : f32 to vector<1x256xf32>
      %83 = arith.subf %19, %82 : vector<1x256xf32>
      %84 = arith.mulf %83, %83 : vector<1x256xf32>
      %cst_30 = arith.constant 0.000000e+00 : f32
      %85 = vector.broadcast %cst_30 : f32 to vector<1x256xf32>
      %86 = arith.subf %85, %84 : vector<1x256xf32>
      %87 = math.exp %86 : vector<1x256xf32>
      %c16_i32_31 = arith.constant 16 : i32
      %88 = vector.broadcast %c16_i32_31 : i32 to vector<1x256xi32>
      %89 = arith.muli %76, %88 : vector<1x256xi32>
      %90 = vector.broadcast %22 : i32 to vector<1x256xi32>
      %91 = arith.subi %89, %90 : vector<1x256xi32>
      %c0_i32_32 = arith.constant 0 : i32
      %92 = vector.broadcast %c0_i32_32 : i32 to vector<1x256xi32>
      %93 = arith.addi %21, %92 : vector<1x256xi32>
      %c0_i32_33 = arith.constant 0 : i32
      %94 = vector.broadcast %c0_i32_33 : i32 to vector<1x256xi32>
      %95 = arith.cmpi sge, %93, %94 : vector<1x256xi32>
      %c16_i32_34 = arith.constant 16 : i32
      %96 = vector.broadcast %c16_i32_34 : i32 to vector<1x256xi32>
      %97 = arith.cmpi slt, %93, %96 : vector<1x256xi32>
      %98 = arith.andi %95, %97 : vector<1x256xi1>
      %cst_35 = arith.constant 0.000000e+00 : f32
      %99 = vector.broadcast %cst_35 : f32 to vector<1x256xf32>
      %100 = arith.subf %19, %99 : vector<1x256xf32>
      %101 = arith.mulf %100, %100 : vector<1x256xf32>
      %cst_36 = arith.constant 0.000000e+00 : f32
      %102 = vector.broadcast %cst_36 : f32 to vector<1x256xf32>
      %103 = arith.subf %102, %101 : vector<1x256xf32>
      %104 = math.exp %103 : vector<1x256xf32>
      %c16_i32_37 = arith.constant 16 : i32
      %105 = vector.broadcast %c16_i32_37 : i32 to vector<1x256xi32>
      %106 = arith.muli %93, %105 : vector<1x256xi32>
      %107 = vector.broadcast %22 : i32 to vector<1x256xi32>
      %108 = arith.subi %106, %107 : vector<1x256xi32>
      %c1_i32_38 = arith.constant 1 : i32
      %109 = vector.broadcast %c1_i32_38 : i32 to vector<1x256xi32>
      %110 = arith.addi %21, %109 : vector<1x256xi32>
      %c0_i32_39 = arith.constant 0 : i32
      %111 = vector.broadcast %c0_i32_39 : i32 to vector<1x256xi32>
      %112 = arith.cmpi sge, %110, %111 : vector<1x256xi32>
      %c16_i32_40 = arith.constant 16 : i32
      %113 = vector.broadcast %c16_i32_40 : i32 to vector<1x256xi32>
      %114 = arith.cmpi slt, %110, %113 : vector<1x256xi32>
      %115 = arith.andi %112, %114 : vector<1x256xi1>
      %cst_41 = arith.constant 1.000000e+00 : f32
      %116 = vector.broadcast %cst_41 : f32 to vector<1x256xf32>
      %117 = arith.subf %19, %116 : vector<1x256xf32>
      %118 = arith.mulf %117, %117 : vector<1x256xf32>
      %cst_42 = arith.constant 0.000000e+00 : f32
      %119 = vector.broadcast %cst_42 : f32 to vector<1x256xf32>
      %120 = arith.subf %119, %118 : vector<1x256xf32>
      %121 = math.exp %120 : vector<1x256xf32>
      %c16_i32_43 = arith.constant 16 : i32
      %122 = vector.broadcast %c16_i32_43 : i32 to vector<1x256xi32>
      %123 = arith.muli %110, %122 : vector<1x256xi32>
      %124 = vector.broadcast %22 : i32 to vector<1x256xi32>
      %125 = arith.subi %123, %124 : vector<1x256xi32>
      %c2_i32_44 = arith.constant 2 : i32
      %126 = vector.broadcast %c2_i32_44 : i32 to vector<1x256xi32>
      %127 = arith.addi %21, %126 : vector<1x256xi32>
      %c0_i32_45 = arith.constant 0 : i32
      %128 = vector.broadcast %c0_i32_45 : i32 to vector<1x256xi32>
      %129 = arith.cmpi sge, %127, %128 : vector<1x256xi32>
      %c16_i32_46 = arith.constant 16 : i32
      %130 = vector.broadcast %c16_i32_46 : i32 to vector<1x256xi32>
      %131 = arith.cmpi slt, %127, %130 : vector<1x256xi32>
      %132 = arith.andi %129, %131 : vector<1x256xi1>
      %cst_47 = arith.constant 2.000000e+00 : f32
      %133 = vector.broadcast %cst_47 : f32 to vector<1x256xf32>
      %134 = arith.subf %19, %133 : vector<1x256xf32>
      %135 = arith.mulf %134, %134 : vector<1x256xf32>
      %cst_48 = arith.constant 0.000000e+00 : f32
      %136 = vector.broadcast %cst_48 : f32 to vector<1x256xf32>
      %137 = arith.subf %136, %135 : vector<1x256xf32>
      %138 = math.exp %137 : vector<1x256xf32>
      %c16_i32_49 = arith.constant 16 : i32
      %139 = vector.broadcast %c16_i32_49 : i32 to vector<1x256xi32>
      %140 = arith.muli %127, %139 : vector<1x256xi32>
      %141 = vector.broadcast %22 : i32 to vector<1x256xi32>
      %142 = arith.subi %140, %141 : vector<1x256xi32>
      %143 = tpu.iota {dimensions = array<i32: 0>} : vector<256x1xi32>
      %cst_50 = arith.constant 0.000000e+00 : f32
      %144 = vector.broadcast %cst_50 : f32 to vector<256x256xf32>
      %145 = arith.andi %29, %81 : vector<1x256xi1>
      %146 = arith.addi %91, %24 : vector<1x256xi32>
      %c-1_i32_51 = arith.constant -1 : i32
      %147 = vector.broadcast %c-1_i32_51 : i32 to vector<1x256xi32>
      %148 = arith.select %145, %146, %147 : vector<1x256xi1>, vector<1x256xi32>
      %149 = arith.mulf %35, %87 : vector<1x256xf32>
      %150 = vector.broadcast %148 : vector<1x256xi32> to vector<256x256xi32>
      %151 = vector.broadcast %143 : vector<256x1xi32> to vector<256x256xi32>
      %152 = arith.cmpi eq, %150, %151 : vector<256x256xi32>
      %153 = vector.shape_cast %149 : vector<1x256xf32> to vector<1x256xf32>
      %154 = vector.broadcast %153 : vector<1x256xf32> to vector<256x256xf32>
      %155 = arith.select %152, %154, %144 : vector<256x256xi1>, vector<256x256xf32>
      %156 = arith.andi %42, %81 : vector<1x256xi1>
      %157 = arith.addi %91, %37 : vector<1x256xi32>
      %c-1_i32_52 = arith.constant -1 : i32
      %158 = vector.broadcast %c-1_i32_52 : i32 to vector<1x256xi32>
      %159 = arith.select %156, %157, %158 : vector<1x256xi1>, vector<1x256xi32>
      %160 = arith.mulf %48, %87 : vector<1x256xf32>
      %161 = vector.broadcast %159 : vector<1x256xi32> to vector<256x256xi32>
      %162 = vector.broadcast %143 : vector<256x1xi32> to vector<256x256xi32>
      %163 = arith.cmpi eq, %161, %162 : vector<256x256xi32>
      %164 = vector.shape_cast %160 : vector<1x256xf32> to vector<1x256xf32>
      %165 = vector.broadcast %164 : vector<1x256xf32> to vector<256x256xf32>
      %166 = arith.select %163, %165, %155 : vector<256x256xi1>, vector<256x256xf32>
      %167 = arith.andi %55, %81 : vector<1x256xi1>
      %168 = arith.addi %91, %50 : vector<1x256xi32>
      %c-1_i32_53 = arith.constant -1 : i32
      %169 = vector.broadcast %c-1_i32_53 : i32 to vector<1x256xi32>
      %170 = arith.select %167, %168, %169 : vector<1x256xi1>, vector<1x256xi32>
      %171 = arith.mulf %61, %87 : vector<1x256xf32>
      %172 = vector.broadcast %170 : vector<1x256xi32> to vector<256x256xi32>
      %173 = vector.broadcast %143 : vector<256x1xi32> to vector<256x256xi32>
      %174 = arith.cmpi eq, %172, %173 : vector<256x256xi32>
      %175 = vector.shape_cast %171 : vector<1x256xf32> to vector<1x256xf32>
      %176 = vector.broadcast %175 : vector<1x256xf32> to vector<256x256xf32>
      %177 = arith.select %174, %176, %166 : vector<256x256xi1>, vector<256x256xf32>
      %178 = arith.andi %68, %81 : vector<1x256xi1>
      %179 = arith.addi %91, %63 : vector<1x256xi32>
      %c-1_i32_54 = arith.constant -1 : i32
      %180 = vector.broadcast %c-1_i32_54 : i32 to vector<1x256xi32>
      %181 = arith.select %178, %179, %180 : vector<1x256xi1>, vector<1x256xi32>
      %182 = arith.mulf %74, %87 : vector<1x256xf32>
      %183 = vector.broadcast %181 : vector<1x256xi32> to vector<256x256xi32>
      %184 = vector.broadcast %143 : vector<256x1xi32> to vector<256x256xi32>
      %185 = arith.cmpi eq, %183, %184 : vector<256x256xi32>
      %186 = vector.shape_cast %182 : vector<1x256xf32> to vector<1x256xf32>
      %187 = vector.broadcast %186 : vector<1x256xf32> to vector<256x256xf32>
      %188 = arith.select %185, %187, %177 : vector<256x256xi1>, vector<256x256xf32>
      %189 = arith.andi %29, %98 : vector<1x256xi1>
      %190 = arith.addi %108, %24 : vector<1x256xi32>
      %c-1_i32_55 = arith.constant -1 : i32
      %191 = vector.broadcast %c-1_i32_55 : i32 to vector<1x256xi32>
      %192 = arith.select %189, %190, %191 : vector<1x256xi1>, vector<1x256xi32>
      %193 = arith.mulf %35, %104 : vector<1x256xf32>
      %194 = vector.broadcast %192 : vector<1x256xi32> to vector<256x256xi32>
      %195 = vector.broadcast %143 : vector<256x1xi32> to vector<256x256xi32>
      %196 = arith.cmpi eq, %194, %195 : vector<256x256xi32>
      %197 = vector.shape_cast %193 : vector<1x256xf32> to vector<1x256xf32>
      %198 = vector.broadcast %197 : vector<1x256xf32> to vector<256x256xf32>
      %199 = arith.select %196, %198, %188 : vector<256x256xi1>, vector<256x256xf32>
      %200 = arith.andi %42, %98 : vector<1x256xi1>
      %201 = arith.addi %108, %37 : vector<1x256xi32>
      %c-1_i32_56 = arith.constant -1 : i32
      %202 = vector.broadcast %c-1_i32_56 : i32 to vector<1x256xi32>
      %203 = arith.select %200, %201, %202 : vector<1x256xi1>, vector<1x256xi32>
      %204 = arith.mulf %48, %104 : vector<1x256xf32>
      %205 = vector.broadcast %203 : vector<1x256xi32> to vector<256x256xi32>
      %206 = vector.broadcast %143 : vector<256x1xi32> to vector<256x256xi32>
      %207 = arith.cmpi eq, %205, %206 : vector<256x256xi32>
      %208 = vector.shape_cast %204 : vector<1x256xf32> to vector<1x256xf32>
      %209 = vector.broadcast %208 : vector<1x256xf32> to vector<256x256xf32>
      %210 = arith.select %207, %209, %199 : vector<256x256xi1>, vector<256x256xf32>
      %211 = arith.andi %55, %98 : vector<1x256xi1>
      %212 = arith.addi %108, %50 : vector<1x256xi32>
      %c-1_i32_57 = arith.constant -1 : i32
      %213 = vector.broadcast %c-1_i32_57 : i32 to vector<1x256xi32>
      %214 = arith.select %211, %212, %213 : vector<1x256xi1>, vector<1x256xi32>
      %215 = arith.mulf %61, %104 : vector<1x256xf32>
      %216 = vector.broadcast %214 : vector<1x256xi32> to vector<256x256xi32>
      %217 = vector.broadcast %143 : vector<256x1xi32> to vector<256x256xi32>
      %218 = arith.cmpi eq, %216, %217 : vector<256x256xi32>
      %219 = vector.shape_cast %215 : vector<1x256xf32> to vector<1x256xf32>
      %220 = vector.broadcast %219 : vector<1x256xf32> to vector<256x256xf32>
      %221 = arith.select %218, %220, %210 : vector<256x256xi1>, vector<256x256xf32>
      %222 = arith.andi %68, %98 : vector<1x256xi1>
      %223 = arith.addi %108, %63 : vector<1x256xi32>
      %c-1_i32_58 = arith.constant -1 : i32
      %224 = vector.broadcast %c-1_i32_58 : i32 to vector<1x256xi32>
      %225 = arith.select %222, %223, %224 : vector<1x256xi1>, vector<1x256xi32>
      %226 = arith.mulf %74, %104 : vector<1x256xf32>
      %227 = vector.broadcast %225 : vector<1x256xi32> to vector<256x256xi32>
      %228 = vector.broadcast %143 : vector<256x1xi32> to vector<256x256xi32>
      %229 = arith.cmpi eq, %227, %228 : vector<256x256xi32>
      %230 = vector.shape_cast %226 : vector<1x256xf32> to vector<1x256xf32>
      %231 = vector.broadcast %230 : vector<1x256xf32> to vector<256x256xf32>
      %232 = arith.select %229, %231, %221 : vector<256x256xi1>, vector<256x256xf32>
      %233 = arith.andi %29, %115 : vector<1x256xi1>
      %234 = arith.addi %125, %24 : vector<1x256xi32>
      %c-1_i32_59 = arith.constant -1 : i32
      %235 = vector.broadcast %c-1_i32_59 : i32 to vector<1x256xi32>
      %236 = arith.select %233, %234, %235 : vector<1x256xi1>, vector<1x256xi32>
      %237 = arith.mulf %35, %121 : vector<1x256xf32>
      %238 = vector.broadcast %236 : vector<1x256xi32> to vector<256x256xi32>
      %239 = vector.broadcast %143 : vector<256x1xi32> to vector<256x256xi32>
      %240 = arith.cmpi eq, %238, %239 : vector<256x256xi32>
      %241 = vector.shape_cast %237 : vector<1x256xf32> to vector<1x256xf32>
      %242 = vector.broadcast %241 : vector<1x256xf32> to vector<256x256xf32>
      %243 = arith.select %240, %242, %232 : vector<256x256xi1>, vector<256x256xf32>
      %244 = arith.andi %42, %115 : vector<1x256xi1>
      %245 = arith.addi %125, %37 : vector<1x256xi32>
      %c-1_i32_60 = arith.constant -1 : i32
      %246 = vector.broadcast %c-1_i32_60 : i32 to vector<1x256xi32>
      %247 = arith.select %244, %245, %246 : vector<1x256xi1>, vector<1x256xi32>
      %248 = arith.mulf %48, %121 : vector<1x256xf32>
      %249 = vector.broadcast %247 : vector<1x256xi32> to vector<256x256xi32>
      %250 = vector.broadcast %143 : vector<256x1xi32> to vector<256x256xi32>
      %251 = arith.cmpi eq, %249, %250 : vector<256x256xi32>
      %252 = vector.shape_cast %248 : vector<1x256xf32> to vector<1x256xf32>
      %253 = vector.broadcast %252 : vector<1x256xf32> to vector<256x256xf32>
      %254 = arith.select %251, %253, %243 : vector<256x256xi1>, vector<256x256xf32>
      %255 = arith.andi %55, %115 : vector<1x256xi1>
      %256 = arith.addi %125, %50 : vector<1x256xi32>
      %c-1_i32_61 = arith.constant -1 : i32
      %257 = vector.broadcast %c-1_i32_61 : i32 to vector<1x256xi32>
      %258 = arith.select %255, %256, %257 : vector<1x256xi1>, vector<1x256xi32>
      %259 = arith.mulf %61, %121 : vector<1x256xf32>
      %260 = vector.broadcast %258 : vector<1x256xi32> to vector<256x256xi32>
      %261 = vector.broadcast %143 : vector<256x1xi32> to vector<256x256xi32>
      %262 = arith.cmpi eq, %260, %261 : vector<256x256xi32>
      %263 = vector.shape_cast %259 : vector<1x256xf32> to vector<1x256xf32>
      %264 = vector.broadcast %263 : vector<1x256xf32> to vector<256x256xf32>
      %265 = arith.select %262, %264, %254 : vector<256x256xi1>, vector<256x256xf32>
      %266 = arith.andi %68, %115 : vector<1x256xi1>
      %267 = arith.addi %125, %63 : vector<1x256xi32>
      %c-1_i32_62 = arith.constant -1 : i32
      %268 = vector.broadcast %c-1_i32_62 : i32 to vector<1x256xi32>
      %269 = arith.select %266, %267, %268 : vector<1x256xi1>, vector<1x256xi32>
      %270 = arith.mulf %74, %121 : vector<1x256xf32>
      %271 = vector.broadcast %269 : vector<1x256xi32> to vector<256x256xi32>
      %272 = vector.broadcast %143 : vector<256x1xi32> to vector<256x256xi32>
      %273 = arith.cmpi eq, %271, %272 : vector<256x256xi32>
      %274 = vector.shape_cast %270 : vector<1x256xf32> to vector<1x256xf32>
      %275 = vector.broadcast %274 : vector<1x256xf32> to vector<256x256xf32>
      %276 = arith.select %273, %275, %265 : vector<256x256xi1>, vector<256x256xf32>
      %277 = arith.andi %29, %132 : vector<1x256xi1>
      %278 = arith.addi %142, %24 : vector<1x256xi32>
      %c-1_i32_63 = arith.constant -1 : i32
      %279 = vector.broadcast %c-1_i32_63 : i32 to vector<1x256xi32>
      %280 = arith.select %277, %278, %279 : vector<1x256xi1>, vector<1x256xi32>
      %281 = arith.mulf %35, %138 : vector<1x256xf32>
      %282 = vector.broadcast %280 : vector<1x256xi32> to vector<256x256xi32>
      %283 = vector.broadcast %143 : vector<256x1xi32> to vector<256x256xi32>
      %284 = arith.cmpi eq, %282, %283 : vector<256x256xi32>
      %285 = vector.shape_cast %281 : vector<1x256xf32> to vector<1x256xf32>
      %286 = vector.broadcast %285 : vector<1x256xf32> to vector<256x256xf32>
      %287 = arith.select %284, %286, %276 : vector<256x256xi1>, vector<256x256xf32>
      %288 = arith.andi %42, %132 : vector<1x256xi1>
      %289 = arith.addi %142, %37 : vector<1x256xi32>
      %c-1_i32_64 = arith.constant -1 : i32
      %290 = vector.broadcast %c-1_i32_64 : i32 to vector<1x256xi32>
      %291 = arith.select %288, %289, %290 : vector<1x256xi1>, vector<1x256xi32>
      %292 = arith.mulf %48, %138 : vector<1x256xf32>
      %293 = vector.broadcast %291 : vector<1x256xi32> to vector<256x256xi32>
      %294 = vector.broadcast %143 : vector<256x1xi32> to vector<256x256xi32>
      %295 = arith.cmpi eq, %293, %294 : vector<256x256xi32>
      %296 = vector.shape_cast %292 : vector<1x256xf32> to vector<1x256xf32>
      %297 = vector.broadcast %296 : vector<1x256xf32> to vector<256x256xf32>
      %298 = arith.select %295, %297, %287 : vector<256x256xi1>, vector<256x256xf32>
      %299 = arith.andi %55, %132 : vector<1x256xi1>
      %300 = arith.addi %142, %50 : vector<1x256xi32>
      %c-1_i32_65 = arith.constant -1 : i32
      %301 = vector.broadcast %c-1_i32_65 : i32 to vector<1x256xi32>
      %302 = arith.select %299, %300, %301 : vector<1x256xi1>, vector<1x256xi32>
      %303 = arith.mulf %61, %138 : vector<1x256xf32>
      %304 = vector.broadcast %302 : vector<1x256xi32> to vector<256x256xi32>
      %305 = vector.broadcast %143 : vector<256x1xi32> to vector<256x256xi32>
      %306 = arith.cmpi eq, %304, %305 : vector<256x256xi32>
      %307 = vector.shape_cast %303 : vector<1x256xf32> to vector<1x256xf32>
      %308 = vector.broadcast %307 : vector<1x256xf32> to vector<256x256xf32>
      %309 = arith.select %306, %308, %298 : vector<256x256xi1>, vector<256x256xf32>
      %310 = arith.andi %68, %132 : vector<1x256xi1>
      %311 = arith.addi %142, %63 : vector<1x256xi32>
      %c-1_i32_66 = arith.constant -1 : i32
      %312 = vector.broadcast %c-1_i32_66 : i32 to vector<1x256xi32>
      %313 = arith.select %310, %311, %312 : vector<1x256xi1>, vector<1x256xi32>
      %314 = arith.mulf %74, %138 : vector<1x256xf32>
      %315 = vector.broadcast %313 : vector<1x256xi32> to vector<256x256xi32>
      %316 = vector.broadcast %143 : vector<256x1xi32> to vector<256x256xi32>
      %317 = arith.cmpi eq, %315, %316 : vector<256x256xi32>
      %318 = vector.shape_cast %314 : vector<1x256xf32> to vector<1x256xf32>
      %319 = vector.broadcast %318 : vector<1x256xf32> to vector<256x256xf32>
      %320 = arith.select %317, %319, %309 : vector<256x256xi1>, vector<256x256xf32>
      %cst_67 = arith.constant dense<0.000000e+00> : vector<8x256xf32>
      %321 = tpu.matmul %15, %320, %cst_67 {dimension_numbers = #tpu.dot_dimension_numbers<[1], [1], [0], [0], [0, 0, 1, 0], [], []>} : vector<8x256xf32>, vector<256x256xf32>, vector<8x256xf32> -> vector<8x256xf32>
      %c0_68 = arith.constant 0 : index
      %c0_69 = arith.constant 0 : index
      %c0_70 = arith.constant 0 : index
      %322 = vector.load %arg8[%c0_68, %c0_69, %c0_70] : memref<1x8x256xf32, #tpu.memory_space<vmem>>, vector<1x8x256xf32>
      %323 = vector.shape_cast %322 : vector<1x8x256xf32> to vector<8x256xf32>
      %324 = arith.addf %323, %321 : vector<8x256xf32>
      %c0_71 = arith.constant 0 : index
      %c0_72 = arith.constant 0 : index
      %c0_73 = arith.constant 0 : index
      %325 = vector.load %arg8[%c0_71, %c0_72, %c0_73] : memref<1x8x256xf32, #tpu.memory_space<vmem>>, vector<1x8x256xf32>
      %326 = vector.shape_cast %325 : vector<1x8x256xf32> to vector<8x256xf32>
      %327 = vector.shape_cast %324 : vector<8x256xf32> to vector<1x8x256xf32>
      tpu.vector_store %arg8[%c0_71, %c0_72, %c0_73], %327 {strides = array<i32>} : memref<1x8x256xf32, #tpu.memory_space<vmem>>, vector<1x8x256xf32>,
    } else {
    }
    return
  }
  func.func @transform_0(%arg0: i32, %arg1: i32, %arg2: i32, %arg3: memref<2xi32, #tpu.memory_space<smem>>, %arg4: memref<2xi32, #tpu.memory_space<smem>>) -> (i32, i32, i32) {
    %c1_i32 = arith.constant 1 : i32
    %0 = arith.muli %arg0, %c1_i32 : i32
    %1 = arith.addi %0, %arg1 : i32
    %c1_i32_0 = arith.constant 1 : i32
    %2 = arith.muli %1, %c1_i32_0 : i32
    %3 = arith.addi %2, %arg2 : i32
    %4 = arith.index_cast %3 : i32 to index
    %5 = memref.load %arg3[%4] : memref<2xi32, #tpu.memory_space<smem>>
    %c0_i32 = arith.constant 0 : i32
    %c0_i32_1 = arith.constant 0 : i32
    return %arg0, %c0_i32, %5 : i32, i32, i32
  }
  func.func @transform_1(%arg0: i32, %arg1: i32, %arg2: i32, %arg3: memref<2xi32, #tpu.memory_space<smem>>, %arg4: memref<2xi32, #tpu.memory_space<smem>>) -> (i32, i32, i32) {
    %c1_i32 = arith.constant 1 : i32
    %0 = arith.muli %arg0, %c1_i32 : i32
    %1 = arith.addi %0, %arg1 : i32
    %c1_i32_0 = arith.constant 1 : i32
    %2 = arith.muli %1, %c1_i32_0 : i32
    %3 = arith.addi %2, %arg2 : i32
    %4 = arith.index_cast %3 : i32 to index
    %5 = memref.load %arg3[%4] : memref<2xi32, #tpu.memory_space<smem>>
    %c0_i32 = arith.constant 0 : i32
    %c0_i32_1 = arith.constant 0 : i32
    return %arg0, %c0_i32, %5 : i32, i32, i32
  }
  func.func @transform_2(%arg0: i32, %arg1: i32, %arg2: i32, %arg3: memref<2xi32, #tpu.memory_space<smem>>, %arg4: memref<2xi32, #tpu.memory_space<smem>>) -> (i32, i32, i32) {
    %c1_i32 = arith.constant 1 : i32
    %0 = arith.muli %arg0, %c1_i32 : i32
    %1 = arith.addi %0, %arg1 : i32
    %c1_i32_0 = arith.constant 1 : i32
    %2 = arith.muli %1, %c1_i32_0 : i32
    %3 = arith.addi %2, %arg2 : i32
    %4 = arith.index_cast %3 : i32 to index
    %5 = memref.load %arg3[%4] : memref<2xi32, #tpu.memory_space<smem>>
    %c0_i32 = arith.constant 0 : i32
    %c0_i32_1 = arith.constant 0 : i32
    return %arg0, %c0_i32, %5 : i32, i32, i32
  }
  func.func @transform_3(%arg0: i32, %arg1: i32, %arg2: i32, %arg3: memref<2xi32, #tpu.memory_space<smem>>, %arg4: memref<2xi32, #tpu.memory_space<smem>>) -> (i32, i32, i32) {
    %c0_i32 = arith.constant 0 : i32
    %c0_i32_0 = arith.constant 0 : i32
    return %arg0, %c0_i32, %arg1 : i32, i32, i32
  }
}

</mosaic_0001>

<llo_original>
// kernel: tpu_custom_call.1
$region0: #{tpu_custom_call.1}
  #allocation0 [shape = 'u32[]', space=smem, size = 0x4, offset = 0x4, fixed_abs, tag = 'smem constant byte address 0x4 - core index']
  #allocation1 [shape = 'u32[144,128]{1,0:T(1,128)}', space=vmem, size = 0x12000, scoped, tag = 'internal scratch']
  #allocation2 [shape = 's32[1]{0}', space=sflag, size = 0x4, scoped, tag = 'scoped memory for tpu_custom_call.1']
  #allocation3 [shape = 'u8[512]{0}', space=smem, size = 0x200, scoped, tag = 'prefetched SMEM operand 0']
  #allocation4 [shape = 'u8[512]{0}', space=smem, size = 0x200, scoped, tag = 'prefetched SMEM operand 1']
  %s0 = inlined_call_operand.hbm [shape: s32[2], index: 0, kind: input, shape index: {}]
  %s1 = inlined_call_operand.vmem [shape: s32[2], index: 1, kind: input, shape index: {}]
  %s2 = inlined_call_operand.vmem [shape: f32[2,1,256], index: 2, kind: input, shape index: {}]
  %s3 = inlined_call_operand.vmem [shape: f32[2,1,256], index: 3, kind: input, shape index: {}]
  %s4 = inlined_call_operand.hbm [shape: f32[2,8,256], index: 4, kind: input, shape index: {}]
  %s5 = inlined_call_operand.hbm [shape: f32[2,8,256], index: 5, kind: output, shape index: {}]
  %s6 = sld [smem:[#allocation0]]
  $region57: #{tpu_custom_call.1} parent=0
    _
  %s8 = ssub.s32 1, %s6
  %s9 = scalar_select 0, %s8, %s6
  %11 = dma.hbm_to_smem %s0, 16, [#allocation3], [#allocation2]
  %s12 = sshll.u32 %s1, 4
  %s13 = int_to_ptr.vmem [resolvable:$true] %s12
  %15 = dma.vmem_to_smem %s13, 16, [#allocation4], [#allocation2]
  %16 = dma.done [#allocation2], 32
  %17 = sfence
  $region1: #{tpu_custom_call.1} parent=0
    #allocation5 [shape = 'u8[16384]{0}', space=vmem, size = 0x4000, scoped, tag = 'input window, operand 4']
    #allocation6 [shape = 's32[2]{0}', space=sflag, size = 0x8, scoped, tag = 'scoped memory for tpu_custom_call.1']
    #allocation7 [shape = 's32[2]{0}', space=sflag, size = 0x8, scoped, tag = 'scoped memory for tpu_custom_call.1']
    #allocation8 [shape = 'u8[16384]{0}', space=vmem, size = 0x4000, scoped, tag = 'output window, operand 0']
    %18 = vsyncpa [#allocation6], 0
    %s19 = scalar_lea.sflag [#allocation6], 1
    %20 = vsyncpa %s19, 0
    %21 = vsyncpa [#allocation7], 0
    %s22 = scalar_lea.sflag [#allocation7], 1
    %23 = vsyncpa %s22, 0
    loop: start=0, step=1, limit=4
    $region2: #{tpu_custom_call.1} parent=1 // loop_pre_header
      _
    $region3: #{tpu_custom_call.1} parent=1 // loop_header
      %s25 = sphi 0, %s29
      %p26 = scmp.ge.s32.totalorder %s25, 4
      %s32 = sphi 0, %s51
      %s33 = sphi 0, %s47
      %s34 = sphi 0, %s43
      %s35 = sphi 0, %s32
      %s36 = sphi 0, %s33
      %s37 = sphi 0, %s34
      %s38 = sphi 0, %s35
      %s39 = sphi 0, %s36
      %s40 = sphi 0, %s37
      %s62 = sphi 0, %s64
      %s65 = sphi 0, %s62
      %s66 = sphi 0, %s65
      %s82 = sphi 0, %s66
      %s96 = sphi 0, %s98
      %s99 = sphi 0, %s96
      %s100 = sphi 0, %s99
      %s116 = sphi 0, %s100
      %s130 = sphi 0, %s132
      %s133 = sphi 0, %s130
      %s134 = sphi 0, %s133
      %s150 = sphi 0, %s134
      %s158 = sphi 0, %s160
      %s161 = sphi 0, %s158
      %s162 = sphi 0, %s161
      %s178 = sphi 0, %s162
    $region4: #{tpu_custom_call.1} parent=1 // loop_header_branch
      %28 = sbr.rel (%p26) target = $region8
    $region5: #{tpu_custom_call.1} parent=1 // loop_body
      %s30 = ssub.s32 %s25, 1
      %s31 = ssub.s32 %s25, 2
      %s41 = sadd.s32 1, %s34
      %p42 = scmp.ge.s32.totalorder %s41, 1
      %s43 = scalar_select %p42, 0, %s41
      %s44 = sadd.s32 1, %s33
      %s45 = scalar_select %p42, %s44, %s33
      %p46 = scmp.ge.s32.totalorder %s45, 1
      %s47 = scalar_select %p46, 0, %s45
      %s48 = sadd.s32 1, %s32
      %s49 = scalar_select %p46, %s48, %s32
      %p50 = scmp.ge.s32.totalorder %s49, 2
      %s51 = scalar_select %p50, 0, %s49
      %s52 = sadd.s32 %s32, %s33
      %s53 = sadd.s32 %s52, %s34
      %s54 = sld [smem:[#allocation3 + %s53]]
      %s55 = sadd.s32 %s51, %s47
      %s56 = sadd.s32 %s55, %s43
      %s57 = sld [smem:[#allocation3 + %s56]]
      %s58 = ssub.s32 %s32, %s51
      %s59 = ssub.s32 %s54, %s57
      %s60 = sor.u32 %s58, %s59
      %p61 = scmp.eq.s32.totalorder %s60, 0
      %s63 = sadd.s32 %s62, 1
      %s64 = scalar_select %p61, %s62, %s63
      %p67 = pneg %p61
      %p68 = scmp.eq.s32.totalorder %s25, 1
      %p69 = por %p67, %p68
      %p70 = scmp.ne.s32.totalorder %s62, %s65
      %p71 = scmp.eq.s32.totalorder %s25, 0
      %p72 = por %p70, %p71
      %p73 = scmp.ne.s32.totalorder %s62, %s65
      %p74 = scmp.eq.s32.totalorder %s30, 1
      %p75 = por %p73, %p74
      %p76 = scmp.ne.s32.totalorder %s65, %s66
      %p77 = scmp.eq.s32.totalorder %s30, 0
      %p78 = por %p76, %p77
      %p79 = scmp.ne.s32.totalorder %s65, %s66
      %p80 = scmp.eq.s32.totalorder %s31, 1
      %p81 = por %p79, %p80
      %p83 = scmp.ne.s32.totalorder %s66, %s82
      %p84 = scmp.eq.s32.totalorder %s31, 0
      %p85 = por %p83, %p84
      %s86 = sadd.s32 %s32, %s33
      %s87 = sadd.s32 %s86, %s34
      %s88 = sld [smem:[#allocation3 + %s87]]
      %s89 = sadd.s32 %s51, %s47
      %s90 = sadd.s32 %s89, %s43
      %s91 = sld [smem:[#allocation3 + %s90]]
      %s92 = ssub.s32 %s32, %s51
      %s93 = ssub.s32 %s88, %s91
      %s94 = sor.u32 %s92, %s93
      %p95 = scmp.eq.s32.totalorder %s94, 0
      %s97 = sadd.s32 %s96, 1
      %s98 = scalar_select %p95, %s96, %s97
      %p101 = pneg %p95
      %p102 = scmp.eq.s32.totalorder %s25, 1
      %p103 = por %p101, %p102
      %p104 = scmp.ne.s32.totalorder %s96, %s99
      %p105 = scmp.eq.s32.totalorder %s25, 0
      %p106 = por %p104, %p105
      %p107 = scmp.ne.s32.totalorder %s96, %s99
      %p108 = scmp.eq.s32.totalorder %s30, 1
      %p109 = por %p107, %p108
      %p110 = scmp.ne.s32.totalorder %s99, %s100
      %p111 = scmp.eq.s32.totalorder %s30, 0
      %p112 = por %p110, %p111
      %p113 = scmp.ne.s32.totalorder %s99, %s100
      %p114 = scmp.eq.s32.totalorder %s31, 1
      %p115 = por %p113, %p114
      %p117 = scmp.ne.s32.totalorder %s100, %s116
      %p118 = scmp.eq.s32.totalorder %s31, 0
      %p119 = por %p117, %p118
      %s120 = sadd.s32 %s32, %s33
      %s121 = sadd.s32 %s120, %s34
      %s122 = sld [smem:[#allocation3 + %s121]]
      %s123 = sadd.s32 %s51, %s47
      %s124 = sadd.s32 %s123, %s43
      %s125 = sld [smem:[#allocation3 + %s124]]
      %s126 = ssub.s32 %s32, %s51
      %s127 = ssub.s32 %s122, %s125
      %s128 = sor.u32 %s126, %s127
      %p129 = scmp.eq.s32.totalorder %s128, 0
      %s131 = sadd.s32 %s130, 1
      %s132 = scalar_select %p129, %s130, %s131
      %p135 = pneg %p129
      %p136 = scmp.eq.s32.totalorder %s25, 1
      %p137 = por %p135, %p136
      %p138 = scmp.ne.s32.totalorder %s130, %s133
      %p139 = scmp.eq.s32.totalorder %s25, 0
      %p140 = por %p138, %p139
      %p141 = scmp.ne.s32.totalorder %s130, %s133
      %p142 = scmp.eq.s32.totalorder %s30, 1
      %p143 = por %p141, %p142
      %p144 = scmp.ne.s32.totalorder %s133, %s134
      %p145 = scmp.eq.s32.totalorder %s30, 0
      %p146 = por %p144, %p145
      %p147 = scmp.ne.s32.totalorder %s133, %s134
      %p148 = scmp.eq.s32.totalorder %s31, 1
      %p149 = por %p147, %p148
      %p151 = scmp.ne.s32.totalorder %s134, %s150
      %p152 = scmp.eq.s32.totalorder %s31, 0
      %p153 = por %p151, %p152
      %s154 = ssub.s32 %s32, %s51
      %s155 = ssub.s32 %s33, %s47
      %s156 = sor.u32 %s154, %s155
      %p157 = scmp.eq.s32.totalorder %s156, 0
      %s159 = sadd.s32 %s158, 1
      %s160 = scalar_select %p157, %s158, %s159
      %p163 = pneg %p157
      %p164 = scmp.eq.s32.totalorder %s25, 1
      %p165 = por %p163, %p164
      %p166 = scmp.ne.s32.totalorder %s158, %s161
      %p167 = scmp.eq.s32.totalorder %s25, 0
      %p168 = por %p166, %p167
      %p169 = scmp.ne.s32.totalorder %s158, %s161
      %p170 = scmp.eq.s32.totalorder %s30, 1
      %p171 = por %p169, %p170
      %p172 = scmp.ne.s32.totalorder %s161, %s162
      %p173 = scmp.eq.s32.totalorder %s30, 0
      %p174 = por %p172, %p173
      %p175 = scmp.ne.s32.totalorder %s161, %s162
      %p176 = scmp.eq.s32.totalorder %s31, 1
      %p177 = por %p175, %p176
      %p179 = scmp.ne.s32.totalorder %s162, %s178
      %p180 = scmp.eq.s32.totalorder %s31, 0
      %p181 = por %p179, %p180
      %p182 = scmp.le.s32.totalorder 1, %s25
      %p183 = scmp.lt.s32.totalorder %s25, 3
      %p184 = pnand %p182, %p183
      %p185 = pneg %p184
      // Predicated region
      $region9: #{tpu_custom_call.1} parent=5 // pred_check
        _
      $region10: #{tpu_custom_call.1} parent=5 // pred_check_branch
        %187 = sbr.rel (%p184) target = $region12
      $region11: #{tpu_custom_call.1} parent=5 // pred_region
        %s188 = ssub.s32 %s25, 1
      $region12: #{tpu_custom_call.1} parent=5 // pred_fallthru
        _
      %p189 = scmp.lt.s32.totalorder %s25, 2
      // Predicated region
      $region13: #{tpu_custom_call.1} parent=5 // pred_check
        %p190 = pneg %p189
      $region14: #{tpu_custom_call.1} parent=5 // pred_check_branch
        %192 = sbr.rel (%p190) target = $region16
      $region15: #{tpu_custom_call.1} parent=5 // pred_region
        // Predicated region
        $region17: #{tpu_custom_call.1} parent=15 // pred_check
          %p193 = pneg %p72
        $region18: #{tpu_custom_call.1} parent=15 // pred_check_branch
          %195 = sbr.rel (%p193) target = $region20
        $region19: #{tpu_custom_call.1} parent=15 // pred_region
          %s196 = sadd.s32 %s32, %s33
          %s197 = sadd.s32 %s196, %s34
          %s198 = sld [smem:[#allocation3 + %s197]]
          %s199 = smul.u32 2, %s198
          %p200 = scmp.lt.s32.totalorder %s32, 1
          %s201 = scalar_select %p200, %s32, 1
          %p202 = scmp.lt.s32.totalorder %s199, 1
          %s203 = scalar_select %p202, %s199, 1
          %s204 = smul.addr %s201, 2
          %s205 = sadd.s32 %s203, %s204
          %s206 = scalar_lea.vmem %s2, %s205
          %s207 = sadd.s32 %s32, %s33
          %s208 = sadd.s32 %s207, %s34
          %s209 = sld [smem:[#allocation3 + %s208]]
          %s210 = smul.u32 2, %s209
        $region20: #{tpu_custom_call.1} parent=15 // pred_fallthru
          _
        // Predicated region
        $region21: #{tpu_custom_call.1} parent=15 // pred_check
          %p211 = pneg %p106
        $region22: #{tpu_custom_call.1} parent=15 // pred_check_branch
          %213 = sbr.rel (%p211) target = $region24
        $region23: #{tpu_custom_call.1} parent=15 // pred_region
          %s214 = sadd.s32 %s32, %s33
          %s215 = sadd.s32 %s214, %s34
          %s216 = sld [smem:[#allocation3 + %s215]]
          %s217 = smul.u32 2, %s216
          %p218 = scmp.lt.s32.totalorder %s32, 1
          %s219 = scalar_select %p218, %s32, 1
          %p220 = scmp.lt.s32.totalorder %s217, 1
          %s221 = scalar_select %p220, %s217, 1
          %s222 = smul.addr %s219, 2
          %s223 = sadd.s32 %s221, %s222
          %s224 = scalar_lea.vmem %s3, %s223
          %s225 = sadd.s32 %s32, %s33
          %s226 = sadd.s32 %s225, %s34
          %s227 = sld [smem:[#allocation3 + %s226]]
          %s228 = smul.u32 2, %s227
        $region24: #{tpu_custom_call.1} parent=15 // pred_fallthru
          _
        // Predicated region
        $region25: #{tpu_custom_call.1} parent=15 // pred_check
          %p229 = pneg %p140
        $region26: #{tpu_custom_call.1} parent=15 // pred_check_branch
          %231 = sbr.rel (%p229) target = $region28
        $region27: #{tpu_custom_call.1} parent=15 // pred_region
          %s232 = sand.u32 %s130, 1
          %s233 = scalar_lea.sflag [#allocation6], %s232
          %s234 = sand.u32 %s130, 1
          %s235 = smul.addr %s234, 16
          %s236 = scalar_lea.vmem [#allocation5], %s235
          %s237 = sadd.s32 %s32, %s33
          %s238 = sadd.s32 %s237, %s34
          %s239 = sld [smem:[#allocation3 + %s238]]
          %s240 = smul.u32 2, %s239
          %s242 = ssub.s32 256, 256
          %243 = vsyncadd %s233, %s242
          %s244 = smul.addr %s32, 2
          %s245 = sadd.s32 %s240, %s244
          %s246 = smul.addr %s245, 128
          %s247 = scalar_lea.hbm %s4, %s246
          %s249 = sshll.u32 %s236, 4
          %s250 = int_to_ptr.vmem [resolvable:$true] %s249
          %252 = dma.hbm_to_vmem [thread:$0]  %s247, 256, %s250, %s233
        $region28: #{tpu_custom_call.1} parent=15 // pred_fallthru
          _
      $region16: #{tpu_custom_call.1} parent=5 // pred_fallthru
        _
      %p253 = scmp.le.s32.totalorder 1, %s25
      %p254 = scmp.lt.s32.totalorder %s25, 3
      %p255 = pnand %p253, %p254
      %p256 = pneg %p255
      // Predicated region
      $region29: #{tpu_custom_call.1} parent=5 // pred_check
        _
      $region30: #{tpu_custom_call.1} parent=5 // pred_check_branch
        %258 = sbr.rel (%p255) target = $region32
      $region31: #{tpu_custom_call.1} parent=5 // pred_region
        %s259 = ssub.s32 %s25, 1
        %s260 = sand.u32 %s133, 1
        %s261 = scalar_lea.sflag [#allocation6], %s260
        %s262 = sand.u32 %s133, 1
        %s263 = smul.addr %s262, 16
        %s264 = scalar_lea.vmem [#allocation5], %s263
        // Predicated region
        $region33: #{tpu_custom_call.1} parent=31 // pred_check
          %p265 = pneg %p146
        $region34: #{tpu_custom_call.1} parent=31 // pred_check_branch
          %267 = sbr.rel (%p265) target = $region36
        $region35: #{tpu_custom_call.1} parent=31 // pred_region
          %268 = dma.done %s261, 256
        $region36: #{tpu_custom_call.1} parent=31 // pred_fallthru
          _
        %s269 = sadd.s32 %s35, %s36
        %s270 = sadd.s32 %s269, %s37
        %s271 = sld [smem:[#allocation3 + %s270]]
        %s272 = smul.u32 2, %s271
        %p273 = scmp.lt.s32.totalorder %s35, 1
        %s274 = scalar_select %p273, %s35, 1
        %p275 = scmp.lt.s32.totalorder %s272, 1
        %s276 = scalar_select %p275, %s272, 1
        %s277 = smul.addr %s274, 2
        %s278 = sadd.s32 %s276, %s277
        %s279 = scalar_lea.vmem %s2, %s278
        %p280 = pneg %p78
        %p281 = pneg %p75
        %s282 = sadd.s32 %s35, %s36
        %s283 = sadd.s32 %s282, %s37
        %s284 = sld [smem:[#allocation3 + %s283]]
        %s285 = smul.u32 2, %s284
        %p286 = scmp.lt.s32.totalorder %s35, 1
        %s287 = scalar_select %p286, %s35, 1
        %p288 = scmp.lt.s32.totalorder %s285, 1
        %s289 = scalar_select %p288, %s285, 1
        %s290 = smul.addr %s287, 2
        %s291 = sadd.s32 %s289, %s290
        %s292 = scalar_lea.vmem %s3, %s291
        %p293 = pneg %p112
        %p294 = pneg %p109
        %s295 = sand.u32 %s133, 1
        %s296 = scalar_lea.sflag [#allocation6], %s295
        %s297 = sand.u32 %s133, 1
        %s298 = smul.addr %s297, 16
        %s299 = scalar_lea.vmem [#allocation5], %s298
        %p300 = pneg %p146
        %p301 = pneg %p143
        %p302 = pneg %p174
        %p303 = pneg %p171
        %s304 = sand.u32 %s161, 1
        %s305 = scalar_lea.sflag [#allocation7], %s304
        %s306 = sand.u32 %s161, 1
        %s307 = smul.addr %s306, 16
        %s308 = scalar_lea.vmem [#allocation8], %s307
        %s309 = sadd.s32 %s35, %s36
        %s310 = sadd.s32 %s309, %s37
        %s311 = sld [smem:[#allocation3 + %s310]]
        %s312 = smul.u32 2, %s311
        %p313 = scmp.lt.s32.totalorder %s35, 1
        %s314 = scalar_select %p313, %s35, 1
        %p315 = scmp.lt.s32.totalorder %s312, 1
        %s316 = scalar_select %p315, %s312, 1
        %s317 = smul.addr %s314, 2
        %s318 = sadd.s32 %s316, %s317
        %s319 = scalar_lea.vmem %s2, %s318
        %s320 = sadd.s32 %s35, %s36
        %s321 = sadd.s32 %s320, %s37
        %s322 = sld [smem:[#allocation3 + %s321]]
        %s323 = smul.u32 2, %s322
        %s324 = sadd.s32 %s35, %s36
        %s325 = sadd.s32 %s324, %s37
        %s326 = sld [smem:[#allocation3 + %s325]]
        %s327 = smul.u32 2, %s326
        %p328 = scmp.lt.s32.totalorder %s35, 1
        %s329 = scalar_select %p328, %s35, 1
        %p330 = scmp.lt.s32.totalorder %s327, 1
        %s331 = scalar_select %p330, %s327, 1
        %s332 = smul.addr %s329, 2
        %s333 = sadd.s32 %s331, %s332
        %s334 = scalar_lea.vmem %s3, %s333
        %s335 = sadd.s32 %s35, %s36
        %s336 = sadd.s32 %s335, %s37
        %s337 = sld [smem:[#allocation3 + %s336]]
        %s338 = smul.u32 2, %s337
        %s339 = sadd.s32 %s35, %s36
        %s340 = sadd.s32 %s339, %s37
        %s341 = sld [smem:[#allocation3 + %s340]]
        %s342 = smul.u32 2, %s341
        %s343 = smul.u32 2, %s36
        %p344 = scmp.eq.s32.totalorder %s37, 0
        // Predicated region
        $region37: #{tpu_custom_call.1} parent=31 // pred_check
          %p345 = pneg %p344
        $region38: #{tpu_custom_call.1} parent=31 // pred_check_branch
          %347 = sbr.rel (%p345) target = $region40
        $region39: #{tpu_custom_call.1} parent=31 // pred_region
          %348 = vst [vmem:[%s308] sm:$0xff] 0.0
          %349 = vst [vmem:[%s308 + $0x8] sm:$0xff] 0.0
        $region40: #{tpu_custom_call.1} parent=31 // pred_fallthru
          _
        %s350 = sadd.s32 %s35, %s36
        %s351 = sld [smem:[#allocation4 + %s350]]
        %p352 = scmp.lt.s32.totalorder %s37, %s351
        // Predicated region
        $region41: #{tpu_custom_call.1} parent=31 // pred_check
          %p353 = pneg %p352
        $region42: #{tpu_custom_call.1} parent=31 // pred_check_branch
          %355 = sbr.rel (%p353) target = $region44
        $region43: #{tpu_custom_call.1} parent=31 // pred_region
          %v356 = vld [vmem:[%s319] sm:$0x3]
          %v357 = vld [vmem:[%s334] sm:$0x3]
          %v358 = vld [vmem:[%s264] sm:$0xff]
          %v359 = vld [vmem:[%s264 + $0x8] sm:$0xff]
          %v360 = vfloor.f32 %v356
          %v361 = vfloor.f32 %v357
          %v362 = vsub.f32 %v356, %v360
          %v363 = vsub.f32 %v357, %v361
          %v364 = vcvt.f32.s32.to.zero.pseudo %v360
          %v365 = vcvt.f32.s32.to.zero.pseudo %v361
          %s366 = smul.u32 %s36, 256
          %v367 = vadd.s32 %v364, 4294967295
          %vm368 = vcmp.ge.s32.totalorder %v367, 0
          %vm369 = vcmp.lt.s32.totalorder %v367, 16
          %vm370 = vmand %vm368, %vm369
          %v371 = vsub.f32 %v362, -1.0
          %v372 = vmul.f32 %v371, %v371
          %v373 = vsub.f32 0.0, %v372
          %v374 = vmul.f32 %v373, 1.442695
          %v375 = vpow.pop %v374
          %vm376 = vcmp.ge.s32.totalorder %v364, 0
          %vm377 = vcmp.lt.s32.totalorder %v364, 16
          %vm378 = vmand %vm376, %vm377
          %v379 = vmul.f32 %v362, %v362
          %v380 = vsub.f32 0.0, %v379
          %v381 = vmul.f32 %v380, 1.442695
          %v382 = vpow.pop %v381
          %v383 = vadd.s32 %v364, 1
          %vm384 = vcmp.ge.s32.totalorder %v383, 0
          %vm385 = vcmp.lt.s32.totalorder %v383, 16
          %vm386 = vmand %vm384, %vm385
          %v387 = vsub.f32 %v362, 1.0
          %v388 = vmul.f32 %v387, %v387
          %v389 = vsub.f32 0.0, %v388
          %v390 = vmul.f32 %v389, 1.442695
          %v391 = vpow.pop %v390
          %v392 = vadd.s32 %v364, 2
          %vm393 = vcmp.ge.s32.totalorder %v392, 0
          %vm394 = vcmp.lt.s32.totalorder %v392, 16
          %vm395 = vmand %vm393, %vm394
          %v396 = vsub.f32 %v362, 2.0
          %v397 = vmul.f32 %v396, %v396
          %v398 = vsub.f32 0.0, %v397
          %v399 = vmul.f32 %v398, 1.442695
          %v400 = vpow.pop %v399
          %v401 = vadd.s32 %v365, 4294967295
          %vm402 = vcmp.ge.s32.totalorder %v401, 0
          %vm403 = vcmp.lt.s32.totalorder %v401, 16
          %vm404 = vmand %vm402, %vm403
          %v405 = vsub.f32 %v363, -1.0
          %v406 = vmul.f32 %v405, %v405
          %v407 = vsub.f32 0.0, %v406
          %v408 = vmul.f32 %v407, 1.442695
          %v409 = vpow.pop %v408
          %v410 = vmul.u32 %v401, 16
          %v411 = vstv %s366
          %v412 = vsub.s32 %v410, %v411
          %vm413 = vcmp.ge.s32.totalorder %v365, 0
          %vm414 = vcmp.lt.s32.totalorder %v365, 16
          %vm415 = vmand %vm413, %vm414
          %v416 = vmul.f32 %v363, %v363
          %v417 = vsub.f32 0.0, %v416
          %v418 = vmul.f32 %v417, 1.442695
          %v419 = vpow.pop %v418
          %v420 = vmul.u32 %v365, 16
          %v421 = vsub.s32 %v420, %v411
          %v422 = vadd.s32 %v365, 1
          %vm423 = vcmp.ge.s32.totalorder %v422, 0
          %vm424 = vcmp.lt.s32.totalorder %v422, 16
          %vm425 = vmand %vm423, %vm424
          %v426 = vsub.f32 %v363, 1.0
          %v427 = vmul.f32 %v426, %v426
          %v428 = vsub.f32 0.0, %v427
          %v429 = vmul.f32 %v428, 1.442695
          %v430 = vpow.pop %v429
          %v431 = vmul.u32 %v422, 16
          %v432 = vsub.s32 %v431, %v411
          %v433 = vadd.s32 %v365, 2
          %vm434 = vcmp.ge.s32.totalorder %v433, 0
          %vm435 = vcmp.lt.s32.totalorder %v433, 16
          %vm436 = vmand %vm434, %vm435
          %v437 = vsub.f32 %v363, 2.0
          %v438 = vmul.f32 %v437, %v437
          %v439 = vsub.f32 0.0, %v438
          %v440 = vmul.f32 %v439, 1.442695
          %v441 = vpow.pop %v440
          %v442 = vmul.u32 %v433, 16
          %v443 = vsub.s32 %v442, %v411
          %v444 = vlaneseq
          %v445 = vshrl.u32 %v444, 7
          %v446 = vadd.s32 %v445, 8
          %v447 = vadd.s32 %v445, 16
          %v448 = vadd.s32 %v445, 24
          %v449 = vadd.s32 %v445, 32
          %v450 = vadd.s32 %v445, 40
          %v451 = vadd.s32 %v445, 48
          %v452 = vadd.s32 %v445, 56
          %v453 = vadd.s32 %v445, 64
          %v454 = vadd.s32 %v445, 72
          %v455 = vadd.s32 %v445, 80
          %v456 = vadd.s32 %v445, 88
          %v457 = vadd.s32 %v445, 96
          %v458 = vadd.s32 %v445, 104
          %v459 = vadd.s32 %v445, 112
          %v460 = vadd.s32 %v445, 120
          %v461 = vadd.s32 %v445, 128
          %v462 = vadd.s32 %v445, 136
          %v463 = vadd.s32 %v445, 144
          %v464 = vadd.s32 %v445, 152
          %v465 = vadd.s32 %v445, 160
          %v466 = vadd.s32 %v445, 168
          %v467 = vadd.s32 %v445, 176
          %v468 = vadd.s32 %v445, 184
          %v469 = vadd.s32 %v445, 192
          %v470 = vadd.s32 %v445, 200
          %v471 = vadd.s32 %v445, 208
          %v472 = vadd.s32 %v445, 216
          %v473 = vadd.s32 %v445, 224
          %v474 = vadd.s32 %v445, 232
          %v475 = vadd.s32 %v445, 240
          %v476 = vadd.s32 %v445, 248
          %vm477 = vmand %vm370, %vm404
          %v478 = vadd.s32 %v412, %v367
          %v479 = vsel %vm477, %v478, 4294967295
          %v480 = vmul.f32 %v375, %v409
          %v481 = vlaneseq
          %v482 = vshrl.u32 %v481, 7
          %v483 = vsub.s32 0, %v482
          %v484 = vrot.slane %v479, %v483
          %v485 = vlaneseq
          %v486 = vshrl.u32 %v485, 7
          %v487 = vsub.s32 1, %v486
          %v488 = vrot.slane %v479, %v487
          %vm489 = vcmp.eq.s32.totalorder %v484, %v445
          %vm490 = vcmp.eq.s32.totalorder %v488, %v445
          %vm491 = vcmp.eq.s32.totalorder %v484, %v446
          %vm492 = vcmp.eq.s32.totalorder %v488, %v446
          %vm493 = vcmp.eq.s32.totalorder %v484, %v447
          %vm494 = vcmp.eq.s32.totalorder %v488, %v447
          %vm495 = vcmp.eq.s32.totalorder %v484, %v448
          %vm496 = vcmp.eq.s32.totalorder %v488, %v448
          %vm497 = vcmp.eq.s32.totalorder %v484, %v449
          %vm498 = vcmp.eq.s32.totalorder %v488, %v449
          %vm499 = vcmp.eq.s32.totalorder %v484, %v450
          %vm500 = vcmp.eq.s32.totalorder %v488, %v450
          %vm501 = vcmp.eq.s32.totalorder %v484, %v451
          %vm502 = vcmp.eq.s32.totalorder %v488, %v451
          %vm503 = vcmp.eq.s32.totalorder %v484, %v452
          %vm504 = vcmp.eq.s32.totalorder %v488, %v452
          %vm505 = vcmp.eq.s32.totalorder %v484, %v453
          %vm506 = vcmp.eq.s32.totalorder %v488, %v453
          %vm507 = vcmp.eq.s32.totalorder %v484, %v454
          %vm508 = vcmp.eq.s32.totalorder %v488, %v454
          %vm509 = vcmp.eq.s32.totalorder %v484, %v455
          %vm510 = vcmp.eq.s32.totalorder %v488, %v455
          %vm511 = vcmp.eq.s32.totalorder %v484, %v456
          %vm512 = vcmp.eq.s32.totalorder %v488, %v456
          %vm513 = vcmp.eq.s32.totalorder %v484, %v457
          %vm514 = vcmp.eq.s32.totalorder %v488, %v457
          %vm515 = vcmp.eq.s32.totalorder %v484, %v458
          %vm516 = vcmp.eq.s32.totalorder %v488, %v458
          %vm517 = vcmp.eq.s32.totalorder %v484, %v459
          %vm518 = vcmp.eq.s32.totalorder %v488, %v459
          %vm519 = vcmp.eq.s32.totalorder %v484, %v460
          %vm520 = vcmp.eq.s32.totalorder %v488, %v460
          %vm521 = vcmp.eq.s32.totalorder %v484, %v461
          %vm522 = vcmp.eq.s32.totalorder %v488, %v461
          %vm523 = vcmp.eq.s32.totalorder %v484, %v462
          %vm524 = vcmp.eq.s32.totalorder %v488, %v462
          %vm525 = vcmp.eq.s32.totalorder %v484, %v463
          %vm526 = vcmp.eq.s32.totalorder %v488, %v463
          %vm527 = vcmp.eq.s32.totalorder %v484, %v464
          %vm528 = vcmp.eq.s32.totalorder %v488, %v464
          %vm529 = vcmp.eq.s32.totalorder %v484, %v465
          %vm530 = vcmp.eq.s32.totalorder %v488, %v465
          %vm531 = vcmp.eq.s32.totalorder %v484, %v466
          %vm532 = vcmp.eq.s32.totalorder %v488, %v466
          %vm533 = vcmp.eq.s32.totalorder %v484, %v467
          %vm534 = vcmp.eq.s32.totalorder %v488, %v467
          %vm535 = vcmp.eq.s32.totalorder %v484, %v468
          %vm536 = vcmp.eq.s32.totalorder %v488, %v468
          %vm537 = vcmp.eq.s32.totalorder %v484, %v469
          %vm538 = vcmp.eq.s32.totalorder %v488, %v469
          %vm539 = vcmp.eq.s32.totalorder %v484, %v470
          %vm540 = vcmp.eq.s32.totalorder %v488, %v470
          %vm541 = vcmp.eq.s32.totalorder %v484, %v471
          %vm542 = vcmp.eq.s32.totalorder %v488, %v471
          %vm543 = vcmp.eq.s32.totalorder %v484, %v472
          %vm544 = vcmp.eq.s32.totalorder %v488, %v472
          %vm545 = vcmp.eq.s32.totalorder %v484, %v473
          %vm546 = vcmp.eq.s32.totalorder %v488, %v473
          %vm547 = vcmp.eq.s32.totalorder %v484, %v474
          %vm548 = vcmp.eq.s32.totalorder %v488, %v474
          %vm549 = vcmp.eq.s32.totalorder %v484, %v475
          %vm550 = vcmp.eq.s32.totalorder %v488, %v475
          %vm551 = vcmp.eq.s32.totalorder %v484, %v476
          %vm552 = vcmp.eq.s32.totalorder %v488, %v476
          %v554 = vlaneseq
          %v555 = vshrl.u32 %v554, 7
          %v556 = vsub.s32 0, %v555
          %v557 = vrot.slane %v480, %v556
          %v558 = vlaneseq
          %v559 = vshrl.u32 %v558, 7
          %v560 = vsub.s32 1, %v559
          %v561 = vrot.slane %v480, %v560
          %v564 = vsel %vm489, %v557, 0.0
          %v565 = vsel %vm490, %v561, 0.0
          %v566 = vsel %vm491, %v557, 0.0
          %v567 = vsel %vm492, %v561, 0.0
          %v568 = vsel %vm493, %v557, 0.0
          %v569 = vsel %vm494, %v561, 0.0
          %v570 = vsel %vm495, %v557, 0.0
          %v571 = vsel %vm496, %v561, 0.0
          %v572 = vsel %vm497, %v557, 0.0
          %v573 = vsel %vm498, %v561, 0.0
          %v574 = vsel %vm499, %v557, 0.0
          %v575 = vsel %vm500, %v561, 0.0
          %v576 = vsel %vm501, %v557, 0.0
          %v577 = vsel %vm502, %v561, 0.0
          %v578 = vsel %vm503, %v557, 0.0
          %v579 = vsel %vm504, %v561, 0.0
          %v580 = vsel %vm505, %v557, 0.0
          %v581 = vsel %vm506, %v561, 0.0
          %v582 = vsel %vm507, %v557, 0.0
          %v583 = vsel %vm508, %v561, 0.0
          %v584 = vsel %vm509, %v557, 0.0
          %v585 = vsel %vm510, %v561, 0.0
          %v586 = vsel %vm511, %v557, 0.0
          %v587 = vsel %vm512, %v561, 0.0
          %v588 = vsel %vm513, %v557, 0.0
          %v589 = vsel %vm514, %v561, 0.0
          %v590 = vsel %vm515, %v557, 0.0
          %v591 = vsel %vm516, %v561, 0.0
          %v592 = vsel %vm517, %v557, 0.0
          %v593 = vsel %vm518, %v561, 0.0
          %v594 = vsel %vm519, %v557, 0.0
          %v595 = vsel %vm520, %v561, 0.0
          %v596 = vsel %vm521, %v557, 0.0
          %v597 = vsel %vm522, %v561, 0.0
          %v598 = vsel %vm523, %v557, 0.0
          %v599 = vsel %vm524, %v561, 0.0
          %v600 = vsel %vm525, %v557, 0.0
          %v601 = vsel %vm526, %v561, 0.0
          %v602 = vsel %vm527, %v557, 0.0
          %v603 = vsel %vm528, %v561, 0.0
          %v604 = vsel %vm529, %v557, 0.0
          %v605 = vsel %vm530, %v561, 0.0
          %v606 = vsel %vm531, %v557, 0.0
          %v607 = vsel %vm532, %v561, 0.0
          %v608 = vsel %vm533, %v557, 0.0
          %v609 = vsel %vm534, %v561, 0.0
          %v610 = vsel %vm535, %v557, 0.0
          %v611 = vsel %vm536, %v561, 0.0
          %v612 = vsel %vm537, %v557, 0.0
          %v613 = vsel %vm538, %v561, 0.0
          %v614 = vsel %vm539, %v557, 0.0
          %v615 = vsel %vm540, %v561, 0.0
          %v616 = vsel %vm541, %v557, 0.0
          %v617 = vsel %vm542, %v561, 0.0
          %v618 = vsel %vm543, %v557, 0.0
          %v619 = vsel %vm544, %v561, 0.0
          %v620 = vsel %vm545, %v557, 0.0
          %v621 = vsel %vm546, %v561, 0.0
          %v622 = vsel %vm547, %v557, 0.0
          %v623 = vsel %vm548, %v561, 0.0
          %v624 = vsel %vm549, %v557, 0.0
          %v625 = vsel %vm550, %v561, 0.0
          %v626 = vsel %vm551, %v557, 0.0
          %v627 = vsel %vm552, %v561, 0.0
          %vm628 = vmand %vm378, %vm404
          %v629 = vadd.s32 %v412, %v364
          %v630 = vsel %vm628, %v629, 4294967295
          %v631 = vmul.f32 %v382, %v409
          %v632 = vlaneseq
          %v633 = vshrl.u32 %v632, 7
          %v634 = vsub.s32 0, %v633
          %v635 = vrot.slane %v630, %v634
          %v636 = vlaneseq
          %v637 = vshrl.u32 %v636, 7
          %v638 = vsub.s32 1, %v637
          %v639 = vrot.slane %v630, %v638
          %vm640 = vcmp.eq.s32.totalorder %v635, %v445
          %vm641 = vcmp.eq.s32.totalorder %v639, %v445
          %vm642 = vcmp.eq.s32.totalorder %v635, %v446
          %vm643 = vcmp.eq.s32.totalorder %v639, %v446
          %vm644 = vcmp.eq.s32.totalorder %v635, %v447
          %vm645 = vcmp.eq.s32.totalorder %v639, %v447
          %vm646 = vcmp.eq.s32.totalorder %v635, %v448
          %vm647 = vcmp.eq.s32.totalorder %v639, %v448
          %vm648 = vcmp.eq.s32.totalorder %v635, %v449
          %vm649 = vcmp.eq.s32.totalorder %v639, %v449
          %vm650 = vcmp.eq.s32.totalorder %v635, %v450
          %vm651 = vcmp.eq.s32.totalorder %v639, %v450
          %vm652 = vcmp.eq.s32.totalorder %v635, %v451
          %vm653 = vcmp.eq.s32.totalorder %v639, %v451
          %vm654 = vcmp.eq.s32.totalorder %v635, %v452
          %vm655 = vcmp.eq.s32.totalorder %v639, %v452
          %vm656 = vcmp.eq.s32.totalorder %v635, %v453
          %vm657 = vcmp.eq.s32.totalorder %v639, %v453
          %vm658 = vcmp.eq.s32.totalorder %v635, %v454
          %vm659 = vcmp.eq.s32.totalorder %v639, %v454
          %vm660 = vcmp.eq.s32.totalorder %v635, %v455
          %vm661 = vcmp.eq.s32.totalorder %v639, %v455
          %vm662 = vcmp.eq.s32.totalorder %v635, %v456
          %vm663 = vcmp.eq.s32.totalorder %v639, %v456
          %vm664 = vcmp.eq.s32.totalorder %v635, %v457
          %vm665 = vcmp.eq.s32.totalorder %v639, %v457
          %vm666 = vcmp.eq.s32.totalorder %v635, %v458
          %vm667 = vcmp.eq.s32.totalorder %v639, %v458
          %vm668 = vcmp.eq.s32.totalorder %v635, %v459
          %vm669 = vcmp.eq.s32.totalorder %v639, %v459
          %vm670 = vcmp.eq.s32.totalorder %v635, %v460
          %vm671 = vcmp.eq.s32.totalorder %v639, %v460
          %vm672 = vcmp.eq.s32.totalorder %v635, %v461
          %vm673 = vcmp.eq.s32.totalorder %v639, %v461
          %vm674 = vcmp.eq.s32.totalorder %v635, %v462
          %vm675 = vcmp.eq.s32.totalorder %v639, %v462
          %vm676 = vcmp.eq.s32.totalorder %v635, %v463
          %vm677 = vcmp.eq.s32.totalorder %v639, %v463
          %vm678 = vcmp.eq.s32.totalorder %v635, %v464
          %vm679 = vcmp.eq.s32.totalorder %v639, %v464
          %vm680 = vcmp.eq.s32.totalorder %v635, %v465
          %vm681 = vcmp.eq.s32.totalorder %v639, %v465
          %vm682 = vcmp.eq.s32.totalorder %v635, %v466
          %vm683 = vcmp.eq.s32.totalorder %v639, %v466
          %vm684 = vcmp.eq.s32.totalorder %v635, %v467
          %vm685 = vcmp.eq.s32.totalorder %v639, %v467
          %vm686 = vcmp.eq.s32.totalorder %v635, %v468
          %vm687 = vcmp.eq.s32.totalorder %v639, %v468
          %vm688 = vcmp.eq.s32.totalorder %v635, %v469
          %vm689 = vcmp.eq.s32.totalorder %v639, %v469
          %vm690 = vcmp.eq.s32.totalorder %v635, %v470
          %vm691 = vcmp.eq.s32.totalorder %v639, %v470
          %vm692 = vcmp.eq.s32.totalorder %v635, %v471
          %vm693 = vcmp.eq.s32.totalorder %v639, %v471
          %vm694 = vcmp.eq.s32.totalorder %v635, %v472
          %vm695 = vcmp.eq.s32.totalorder %v639, %v472
          %vm696 = vcmp.eq.s32.totalorder %v635, %v473
          %vm697 = vcmp.eq.s32.totalorder %v639, %v473
          %vm698 = vcmp.eq.s32.totalorder %v635, %v474
          %vm699 = vcmp.eq.s32.totalorder %v639, %v474
          %vm700 = vcmp.eq.s32.totalorder %v635, %v475
          %vm701 = vcmp.eq.s32.totalorder %v639, %v475
          %vm702 = vcmp.eq.s32.totalorder %v635, %v476
          %vm703 = vcmp.eq.s32.totalorder %v639, %v476
          %v705 = vlaneseq
          %v706 = vshrl.u32 %v705, 7
          %v707 = vsub.s32 0, %v706
          %v708 = vrot.slane %v631, %v707
          %v709 = vlaneseq
          %v710 = vshrl.u32 %v709, 7
          %v711 = vsub.s32 1, %v710
          %v712 = vrot.slane %v631, %v711
          %v715 = vsel %vm640, %v708, %v564
          %v716 = vsel %vm641, %v712, %v565
          %v717 = vsel %vm642, %v708, %v566
          %v718 = vsel %vm643, %v712, %v567
          %v719 = vsel %vm644, %v708, %v568
          %v720 = vsel %vm645, %v712, %v569
          %v721 = vsel %vm646, %v708, %v570
          %v722 = vsel %vm647, %v712, %v571
          %v723 = vsel %vm648, %v708, %v572
          %v724 = vsel %vm649, %v712, %v573
          %v725 = vsel %vm650, %v708, %v574
          %v726 = vsel %vm651, %v712, %v575
          %v727 = vsel %vm652, %v708, %v576
          %v728 = vsel %vm653, %v712, %v577
          %v729 = vsel %vm654, %v708, %v578
          %v730 = vsel %vm655, %v712, %v579
          %v731 = vsel %vm656, %v708, %v580
          %v732 = vsel %vm657, %v712, %v581
          %v733 = vsel %vm658, %v708, %v582
          %v734 = vsel %vm659, %v712, %v583
          %v735 = vsel %vm660, %v708, %v584
          %v736 = vsel %vm661, %v712, %v585
          %v737 = vsel %vm662, %v708, %v586
          %v738 = vsel %vm663, %v712, %v587
          %v739 = vsel %vm664, %v708, %v588
          %v740 = vsel %vm665, %v712, %v589
          %v741 = vsel %vm666, %v708, %v590
          %v742 = vsel %vm667, %v712, %v591
          %v743 = vsel %vm668, %v708, %v592
          %v744 = vsel %vm669, %v712, %v593
          %v745 = vsel %vm670, %v708, %v594
          %v746 = vsel %vm671, %v712, %v595
          %v747 = vsel %vm672, %v708, %v596
          %v748 = vsel %vm673, %v712, %v597
          %v749 = vsel %vm674, %v708, %v598
          %v750 = vsel %vm675, %v712, %v599
          %v751 = vsel %vm676, %v708, %v600
          %v752 = vsel %vm677, %v712, %v601
          %v753 = vsel %vm678, %v708, %v602
          %v754 = vsel %vm679, %v712, %v603
          %v755 = vsel %vm680, %v708, %v604
          %v756 = vsel %vm681, %v712, %v605
          %v757 = vsel %vm682, %v708, %v606
          %v758 = vsel %vm683, %v712, %v607
          %v759 = vsel %vm684, %v708, %v608
          %v760 = vsel %vm685, %v712, %v609
          %v761 = vsel %vm686, %v708, %v610
          %v762 = vsel %vm687, %v712, %v611
          %v763 = vsel %vm688, %v708, %v612
          %v764 = vsel %vm689, %v712, %v613
          %v765 = vsel %vm690, %v708, %v614
          %v766 = vsel %vm691, %v712, %v615
          %v767 = vsel %vm692, %v708, %v616
          %v768 = vsel %vm693, %v712, %v617
          %v769 = vsel %vm694, %v708, %v618
          %v770 = vsel %vm695, %v712, %v619
          %v771 = vsel %vm696, %v708, %v620
          %v772 = vsel %vm697, %v712, %v621
          %v773 = vsel %vm698, %v708, %v622
          %v774 = vsel %vm699, %v712, %v623
          %v775 = vsel %vm700, %v708, %v624
          %v776 = vsel %vm701, %v712, %v625
          %v777 = vsel %vm702, %v708, %v626
          %v778 = vsel %vm703, %v712, %v627
          %vm779 = vmand %vm386, %vm404
          %v780 = vadd.s32 %v412, %v383
          %v781 = vsel %vm779, %v780, 4294967295
          %v782 = vmul.f32 %v391, %v409
          %v783 = vlaneseq
          %v784 = vshrl.u32 %v783, 7
          %v785 = vsub.s32 0, %v784
          %v786 = vrot.slane %v781, %v785
          %v787 = vlaneseq
          %v788 = vshrl.u32 %v787, 7
          %v789 = vsub.s32 1, %v788
          %v790 = vrot.slane %v781, %v789
          %vm791 = vcmp.eq.s32.totalorder %v786, %v445
          %vm792 = vcmp.eq.s32.totalorder %v790, %v445
          %vm793 = vcmp.eq.s32.totalorder %v786, %v446
          %vm794 = vcmp.eq.s32.totalorder %v790, %v446
          %vm795 = vcmp.eq.s32.totalorder %v786, %v447
          %vm796 = vcmp.eq.s32.totalorder %v790, %v447
          %vm797 = vcmp.eq.s32.totalorder %v786, %v448
          %vm798 = vcmp.eq.s32.totalorder %v790, %v448
          %vm799 = vcmp.eq.s32.totalorder %v786, %v449
          %vm800 = vcmp.eq.s32.totalorder %v790, %v449
          %vm801 = vcmp.eq.s32.totalorder %v786, %v450
          %vm802 = vcmp.eq.s32.totalorder %v790, %v450
          %vm803 = vcmp.eq.s32.totalorder %v786, %v451
          %vm804 = vcmp.eq.s32.totalorder %v790, %v451
          %vm805 = vcmp.eq.s32.totalorder %v786, %v452
          %vm806 = vcmp.eq.s32.totalorder %v790, %v452
          %vm807 = vcmp.eq.s32.totalorder %v786, %v453
          %vm808 = vcmp.eq.s32.totalorder %v790, %v453
          %vm809 = vcmp.eq.s32.totalorder %v786, %v454
          %vm810 = vcmp.eq.s32.totalorder %v790, %v454
          %vm811 = vcmp.eq.s32.totalorder %v786, %v455
          %vm812 = vcmp.eq.s32.totalorder %v790, %v455
          %vm813 = vcmp.eq.s32.totalorder %v786, %v456
          %vm814 = vcmp.eq.s32.totalorder %v790, %v456
          %vm815 = vcmp.eq.s32.totalorder %v786, %v457
          %vm816 = vcmp.eq.s32.totalorder %v790, %v457
          %vm817 = vcmp.eq.s32.totalorder %v786, %v458
          %vm818 = vcmp.eq.s32.totalorder %v790, %v458
          %vm819 = vcmp.eq.s32.totalorder %v786, %v459
          %vm820 = vcmp.eq.s32.totalorder %v790, %v459
          %vm821 = vcmp.eq.s32.totalorder %v786, %v460
          %vm822 = vcmp.eq.s32.totalorder %v790, %v460
          %vm823 = vcmp.eq.s32.totalorder %v786, %v461
          %vm824 = vcmp.eq.s32.totalorder %v790, %v461
          %vm825 = vcmp.eq.s32.totalorder %v786, %v462
          %vm826 = vcmp.eq.s32.totalorder %v790, %v462
          %vm827 = vcmp.eq.s32.totalorder %v786, %v463
          %vm828 = vcmp.eq.s32.totalorder %v790, %v463
          %vm829 = vcmp.eq.s32.totalorder %v786, %v464
          %vm830 = vcmp.eq.s32.totalorder %v790, %v464
          %vm831 = vcmp.eq.s32.totalorder %v786, %v465
          %vm832 = vcmp.eq.s32.totalorder %v790, %v465
          %vm833 = vcmp.eq.s32.totalorder %v786, %v466
          %vm834 = vcmp.eq.s32.totalorder %v790, %v466
          %vm835 = vcmp.eq.s32.totalorder %v786, %v467
          %vm836 = vcmp.eq.s32.totalorder %v790, %v467
          %vm837 = vcmp.eq.s32.totalorder %v786, %v468
          %vm838 = vcmp.eq.s32.totalorder %v790, %v468
          %vm839 = vcmp.eq.s32.totalorder %v786, %v469
          %vm840 = vcmp.eq.s32.totalorder %v790, %v469
          %vm841 = vcmp.eq.s32.totalorder %v786, %v470
          %vm842 = vcmp.eq.s32.totalorder %v790, %v470
          %vm843 = vcmp.eq.s32.totalorder %v786, %v471
          %vm844 = vcmp.eq.s32.totalorder %v790, %v471
          %vm845 = vcmp.eq.s32.totalorder %v786, %v472
          %vm846 = vcmp.eq.s32.totalorder %v790, %v472
          %vm847 = vcmp.eq.s32.totalorder %v786, %v473
          %vm848 = vcmp.eq.s32.totalorder %v790, %v473
          %vm849 = vcmp.eq.s32.totalorder %v786, %v474
          %vm850 = vcmp.eq.s32.totalorder %v790, %v474
          %vm851 = vcmp.eq.s32.totalorder %v786, %v475
          %vm852 = vcmp.eq.s32.totalorder %v790, %v475
          %vm853 = vcmp.eq.s32.totalorder %v786, %v476
          %vm854 = vcmp.eq.s32.totalorder %v790, %v476
          %v856 = vlaneseq
          %v857 = vshrl.u32 %v856, 7
          %v858 = vsub.s32 0, %v857
          %v859 = vrot.slane %v782, %v858
          %v860 = vlaneseq
          %v861 = vshrl.u32 %v860, 7
          %v862 = vsub.s32 1, %v861
          %v863 = vrot.slane %v782, %v862
          %v866 = vsel %vm791, %v859, %v715
          %v867 = vsel %vm792, %v863, %v716
          %v868 = vsel %vm793, %v859, %v717
          %v869 = vsel %vm794, %v863, %v718
          %v870 = vsel %vm795, %v859, %v719
          %v871 = vsel %vm796, %v863, %v720
          %v872 = vsel %vm797, %v859, %v721
          %v873 = vsel %vm798, %v863, %v722
          %v874 = vsel %vm799, %v859, %v723
          %v875 = vsel %vm800, %v863, %v724
          %v876 = vsel %vm801, %v859, %v725
          %v877 = vsel %vm802, %v863, %v726
          %v878 = vsel %vm803, %v859, %v727
          %v879 = vsel %vm804, %v863, %v728
          %v880 = vsel %vm805, %v859, %v729
          %v881 = vsel %vm806, %v863, %v730
          %v882 = vsel %vm807, %v859, %v731
          %v883 = vsel %vm808, %v863, %v732
          %v884 = vsel %vm809, %v859, %v733
          %v885 = vsel %vm810, %v863, %v734
          %v886 = vsel %vm811, %v859, %v735
          %v887 = vsel %vm812, %v863, %v736
          %v888 = vsel %vm813, %v859, %v737
          %v889 = vsel %vm814, %v863, %v738
          %v890 = vsel %vm815, %v859, %v739
          %v891 = vsel %vm816, %v863, %v740
          %v892 = vsel %vm817, %v859, %v741
          %v893 = vsel %vm818, %v863, %v742
          %v894 = vsel %vm819, %v859, %v743
          %v895 = vsel %vm820, %v863, %v744
          %v896 = vsel %vm821, %v859, %v745
          %v897 = vsel %vm822, %v863, %v746
          %v898 = vsel %vm823, %v859, %v747
          %v899 = vsel %vm824, %v863, %v748
          %v900 = vsel %vm825, %v859, %v749
          %v901 = vsel %vm826, %v863, %v750
          %v902 = vsel %vm827, %v859, %v751
          %v903 = vsel %vm828, %v863, %v752
          %v904 = vsel %vm829, %v859, %v753
          %v905 = vsel %vm830, %v863, %v754
          %v906 = vsel %vm831, %v859, %v755
          %v907 = vsel %vm832, %v863, %v756
          %v908 = vsel %vm833, %v859, %v757
          %v909 = vsel %vm834, %v863, %v758
          %v910 = vsel %vm835, %v859, %v759
          %v911 = vsel %vm836, %v863, %v760
          %v912 = vsel %vm837, %v859, %v761
          %v913 = vsel %vm838, %v863, %v762
          %v914 = vsel %vm839, %v859, %v763
          %v915 = vsel %vm840, %v863, %v764
          %v916 = vsel %vm841, %v859, %v765
          %v917 = vsel %vm842, %v863, %v766
          %v918 = vsel %vm843, %v859, %v767
          %v919 = vsel %vm844, %v863, %v768
          %v920 = vsel %vm845, %v859, %v769
          %v921 = vsel %vm846, %v863, %v770
          %v922 = vsel %vm847, %v859, %v771
          %v923 = vsel %vm848, %v863, %v772
          %v924 = vsel %vm849, %v859, %v773
          %v925 = vsel %vm850, %v863, %v774
          %v926 = vsel %vm851, %v859, %v775
          %v927 = vsel %vm852, %v863, %v776
          %v928 = vsel %vm853, %v859, %v777
          %v929 = vsel %vm854, %v863, %v778
          %vm930 = vmand %vm395, %vm404
          %v931 = vadd.s32 %v412, %v392
          %v932 = vsel %vm930, %v931, 4294967295
          %v933 = vmul.f32 %v400, %v409
          %v934 = vlaneseq
          %v935 = vshrl.u32 %v934, 7
          %v936 = vsub.s32 0, %v935
          %v937 = vrot.slane %v932, %v936
          %v938 = vlaneseq
          %v939 = vshrl.u32 %v938, 7
          %v940 = vsub.s32 1, %v939
          %v941 = vrot.slane %v932, %v940
          %vm942 = vcmp.eq.s32.totalorder %v937, %v445
          %vm943 = vcmp.eq.s32.totalorder %v941, %v445
          %vm944 = vcmp.eq.s32.totalorder %v937, %v446
          %vm945 = vcmp.eq.s32.totalorder %v941, %v446
          %vm946 = vcmp.eq.s32.totalorder %v937, %v447
          %vm947 = vcmp.eq.s32.totalorder %v941, %v447
          %vm948 = vcmp.eq.s32.totalorder %v937, %v448
          %vm949 = vcmp.eq.s32.totalorder %v941, %v448
          %vm950 = vcmp.eq.s32.totalorder %v937, %v449
          %vm951 = vcmp.eq.s32.totalorder %v941, %v449
          %vm952 = vcmp.eq.s32.totalorder %v937, %v450
          %vm953 = vcmp.eq.s32.totalorder %v941, %v450
          %vm954 = vcmp.eq.s32.totalorder %v937, %v451
          %vm955 = vcmp.eq.s32.totalorder %v941, %v451
          %vm956 = vcmp.eq.s32.totalorder %v937, %v452
          %vm957 = vcmp.eq.s32.totalorder %v941, %v452
          %vm958 = vcmp.eq.s32.totalorder %v937, %v453
          %vm959 = vcmp.eq.s32.totalorder %v941, %v453
          %vm960 = vcmp.eq.s32.totalorder %v937, %v454
          %vm961 = vcmp.eq.s32.totalorder %v941, %v454
          %vm962 = vcmp.eq.s32.totalorder %v937, %v455
          %vm963 = vcmp.eq.s32.totalorder %v941, %v455
          %vm964 = vcmp.eq.s32.totalorder %v937, %v456
          %vm965 = vcmp.eq.s32.totalorder %v941, %v456
          %vm966 = vcmp.eq.s32.totalorder %v937, %v457
          %vm967 = vcmp.eq.s32.totalorder %v941, %v457
          %vm968 = vcmp.eq.s32.totalorder %v937, %v458
          %vm969 = vcmp.eq.s32.totalorder %v941, %v458
          %vm970 = vcmp.eq.s32.totalorder %v937, %v459
          %vm971 = vcmp.eq.s32.totalorder %v941, %v459
          %vm972 = vcmp.eq.s32.totalorder %v937, %v460
          %vm973 = vcmp.eq.s32.totalorder %v941, %v460
          %vm974 = vcmp.eq.s32.totalorder %v937, %v461
          %vm975 = vcmp.eq.s32.totalorder %v941, %v461
          %vm976 = vcmp.eq.s32.totalorder %v937, %v462
          %vm977 = vcmp.eq.s32.totalorder %v941, %v462
          %vm978 = vcmp.eq.s32.totalorder %v937, %v463
          %vm979 = vcmp.eq.s32.totalorder %v941, %v463
          %vm980 = vcmp.eq.s32.totalorder %v937, %v464
          %vm981 = vcmp.eq.s32.totalorder %v941, %v464
          %vm982 = vcmp.eq.s32.totalorder %v937, %v465
          %vm983 = vcmp.eq.s32.totalorder %v941, %v465
          %vm984 = vcmp.eq.s32.totalorder %v937, %v466
          %vm985 = vcmp.eq.s32.totalorder %v941, %v466
          %vm986 = vcmp.eq.s32.totalorder %v937, %v467
          %vm987 = vcmp.eq.s32.totalorder %v941, %v467
          %vm988 = vcmp.eq.s32.totalorder %v937, %v468
          %vm989 = vcmp.eq.s32.totalorder %v941, %v468
          %vm990 = vcmp.eq.s32.totalorder %v937, %v469
          %vm991 = vcmp.eq.s32.totalorder %v941, %v469
          %vm992 = vcmp.eq.s32.totalorder %v937, %v470
          %vm993 = vcmp.eq.s32.totalorder %v941, %v470
          %vm994 = vcmp.eq.s32.totalorder %v937, %v471
          %vm995 = vcmp.eq.s32.totalorder %v941, %v471
          %vm996 = vcmp.eq.s32.totalorder %v937, %v472
          %vm997 = vcmp.eq.s32.totalorder %v941, %v472
          %vm998 = vcmp.eq.s32.totalorder %v937, %v473
          %vm999 = vcmp.eq.s32.totalorder %v941, %v473
          %vm1000 = vcmp.eq.s32.totalorder %v937, %v474
          %vm1001 = vcmp.eq.s32.totalorder %v941, %v474
          %vm1002 = vcmp.eq.s32.totalorder %v937, %v475
          %vm1003 = vcmp.eq.s32.totalorder %v941, %v475
          %vm1004 = vcmp.eq.s32.totalorder %v937, %v476
          %vm1005 = vcmp.eq.s32.totalorder %v941, %v476
          %v1007 = vlaneseq
          %v1008 = vshrl.u32 %v1007, 7
          %v1009 = vsub.s32 0, %v1008
          %v1010 = vrot.slane %v933, %v1009
          %v1011 = vlaneseq
          %v1012 = vshrl.u32 %v1011, 7
          %v1013 = vsub.s32 1, %v1012
          %v1014 = vrot.slane %v933, %v1013
          %v1017 = vsel %vm942, %v1010, %v866
          %v1018 = vsel %vm943, %v1014, %v867
          %v1019 = vsel %vm944, %v1010, %v868
          %v1020 = vsel %vm945, %v1014, %v869
          %v1021 = vsel %vm946, %v1010, %v870
          %v1022 = vsel %vm947, %v1014, %v871
          %v1023 = vsel %vm948, %v1010, %v872
          %v1024 = vsel %vm949, %v1014, %v873
          %v1025 = vsel %vm950, %v1010, %v874
          %v1026 = vsel %vm951, %v1014, %v875
          %v1027 = vsel %vm952, %v1010, %v876
          %v1028 = vsel %vm953, %v1014, %v877
          %v1029 = vsel %vm954, %v1010, %v878
          %v1030 = vsel %vm955, %v1014, %v879
          %v1031 = vsel %vm956, %v1010, %v880
          %v1032 = vsel %vm957, %v1014, %v881
          %v1033 = vsel %vm958, %v1010, %v882
          %v1034 = vsel %vm959, %v1014, %v883
          %v1035 = vsel %vm960, %v1010, %v884
          %v1036 = vsel %vm961, %v1014, %v885
          %v1037 = vsel %vm962, %v1010, %v886
          %v1038 = vsel %vm963, %v1014, %v887
          %v1039 = vsel %vm964, %v1010, %v888
          %v1040 = vsel %vm965, %v1014, %v889
          %v1041 = vsel %vm966, %v1010, %v890
          %v1042 = vsel %vm967, %v1014, %v891
          %v1043 = vsel %vm968, %v1010, %v892
          %v1044 = vsel %vm969, %v1014, %v893
          %v1045 = vsel %vm970, %v1010, %v894
          %v1046 = vsel %vm971, %v1014, %v895
          %v1047 = vsel %vm972, %v1010, %v896
          %v1048 = vsel %vm973, %v1014, %v897
          %v1049 = vsel %vm974, %v1010, %v898
          %v1050 = vsel %vm975, %v1014, %v899
          %v1051 = vsel %vm976, %v1010, %v900
          %v1052 = vsel %vm977, %v1014, %v901
          %v1053 = vsel %vm978, %v1010, %v902
          %v1054 = vsel %vm979, %v1014, %v903
          %v1055 = vsel %vm980, %v1010, %v904
          %v1056 = vsel %vm981, %v1014, %v905
          %v1057 = vsel %vm982, %v1010, %v906
          %v1058 = vsel %vm983, %v1014, %v907
          %v1059 = vsel %vm984, %v1010, %v908
          %v1060 = vsel %vm985, %v1014, %v909
          %v1061 = vsel %vm986, %v1010, %v910
          %v1062 = vsel %vm987, %v1014, %v911
          %v1063 = vsel %vm988, %v1010, %v912
          %v1064 = vsel %vm989, %v1014, %v913
          %v1065 = vsel %vm990, %v1010, %v914
          %v1066 = vsel %vm991, %v1014, %v915
          %v1067 = vsel %vm992, %v1010, %v916
          %v1068 = vsel %vm993, %v1014, %v917
          %v1069 = vsel %vm994, %v1010, %v918
          %v1070 = vsel %vm995, %v1014, %v919
          %v1071 = vsel %vm996, %v1010, %v920
          %v1072 = vsel %vm997, %v1014, %v921
          %v1073 = vsel %vm998, %v1010, %v922
          %v1074 = vsel %vm999, %v1014, %v923
          %v1075 = vsel %vm1000, %v1010, %v924
          %v1076 = vsel %vm1001, %v1014, %v925
          %v1077 = vsel %vm1002, %v1010, %v926
          %v1078 = vsel %vm1003, %v1014, %v927
          %v1079 = vsel %vm1004, %v1010, %v928
          %v1080 = vsel %vm1005, %v1014, %v929
          %vm1081 = vmand %vm370, %vm415
          %v1082 = vadd.s32 %v421, %v367
          %v1083 = vsel %vm1081, %v1082, 4294967295
          %v1084 = vmul.f32 %v375, %v419
          %v1085 = vlaneseq
          %v1086 = vshrl.u32 %v1085, 7
          %v1087 = vsub.s32 0, %v1086
          %v1088 = vrot.slane %v1083, %v1087
          %v1089 = vlaneseq
          %v1090 = vshrl.u32 %v1089, 7
          %v1091 = vsub.s32 1, %v1090
          %v1092 = vrot.slane %v1083, %v1091
          %vm1093 = vcmp.eq.s32.totalorder %v1088, %v445
          %vm1094 = vcmp.eq.s32.totalorder %v1092, %v445
          %vm1095 = vcmp.eq.s32.totalorder %v1088, %v446
          %vm1096 = vcmp.eq.s32.totalorder %v1092, %v446
          %vm1097 = vcmp.eq.s32.totalorder %v1088, %v447
          %vm1098 = vcmp.eq.s32.totalorder %v1092, %v447
          %vm1099 = vcmp.eq.s32.totalorder %v1088, %v448
          %vm1100 = vcmp.eq.s32.totalorder %v1092, %v448
          %vm1101 = vcmp.eq.s32.totalorder %v1088, %v449
          %vm1102 = vcmp.eq.s32.totalorder %v1092, %v449
          %vm1103 = vcmp.eq.s32.totalorder %v1088, %v450
          %vm1104 = vcmp.eq.s32.totalorder %v1092, %v450
          %vm1105 = vcmp.eq.s32.totalorder %v1088, %v451
          %vm1106 = vcmp.eq.s32.totalorder %v1092, %v451
          %vm1107 = vcmp.eq.s32.totalorder %v1088, %v452
          %vm1108 = vcmp.eq.s32.totalorder %v1092, %v452
          %vm1109 = vcmp.eq.s32.totalorder %v1088, %v453
          %vm1110 = vcmp.eq.s32.totalorder %v1092, %v453
          %vm1111 = vcmp.eq.s32.totalorder %v1088, %v454
          %vm1112 = vcmp.eq.s32.totalorder %v1092, %v454
          %vm1113 = vcmp.eq.s32.totalorder %v1088, %v455
          %vm1114 = vcmp.eq.s32.totalorder %v1092, %v455
          %vm1115 = vcmp.eq.s32.totalorder %v1088, %v456
          %vm1116 = vcmp.eq.s32.totalorder %v1092, %v456
          %vm1117 = vcmp.eq.s32.totalorder %v1088, %v457
          %vm1118 = vcmp.eq.s32.totalorder %v1092, %v457
          %vm1119 = vcmp.eq.s32.totalorder %v1088, %v458
          %vm1120 = vcmp.eq.s32.totalorder %v1092, %v458
          %vm1121 = vcmp.eq.s32.totalorder %v1088, %v459
          %vm1122 = vcmp.eq.s32.totalorder %v1092, %v459
          %vm1123 = vcmp.eq.s32.totalorder %v1088, %v460
          %vm1124 = vcmp.eq.s32.totalorder %v1092, %v460
          %vm1125 = vcmp.eq.s32.totalorder %v1088, %v461
          %vm1126 = vcmp.eq.s32.totalorder %v1092, %v461
          %vm1127 = vcmp.eq.s32.totalorder %v1088, %v462
          %vm1128 = vcmp.eq.s32.totalorder %v1092, %v462
          %vm1129 = vcmp.eq.s32.totalorder %v1088, %v463
          %vm1130 = vcmp.eq.s32.totalorder %v1092, %v463
          %vm1131 = vcmp.eq.s32.totalorder %v1088, %v464
          %vm1132 = vcmp.eq.s32.totalorder %v1092, %v464
          %vm1133 = vcmp.eq.s32.totalorder %v1088, %v465
          %vm1134 = vcmp.eq.s32.totalorder %v1092, %v465
          %vm1135 = vcmp.eq.s32.totalorder %v1088, %v466
          %vm1136 = vcmp.eq.s32.totalorder %v1092, %v466
          %vm1137 = vcmp.eq.s32.totalorder %v1088, %v467
          %vm1138 = vcmp.eq.s32.totalorder %v1092, %v467
          %vm1139 = vcmp.eq.s32.totalorder %v1088, %v468
          %vm1140 = vcmp.eq.s32.totalorder %v1092, %v468
          %vm1141 = vcmp.eq.s32.totalorder %v1088, %v469
          %vm1142 = vcmp.eq.s32.totalorder %v1092, %v469
          %vm1143 = vcmp.eq.s32.totalorder %v1088, %v470
          %vm1144 = vcmp.eq.s32.totalorder %v1092, %v470
          %vm1145 = vcmp.eq.s32.totalorder %v1088, %v471
          %vm1146 = vcmp.eq.s32.totalorder %v1092, %v471
          %vm1147 = vcmp.eq.s32.totalorder %v1088, %v472
          %vm1148 = vcmp.eq.s32.totalorder %v1092, %v472
          %vm1149 = vcmp.eq.s32.totalorder %v1088, %v473
          %vm1150 = vcmp.eq.s32.totalorder %v1092, %v473
          %vm1151 = vcmp.eq.s32.totalorder %v1088, %v474
          %vm1152 = vcmp.eq.s32.totalorder %v1092, %v474
          %vm1153 = vcmp.eq.s32.totalorder %v1088, %v475
          %vm1154 = vcmp.eq.s32.totalorder %v1092, %v475
          %vm1155 = vcmp.eq.s32.totalorder %v1088, %v476
          %vm1156 = vcmp.eq.s32.totalorder %v1092, %v476
          %v1158 = vlaneseq
          %v1159 = vshrl.u32 %v1158, 7
          %v1160 = vsub.s32 0, %v1159
          %v1161 = vrot.slane %v1084, %v1160
          %v1162 = vlaneseq
          %v1163 = vshrl.u32 %v1162, 7
          %v1164 = vsub.s32 1, %v1163
          %v1165 = vrot.slane %v1084, %v1164
          %v1168 = vsel %vm1093, %v1161, %v1017
          %v1169 = vsel %vm1094, %v1165, %v1018
          %v1170 = vsel %vm1095, %v1161, %v1019
          %v1171 = vsel %vm1096, %v1165, %v1020
          %v1172 = vsel %vm1097, %v1161, %v1021
          %v1173 = vsel %vm1098, %v1165, %v1022
          %v1174 = vsel %vm1099, %v1161, %v1023
          %v1175 = vsel %vm1100, %v1165, %v1024
          %v1176 = vsel %vm1101, %v1161, %v1025
          %v1177 = vsel %vm1102, %v1165, %v1026
          %v1178 = vsel %vm1103, %v1161, %v1027
          %v1179 = vsel %vm1104, %v1165, %v1028
          %v1180 = vsel %vm1105, %v1161, %v1029
          %v1181 = vsel %vm1106, %v1165, %v1030
          %v1182 = vsel %vm1107, %v1161, %v1031
          %v1183 = vsel %vm1108, %v1165, %v1032
          %v1184 = vsel %vm1109, %v1161, %v1033
          %v1185 = vsel %vm1110, %v1165, %v1034
          %v1186 = vsel %vm1111, %v1161, %v1035
          %v1187 = vsel %vm1112, %v1165, %v1036
          %v1188 = vsel %vm1113, %v1161, %v1037
          %v1189 = vsel %vm1114, %v1165, %v1038
          %v1190 = vsel %vm1115, %v1161, %v1039
          %v1191 = vsel %vm1116, %v1165, %v1040
          %v1192 = vsel %vm1117, %v1161, %v1041
          %v1193 = vsel %vm1118, %v1165, %v1042
          %v1194 = vsel %vm1119, %v1161, %v1043
          %v1195 = vsel %vm1120, %v1165, %v1044
          %v1196 = vsel %vm1121, %v1161, %v1045
          %v1197 = vsel %vm1122, %v1165, %v1046
          %v1198 = vsel %vm1123, %v1161, %v1047
          %v1199 = vsel %vm1124, %v1165, %v1048
          %v1200 = vsel %vm1125, %v1161, %v1049
          %v1201 = vsel %vm1126, %v1165, %v1050
          %v1202 = vsel %vm1127, %v1161, %v1051
          %v1203 = vsel %vm1128, %v1165, %v1052
          %v1204 = vsel %vm1129, %v1161, %v1053
          %v1205 = vsel %vm1130, %v1165, %v1054
          %v1206 = vsel %vm1131, %v1161, %v1055
          %v1207 = vsel %vm1132, %v1165, %v1056
          %v1208 = vsel %vm1133, %v1161, %v1057
          %v1209 = vsel %vm1134, %v1165, %v1058
          %v1210 = vsel %vm1135, %v1161, %v1059
          %v1211 = vsel %vm1136, %v1165, %v1060
          %v1212 = vsel %vm1137, %v1161, %v1061
          %v1213 = vsel %vm1138, %v1165, %v1062
          %v1214 = vsel %vm1139, %v1161, %v1063
          %v1215 = vsel %vm1140, %v1165, %v1064
          %v1216 = vsel %vm1141, %v1161, %v1065
          %v1217 = vsel %vm1142, %v1165, %v1066
          %v1218 = vsel %vm1143, %v1161, %v1067
          %v1219 = vsel %vm1144, %v1165, %v1068
          %v1220 = vsel %vm1145, %v1161, %v1069
          %v1221 = vsel %vm1146, %v1165, %v1070
          %v1222 = vsel %vm1147, %v1161, %v1071
          %v1223 = vsel %vm1148, %v1165, %v1072
          %v1224 = vsel %vm1149, %v1161, %v1073
          %v1225 = vsel %vm1150, %v1165, %v1074
          %v1226 = vsel %vm1151, %v1161, %v1075
          %v1227 = vsel %vm1152, %v1165, %v1076
          %v1228 = vsel %vm1153, %v1161, %v1077
          %v1229 = vsel %vm1154, %v1165, %v1078
          %v1230 = vsel %vm1155, %v1161, %v1079
          %v1231 = vsel %vm1156, %v1165, %v1080
          %vm1232 = vmand %vm378, %vm415
          %v1233 = vadd.s32 %v421, %v364
          %v1234 = vsel %vm1232, %v1233, 4294967295
          %v1235 = vmul.f32 %v382, %v419
          %v1236 = vlaneseq
          %v1237 = vshrl.u32 %v1236, 7
          %v1238 = vsub.s32 0, %v1237
          %v1239 = vrot.slane %v1234, %v1238
          %v1240 = vlaneseq
          %v1241 = vshrl.u32 %v1240, 7
          %v1242 = vsub.s32 1, %v1241
          %v1243 = vrot.slane %v1234, %v1242
          %vm1244 = vcmp.eq.s32.totalorder %v1239, %v445
          %vm1245 = vcmp.eq.s32.totalorder %v1243, %v445
          %vm1246 = vcmp.eq.s32.totalorder %v1239, %v446
          %vm1247 = vcmp.eq.s32.totalorder %v1243, %v446
          %vm1248 = vcmp.eq.s32.totalorder %v1239, %v447
          %vm1249 = vcmp.eq.s32.totalorder %v1243, %v447
          %vm1250 = vcmp.eq.s32.totalorder %v1239, %v448
          %vm1251 = vcmp.eq.s32.totalorder %v1243, %v448
          %vm1252 = vcmp.eq.s32.totalorder %v1239, %v449
          %vm1253 = vcmp.eq.s32.totalorder %v1243, %v449
          %vm1254 = vcmp.eq.s32.totalorder %v1239, %v450
          %vm1255 = vcmp.eq.s32.totalorder %v1243, %v450
          %vm1256 = vcmp.eq.s32.totalorder %v1239, %v451
          %vm1257 = vcmp.eq.s32.totalorder %v1243, %v451
          %vm1258 = vcmp.eq.s32.totalorder %v1239, %v452
          %vm1259 = vcmp.eq.s32.totalorder %v1243, %v452
          %vm1260 = vcmp.eq.s32.totalorder %v1239, %v453
          %vm1261 = vcmp.eq.s32.totalorder %v1243, %v453
          %vm1262 = vcmp.eq.s32.totalorder %v1239, %v454
          %vm1263 = vcmp.eq.s32.totalorder %v1243, %v454
          %vm1264 = vcmp.eq.s32.totalorder %v1239, %v455
          %vm1265 = vcmp.eq.s32.totalorder %v1243, %v455
          %vm1266 = vcmp.eq.s32.totalorder %v1239, %v456
          %vm1267 = vcmp.eq.s32.totalorder %v1243, %v456
          %vm1268 = vcmp.eq.s32.totalorder %v1239, %v457
          %vm1269 = vcmp.eq.s32.totalorder %v1243, %v457
          %vm1270 = vcmp.eq.s32.totalorder %v1239, %v458
          %vm1271 = vcmp.eq.s32.totalorder %v1243, %v458
          %vm1272 = vcmp.eq.s32.totalorder %v1239, %v459
          %vm1273 = vcmp.eq.s32.totalorder %v1243, %v459
          %vm1274 = vcmp.eq.s32.totalorder %v1239, %v460
          %vm1275 = vcmp.eq.s32.totalorder %v1243, %v460
          %vm1276 = vcmp.eq.s32.totalorder %v1239, %v461
          %vm1277 = vcmp.eq.s32.totalorder %v1243, %v461
          %vm1278 = vcmp.eq.s32.totalorder %v1239, %v462
          %vm1279 = vcmp.eq.s32.totalorder %v1243, %v462
          %vm1280 = vcmp.eq.s32.totalorder %v1239, %v463
          %vm1281 = vcmp.eq.s32.totalorder %v1243, %v463
          %vm1282 = vcmp.eq.s32.totalorder %v1239, %v464
          %vm1283 = vcmp.eq.s32.totalorder %v1243, %v464
          %vm1284 = vcmp.eq.s32.totalorder %v1239, %v465
          %vm1285 = vcmp.eq.s32.totalorder %v1243, %v465
          %vm1286 = vcmp.eq.s32.totalorder %v1239, %v466
          %vm1287 = vcmp.eq.s32.totalorder %v1243, %v466
          %vm1288 = vcmp.eq.s32.totalorder %v1239, %v467
          %vm1289 = vcmp.eq.s32.totalorder %v1243, %v467
          %vm1290 = vcmp.eq.s32.totalorder %v1239, %v468
          %vm1291 = vcmp.eq.s32.totalorder %v1243, %v468
          %vm1292 = vcmp.eq.s32.totalorder %v1239, %v469
          %vm1293 = vcmp.eq.s32.totalorder %v1243, %v469
          %vm1294 = vcmp.eq.s32.totalorder %v1239, %v470
          %vm1295 = vcmp.eq.s32.totalorder %v1243, %v470
          %vm1296 = vcmp.eq.s32.totalorder %v1239, %v471
          %vm1297 = vcmp.eq.s32.totalorder %v1243, %v471
          %vm1298 = vcmp.eq.s32.totalorder %v1239, %v472
          %vm1299 = vcmp.eq.s32.totalorder %v1243, %v472
          %vm1300 = vcmp.eq.s32.totalorder %v1239, %v473
          %vm1301 = vcmp.eq.s32.totalorder %v1243, %v473
          %vm1302 = vcmp.eq.s32.totalorder %v1239, %v474
          %vm1303 = vcmp.eq.s32.totalorder %v1243, %v474
          %vm1304 = vcmp.eq.s32.totalorder %v1239, %v475
          %vm1305 = vcmp.eq.s32.totalorder %v1243, %v475
          %vm1306 = vcmp.eq.s32.totalorder %v1239, %v476
          %vm1307 = vcmp.eq.s32.totalorder %v1243, %v476
          %v1309 = vlaneseq
          %v1310 = vshrl.u32 %v1309, 7
          %v1311 = vsub.s32 0, %v1310
          %v1312 = vrot.slane %v1235, %v1311
          %v1313 = vlaneseq
          %v1314 = vshrl.u32 %v1313, 7
          %v1315 = vsub.s32 1, %v1314
          %v1316 = vrot.slane %v1235, %v1315
          %v1319 = vsel %vm1244, %v1312, %v1168
          %v1320 = vsel %vm1245, %v1316, %v1169
          %v1321 = vsel %vm1246, %v1312, %v1170
          %v1322 = vsel %vm1247, %v1316, %v1171
          %v1323 = vsel %vm1248, %v1312, %v1172
          %v1324 = vsel %vm1249, %v1316, %v1173
          %v1325 = vsel %vm1250, %v1312, %v1174
          %v1326 = vsel %vm1251, %v1316, %v1175
          %v1327 = vsel %vm1252, %v1312, %v1176
          %v1328 = vsel %vm1253, %v1316, %v1177
          %v1329 = vsel %vm1254, %v1312, %v1178
          %v1330 = vsel %vm1255, %v1316, %v1179
          %v1331 = vsel %vm1256, %v1312, %v1180
          %v1332 = vsel %vm1257, %v1316, %v1181
          %v1333 = vsel %vm1258, %v1312, %v1182
          %v1334 = vsel %vm1259, %v1316, %v1183
          %v1335 = vsel %vm1260, %v1312, %v1184
          %v1336 = vsel %vm1261, %v1316, %v1185
          %v1337 = vsel %vm1262, %v1312, %v1186
          %v1338 = vsel %vm1263, %v1316, %v1187
          %v1339 = vsel %vm1264, %v1312, %v1188
          %v1340 = vsel %vm1265, %v1316, %v1189
          %v1341 = vsel %vm1266, %v1312, %v1190
          %v1342 = vsel %vm1267, %v1316, %v1191
          %v1343 = vsel %vm1268, %v1312, %v1192
          %v1344 = vsel %vm1269, %v1316, %v1193
          %v1345 = vsel %vm1270, %v1312, %v1194
          %v1346 = vsel %vm1271, %v1316, %v1195
          %v1347 = vsel %vm1272, %v1312, %v1196
          %v1348 = vsel %vm1273, %v1316, %v1197
          %v1349 = vsel %vm1274, %v1312, %v1198
          %v1350 = vsel %vm1275, %v1316, %v1199
          %v1351 = vsel %vm1276, %v1312, %v1200
          %v1352 = vsel %vm1277, %v1316, %v1201
          %v1353 = vsel %vm1278, %v1312, %v1202
          %v1354 = vsel %vm1279, %v1316, %v1203
          %v1355 = vsel %vm1280, %v1312, %v1204
          %v1356 = vsel %vm1281, %v1316, %v1205
          %v1357 = vsel %vm1282, %v1312, %v1206
          %v1358 = vsel %vm1283, %v1316, %v1207
          %v1359 = vsel %vm1284, %v1312, %v1208
          %v1360 = vsel %vm1285, %v1316, %v1209
          %v1361 = vsel %vm1286, %v1312, %v1210
          %v1362 = vsel %vm1287, %v1316, %v1211
          %v1363 = vsel %vm1288, %v1312, %v1212
          %v1364 = vsel %vm1289, %v1316, %v1213
          %v1365 = vsel %vm1290, %v1312, %v1214
          %v1366 = vsel %vm1291, %v1316, %v1215
          %v1367 = vsel %vm1292, %v1312, %v1216
          %v1368 = vsel %vm1293, %v1316, %v1217
          %v1369 = vsel %vm1294, %v1312, %v1218
          %v1370 = vsel %vm1295, %v1316, %v1219
          %v1371 = vsel %vm1296, %v1312, %v1220
          %v1372 = vsel %vm1297, %v1316, %v1221
          %v1373 = vsel %vm1298, %v1312, %v1222
          %v1374 = vsel %vm1299, %v1316, %v1223
          %v1375 = vsel %vm1300, %v1312, %v1224
          %v1376 = vsel %vm1301, %v1316, %v1225
          %v1377 = vsel %vm1302, %v1312, %v1226
          %v1378 = vsel %vm1303, %v1316, %v1227
          %v1379 = vsel %vm1304, %v1312, %v1228
          %v1380 = vsel %vm1305, %v1316, %v1229
          %v1381 = vsel %vm1306, %v1312, %v1230
          %v1382 = vsel %vm1307, %v1316, %v1231
          %vm1383 = vmand %vm386, %vm415
          %v1384 = vadd.s32 %v421, %v383
          %v1385 = vsel %vm1383, %v1384, 4294967295
          %v1386 = vmul.f32 %v391, %v419
          %v1387 = vlaneseq
          %v1388 = vshrl.u32 %v1387, 7
          %v1389 = vsub.s32 0, %v1388
          %v1390 = vrot.slane %v1385, %v1389
          %v1391 = vlaneseq
          %v1392 = vshrl.u32 %v1391, 7
          %v1393 = vsub.s32 1, %v1392
          %v1394 = vrot.slane %v1385, %v1393
          %vm1395 = vcmp.eq.s32.totalorder %v1390, %v445
          %vm1396 = vcmp.eq.s32.totalorder %v1394, %v445
          %vm1397 = vcmp.eq.s32.totalorder %v1390, %v446
          %vm1398 = vcmp.eq.s32.totalorder %v1394, %v446
          %vm1399 = vcmp.eq.s32.totalorder %v1390, %v447
          %vm1400 = vcmp.eq.s32.totalorder %v1394, %v447
          %vm1401 = vcmp.eq.s32.totalorder %v1390, %v448
          %vm1402 = vcmp.eq.s32.totalorder %v1394, %v448
          %vm1403 = vcmp.eq.s32.totalorder %v1390, %v449
          %vm1404 = vcmp.eq.s32.totalorder %v1394, %v449
          %vm1405 = vcmp.eq.s32.totalorder %v1390, %v450
          %vm1406 = vcmp.eq.s32.totalorder %v1394, %v450
          %vm1407 = vcmp.eq.s32.totalorder %v1390, %v451
          %vm1408 = vcmp.eq.s32.totalorder %v1394, %v451
          %vm1409 = vcmp.eq.s32.totalorder %v1390, %v452
          %vm1410 = vcmp.eq.s32.totalorder %v1394, %v452
          %vm1411 = vcmp.eq.s32.totalorder %v1390, %v453
          %vm1412 = vcmp.eq.s32.totalorder %v1394, %v453
          %vm1413 = vcmp.eq.s32.totalorder %v1390, %v454
          %vm1414 = vcmp.eq.s32.totalorder %v1394, %v454
          %vm1415 = vcmp.eq.s32.totalorder %v1390, %v455
          %vm1416 = vcmp.eq.s32.totalorder %v1394, %v455
          %vm1417 = vcmp.eq.s32.totalorder %v1390, %v456
          %vm1418 = vcmp.eq.s32.totalorder %v1394, %v456
          %vm1419 = vcmp.eq.s32.totalorder %v1390, %v457
          %vm1420 = vcmp.eq.s32.totalorder %v1394, %v457
          %vm1421 = vcmp.eq.s32.totalorder %v1390, %v458
          %vm1422 = vcmp.eq.s32.totalorder %v1394, %v458
          %vm1423 = vcmp.eq.s32.totalorder %v1390, %v459
          %vm1424 = vcmp.eq.s32.totalorder %v1394, %v459
          %vm1425 = vcmp.eq.s32.totalorder %v1390, %v460
          %vm1426 = vcmp.eq.s32.totalorder %v1394, %v460
          %vm1427 = vcmp.eq.s32.totalorder %v1390, %v461
          %vm1428 = vcmp.eq.s32.totalorder %v1394, %v461
          %vm1429 = vcmp.eq.s32.totalorder %v1390, %v462
          %vm1430 = vcmp.eq.s32.totalorder %v1394, %v462
          %vm1431 = vcmp.eq.s32.totalorder %v1390, %v463
          %vm1432 = vcmp.eq.s32.totalorder %v1394, %v463
          %vm1433 = vcmp.eq.s32.totalorder %v1390, %v464
          %vm1434 = vcmp.eq.s32.totalorder %v1394, %v464
          %vm1435 = vcmp.eq.s32.totalorder %v1390, %v465
          %vm1436 = vcmp.eq.s32.totalorder %v1394, %v465
          %vm1437 = vcmp.eq.s32.totalorder %v1390, %v466
          %vm1438 = vcmp.eq.s32.totalorder %v1394, %v466
          %vm1439 = vcmp.eq.s32.totalorder %v1390, %v467
          %vm1440 = vcmp.eq.s32.totalorder %v1394, %v467
          %vm1441 = vcmp.eq.s32.totalorder %v1390, %v468
          %vm1442 = vcmp.eq.s32.totalorder %v1394, %v468
          %vm1443 = vcmp.eq.s32.totalorder %v1390, %v469
          %vm1444 = vcmp.eq.s32.totalorder %v1394, %v469
          %vm1445 = vcmp.eq.s32.totalorder %v1390, %v470
          %vm1446 = vcmp.eq.s32.totalorder %v1394, %v470
          %vm1447 = vcmp.eq.s32.totalorder %v1390, %v471
          %vm1448 = vcmp.eq.s32.totalorder %v1394, %v471
          %vm1449 = vcmp.eq.s32.totalorder %v1390, %v472
          %vm1450 = vcmp.eq.s32.totalorder %v1394, %v472
          %vm1451 = vcmp.eq.s32.totalorder %v1390, %v473
          %vm1452 = vcmp.eq.s32.totalorder %v1394, %v473
          %vm1453 = vcmp.eq.s32.totalorder %v1390, %v474
          %vm1454 = vcmp.eq.s32.totalorder %v1394, %v474
          %vm1455 = vcmp.eq.s32.totalorder %v1390, %v475
          %vm1456 = vcmp.eq.s32.totalorder %v1394, %v475
          %vm1457 = vcmp.eq.s32.totalorder %v1390, %v476
          %vm1458 = vcmp.eq.s32.totalorder %v1394, %v476
          %v1460 = vlaneseq
          %v1461 = vshrl.u32 %v1460, 7
          %v1462 = vsub.s32 0, %v1461
          %v1463 = vrot.slane %v1386, %v1462
          %v1464 = vlaneseq
          %v1465 = vshrl.u32 %v1464, 7
          %v1466 = vsub.s32 1, %v1465
          %v1467 = vrot.slane %v1386, %v1466
          %v1470 = vsel %vm1395, %v1463, %v1319
          %v1471 = vsel %vm1396, %v1467, %v1320
          %v1472 = vsel %vm1397, %v1463, %v1321
          %v1473 = vsel %vm1398, %v1467, %v1322
          %v1474 = vsel %vm1399, %v1463, %v1323
          %v1475 = vsel %vm1400, %v1467, %v1324
          %v1476 = vsel %vm1401, %v1463, %v1325
          %v1477 = vsel %vm1402, %v1467, %v1326
          %v1478 = vsel %vm1403, %v1463, %v1327
          %v1479 = vsel %vm1404, %v1467, %v1328
          %v1480 = vsel %vm1405, %v1463, %v1329
          %v1481 = vsel %vm1406, %v1467, %v1330
          %v1482 = vsel %vm1407, %v1463, %v1331
          %v1483 = vsel %vm1408, %v1467, %v1332
          %v1484 = vsel %vm1409, %v1463, %v1333
          %v1485 = vsel %vm1410, %v1467, %v1334
          %v1486 = vsel %vm1411, %v1463, %v1335
          %v1487 = vsel %vm1412, %v1467, %v1336
          %v1488 = vsel %vm1413, %v1463, %v1337
          %v1489 = vsel %vm1414, %v1467, %v1338
          %v1490 = vsel %vm1415, %v1463, %v1339
          %v1491 = vsel %vm1416, %v1467, %v1340
          %v1492 = vsel %vm1417, %v1463, %v1341
          %v1493 = vsel %vm1418, %v1467, %v1342
          %v1494 = vsel %vm1419, %v1463, %v1343
          %v1495 = vsel %vm1420, %v1467, %v1344
          %v1496 = vsel %vm1421, %v1463, %v1345
          %v1497 = vsel %vm1422, %v1467, %v1346
          %v1498 = vsel %vm1423, %v1463, %v1347
          %v1499 = vsel %vm1424, %v1467, %v1348
          %v1500 = vsel %vm1425, %v1463, %v1349
          %v1501 = vsel %vm1426, %v1467, %v1350
          %v1502 = vsel %vm1427, %v1463, %v1351
          %v1503 = vsel %vm1428, %v1467, %v1352
          %v1504 = vsel %vm1429, %v1463, %v1353
          %v1505 = vsel %vm1430, %v1467, %v1354
          %v1506 = vsel %vm1431, %v1463, %v1355
          %v1507 = vsel %vm1432, %v1467, %v1356
          %v1508 = vsel %vm1433, %v1463, %v1357
          %v1509 = vsel %vm1434, %v1467, %v1358
          %v1510 = vsel %vm1435, %v1463, %v1359
          %v1511 = vsel %vm1436, %v1467, %v1360
          %v1512 = vsel %vm1437, %v1463, %v1361
          %v1513 = vsel %vm1438, %v1467, %v1362
          %v1514 = vsel %vm1439, %v1463, %v1363
          %v1515 = vsel %vm1440, %v1467, %v1364
          %v1516 = vsel %vm1441, %v1463, %v1365
          %v1517 = vsel %vm1442, %v1467, %v1366
          %v1518 = vsel %vm1443, %v1463, %v1367
          %v1519 = vsel %vm1444, %v1467, %v1368
          %v1520 = vsel %vm1445, %v1463, %v1369
          %v1521 = vsel %vm1446, %v1467, %v1370
          %v1522 = vsel %vm1447, %v1463, %v1371
          %v1523 = vsel %vm1448, %v1467, %v1372
          %v1524 = vsel %vm1449, %v1463, %v1373
          %v1525 = vsel %vm1450, %v1467, %v1374
          %v1526 = vsel %vm1451, %v1463, %v1375
          %v1527 = vsel %vm1452, %v1467, %v1376
          %v1528 = vsel %vm1453, %v1463, %v1377
          %v1529 = vsel %vm1454, %v1467, %v1378
          %v1530 = vsel %vm1455, %v1463, %v1379
          %v1531 = vsel %vm1456, %v1467, %v1380
          %v1532 = vsel %vm1457, %v1463, %v1381
          %v1533 = vsel %vm1458, %v1467, %v1382
          %vm1534 = vmand %vm395, %vm415
          %v1535 = vadd.s32 %v421, %v392
          %v1536 = vsel %vm1534, %v1535, 4294967295
          %v1537 = vmul.f32 %v400, %v419
          %v1538 = vlaneseq
          %v1539 = vshrl.u32 %v1538, 7
          %v1540 = vsub.s32 0, %v1539
          %v1541 = vrot.slane %v1536, %v1540
          %v1542 = vlaneseq
          %v1543 = vshrl.u32 %v1542, 7
          %v1544 = vsub.s32 1, %v1543
          %v1545 = vrot.slane %v1536, %v1544
          %vm1546 = vcmp.eq.s32.totalorder %v1541, %v445
          %vm1547 = vcmp.eq.s32.totalorder %v1545, %v445
          %vm1548 = vcmp.eq.s32.totalorder %v1541, %v446
          %vm1549 = vcmp.eq.s32.totalorder %v1545, %v446
          %vm1550 = vcmp.eq.s32.totalorder %v1541, %v447
          %vm1551 = vcmp.eq.s32.totalorder %v1545, %v447
          %vm1552 = vcmp.eq.s32.totalorder %v1541, %v448
          %vm1553 = vcmp.eq.s32.totalorder %v1545, %v448
          %vm1554 = vcmp.eq.s32.totalorder %v1541, %v449
          %vm1555 = vcmp.eq.s32.totalorder %v1545, %v449
          %vm1556 = vcmp.eq.s32.totalorder %v1541, %v450
          %vm1557 = vcmp.eq.s32.totalorder %v1545, %v450
          %vm1558 = vcmp.eq.s32.totalorder %v1541, %v451
          %vm1559 = vcmp.eq.s32.totalorder %v1545, %v451
          %vm1560 = vcmp.eq.s32.totalorder %v1541, %v452
          %vm1561 = vcmp.eq.s32.totalorder %v1545, %v452
          %vm1562 = vcmp.eq.s32.totalorder %v1541, %v453
          %vm1563 = vcmp.eq.s32.totalorder %v1545, %v453
          %vm1564 = vcmp.eq.s32.totalorder %v1541, %v454
          %vm1565 = vcmp.eq.s32.totalorder %v1545, %v454
          %vm1566 = vcmp.eq.s32.totalorder %v1541, %v455
          %vm1567 = vcmp.eq.s32.totalorder %v1545, %v455
          %vm1568 = vcmp.eq.s32.totalorder %v1541, %v456
          %vm1569 = vcmp.eq.s32.totalorder %v1545, %v456
          %vm1570 = vcmp.eq.s32.totalorder %v1541, %v457
          %vm1571 = vcmp.eq.s32.totalorder %v1545, %v457
          %vm1572 = vcmp.eq.s32.totalorder %v1541, %v458
          %vm1573 = vcmp.eq.s32.totalorder %v1545, %v458
          %vm1574 = vcmp.eq.s32.totalorder %v1541, %v459
          %vm1575 = vcmp.eq.s32.totalorder %v1545, %v459
          %vm1576 = vcmp.eq.s32.totalorder %v1541, %v460
          %vm1577 = vcmp.eq.s32.totalorder %v1545, %v460
          %vm1578 = vcmp.eq.s32.totalorder %v1541, %v461
          %vm1579 = vcmp.eq.s32.totalorder %v1545, %v461
          %vm1580 = vcmp.eq.s32.totalorder %v1541, %v462
          %vm1581 = vcmp.eq.s32.totalorder %v1545, %v462
          %vm1582 = vcmp.eq.s32.totalorder %v1541, %v463
          %vm1583 = vcmp.eq.s32.totalorder %v1545, %v463
          %vm1584 = vcmp.eq.s32.totalorder %v1541, %v464
          %vm1585 = vcmp.eq.s32.totalorder %v1545, %v464
          %vm1586 = vcmp.eq.s32.totalorder %v1541, %v465
          %vm1587 = vcmp.eq.s32.totalorder %v1545, %v465
          %vm1588 = vcmp.eq.s32.totalorder %v1541, %v466
          %vm1589 = vcmp.eq.s32.totalorder %v1545, %v466
          %vm1590 = vcmp.eq.s32.totalorder %v1541, %v467
          %vm1591 = vcmp.eq.s32.totalorder %v1545, %v467
          %vm1592 = vcmp.eq.s32.totalorder %v1541, %v468
          %vm1593 = vcmp.eq.s32.totalorder %v1545, %v468
          %vm1594 = vcmp.eq.s32.totalorder %v1541, %v469
          %vm1595 = vcmp.eq.s32.totalorder %v1545, %v469
          %vm1596 = vcmp.eq.s32.totalorder %v1541, %v470
          %vm1597 = vcmp.eq.s32.totalorder %v1545, %v470
          %vm1598 = vcmp.eq.s32.totalorder %v1541, %v471
          %vm1599 = vcmp.eq.s32.totalorder %v1545, %v471
          %vm1600 = vcmp.eq.s32.totalorder %v1541, %v472
          %vm1601 = vcmp.eq.s32.totalorder %v1545, %v472
          %vm1602 = vcmp.eq.s32.totalorder %v1541, %v473
          %vm1603 = vcmp.eq.s32.totalorder %v1545, %v473
          %vm1604 = vcmp.eq.s32.totalorder %v1541, %v474
          %vm1605 = vcmp.eq.s32.totalorder %v1545, %v474
          %vm1606 = vcmp.eq.s32.totalorder %v1541, %v475
          %vm1607 = vcmp.eq.s32.totalorder %v1545, %v475
          %vm1608 = vcmp.eq.s32.totalorder %v1541, %v476
          %vm1609 = vcmp.eq.s32.totalorder %v1545, %v476
          %v1611 = vlaneseq
          %v1612 = vshrl.u32 %v1611, 7
          %v1613 = vsub.s32 0, %v1612
          %v1614 = vrot.slane %v1537, %v1613
          %v1615 = vlaneseq
          %v1616 = vshrl.u32 %v1615, 7
          %v1617 = vsub.s32 1, %v1616
          %v1618 = vrot.slane %v1537, %v1617
          %v1621 = vsel %vm1546, %v1614, %v1470
          %v1622 = vsel %vm1547, %v1618, %v1471
          %v1623 = vsel %vm1548, %v1614, %v1472
          %v1624 = vsel %vm1549, %v1618, %v1473
          %v1625 = vsel %vm1550, %v1614, %v1474
          %v1626 = vsel %vm1551, %v1618, %v1475
          %v1627 = vsel %vm1552, %v1614, %v1476
          %v1628 = vsel %vm1553, %v1618, %v1477
          %v1629 = vsel %vm1554, %v1614, %v1478
          %v1630 = vsel %vm1555, %v1618, %v1479
          %v1631 = vsel %vm1556, %v1614, %v1480
          %v1632 = vsel %vm1557, %v1618, %v1481
          %v1633 = vsel %vm1558, %v1614, %v1482
          %v1634 = vsel %vm1559, %v1618, %v1483
          %v1635 = vsel %vm1560, %v1614, %v1484
          %v1636 = vsel %vm1561, %v1618, %v1485
          %v1637 = vsel %vm1562, %v1614, %v1486
          %v1638 = vsel %vm1563, %v1618, %v1487
          %v1639 = vsel %vm1564, %v1614, %v1488
          %v1640 = vsel %vm1565, %v1618, %v1489
          %v1641 = vsel %vm1566, %v1614, %v1490
          %v1642 = vsel %vm1567, %v1618, %v1491
          %v1643 = vsel %vm1568, %v1614, %v1492
          %v1644 = vsel %vm1569, %v1618, %v1493
          %v1645 = vsel %vm1570, %v1614, %v1494
          %v1646 = vsel %vm1571, %v1618, %v1495
          %v1647 = vsel %vm1572, %v1614, %v1496
          %v1648 = vsel %vm1573, %v1618, %v1497
          %v1649 = vsel %vm1574, %v1614, %v1498
          %v1650 = vsel %vm1575, %v1618, %v1499
          %v1651 = vsel %vm1576, %v1614, %v1500
          %v1652 = vsel %vm1577, %v1618, %v1501
          %v1653 = vsel %vm1578, %v1614, %v1502
          %v1654 = vsel %vm1579, %v1618, %v1503
          %v1655 = vsel %vm1580, %v1614, %v1504
          %v1656 = vsel %vm1581, %v1618, %v1505
          %v1657 = vsel %vm1582, %v1614, %v1506
          %v1658 = vsel %vm1583, %v1618, %v1507
          %v1659 = vsel %vm1584, %v1614, %v1508
          %v1660 = vsel %vm1585, %v1618, %v1509
          %v1661 = vsel %vm1586, %v1614, %v1510
          %v1662 = vsel %vm1587, %v1618, %v1511
          %v1663 = vsel %vm1588, %v1614, %v1512
          %v1664 = vsel %vm1589, %v1618, %v1513
          %v1665 = vsel %vm1590, %v1614, %v1514
          %v1666 = vsel %vm1591, %v1618, %v1515
          %v1667 = vsel %vm1592, %v1614, %v1516
          %v1668 = vsel %vm1593, %v1618, %v1517
          %v1669 = vsel %vm1594, %v1614, %v1518
          %v1670 = vsel %vm1595, %v1618, %v1519
          %v1671 = vsel %vm1596, %v1614, %v1520
          %v1672 = vsel %vm1597, %v1618, %v1521
          %v1673 = vsel %vm1598, %v1614, %v1522
          %v1674 = vsel %vm1599, %v1618, %v1523
          %v1675 = vsel %vm1600, %v1614, %v1524
          %v1676 = vsel %vm1601, %v1618, %v1525
          %v1677 = vsel %vm1602, %v1614, %v1526
          %v1678 = vsel %vm1603, %v1618, %v1527
          %v1679 = vsel %vm1604, %v1614, %v1528
          %v1680 = vsel %vm1605, %v1618, %v1529
          %v1681 = vsel %vm1606, %v1614, %v1530
          %v1682 = vsel %vm1607, %v1618, %v1531
          %v1683 = vsel %vm1608, %v1614, %v1532
          %v1684 = vsel %vm1609, %v1618, %v1533
          %vm1685 = vmand %vm370, %vm425
          %v1686 = vadd.s32 %v432, %v367
          %v1687 = vsel %vm1685, %v1686, 4294967295
          %v1688 = vmul.f32 %v375, %v430
          %v1689 = vlaneseq
          %v1690 = vshrl.u32 %v1689, 7
          %v1691 = vsub.s32 0, %v1690
          %v1692 = vrot.slane %v1687, %v1691
          %v1693 = vlaneseq
          %v1694 = vshrl.u32 %v1693, 7
          %v1695 = vsub.s32 1, %v1694
          %v1696 = vrot.slane %v1687, %v1695
          %vm1697 = vcmp.eq.s32.totalorder %v1692, %v445
          %vm1698 = vcmp.eq.s32.totalorder %v1696, %v445
          %vm1699 = vcmp.eq.s32.totalorder %v1692, %v446
          %vm1700 = vcmp.eq.s32.totalorder %v1696, %v446
          %vm1701 = vcmp.eq.s32.totalorder %v1692, %v447
          %vm1702 = vcmp.eq.s32.totalorder %v1696, %v447
          %vm1703 = vcmp.eq.s32.totalorder %v1692, %v448
          %vm1704 = vcmp.eq.s32.totalorder %v1696, %v448
          %vm1705 = vcmp.eq.s32.totalorder %v1692, %v449
          %vm1706 = vcmp.eq.s32.totalorder %v1696, %v449
          %vm1707 = vcmp.eq.s32.totalorder %v1692, %v450
          %vm1708 = vcmp.eq.s32.totalorder %v1696, %v450
          %vm1709 = vcmp.eq.s32.totalorder %v1692, %v451
          %vm1710 = vcmp.eq.s32.totalorder %v1696, %v451
          %vm1711 = vcmp.eq.s32.totalorder %v1692, %v452
          %vm1712 = vcmp.eq.s32.totalorder %v1696, %v452
          %vm1713 = vcmp.eq.s32.totalorder %v1692, %v453
          %vm1714 = vcmp.eq.s32.totalorder %v1696, %v453
          %vm1715 = vcmp.eq.s32.totalorder %v1692, %v454
          %vm1716 = vcmp.eq.s32.totalorder %v1696, %v454
          %vm1717 = vcmp.eq.s32.totalorder %v1692, %v455
          %vm1718 = vcmp.eq.s32.totalorder %v1696, %v455
          %vm1719 = vcmp.eq.s32.totalorder %v1692, %v456
          %vm1720 = vcmp.eq.s32.totalorder %v1696, %v456
          %vm1721 = vcmp.eq.s32.totalorder %v1692, %v457
          %vm1722 = vcmp.eq.s32.totalorder %v1696, %v457
          %vm1723 = vcmp.eq.s32.totalorder %v1692, %v458
          %vm1724 = vcmp.eq.s32.totalorder %v1696, %v458
          %vm1725 = vcmp.eq.s32.totalorder %v1692, %v459
          %vm1726 = vcmp.eq.s32.totalorder %v1696, %v459
          %vm1727 = vcmp.eq.s32.totalorder %v1692, %v460
          %vm1728 = vcmp.eq.s32.totalorder %v1696, %v460
          %vm1729 = vcmp.eq.s32.totalorder %v1692, %v461
          %vm1730 = vcmp.eq.s32.totalorder %v1696, %v461
          %vm1731 = vcmp.eq.s32.totalorder %v1692, %v462
          %vm1732 = vcmp.eq.s32.totalorder %v1696, %v462
          %vm1733 = vcmp.eq.s32.totalorder %v1692, %v463
          %vm1734 = vcmp.eq.s32.totalorder %v1696, %v463
          %vm1735 = vcmp.eq.s32.totalorder %v1692, %v464
          %vm1736 = vcmp.eq.s32.totalorder %v1696, %v464
          %vm1737 = vcmp.eq.s32.totalorder %v1692, %v465
          %vm1738 = vcmp.eq.s32.totalorder %v1696, %v465
          %vm1739 = vcmp.eq.s32.totalorder %v1692, %v466
          %vm1740 = vcmp.eq.s32.totalorder %v1696, %v466
          %vm1741 = vcmp.eq.s32.totalorder %v1692, %v467
          %vm1742 = vcmp.eq.s32.totalorder %v1696, %v467
          %vm1743 = vcmp.eq.s32.totalorder %v1692, %v468
          %vm1744 = vcmp.eq.s32.totalorder %v1696, %v468
          %vm1745 = vcmp.eq.s32.totalorder %v1692, %v469
          %vm1746 = vcmp.eq.s32.totalorder %v1696, %v469
          %vm1747 = vcmp.eq.s32.totalorder %v1692, %v470
          %vm1748 = vcmp.eq.s32.totalorder %v1696, %v470
          %vm1749 = vcmp.eq.s32.totalorder %v1692, %v471
          %vm1750 = vcmp.eq.s32.totalorder %v1696, %v471
          %vm1751 = vcmp.eq.s32.totalorder %v1692, %v472
          %vm1752 = vcmp.eq.s32.totalorder %v1696, %v472
          %vm1753 = vcmp.eq.s32.totalorder %v1692, %v473
          %vm1754 = vcmp.eq.s32.totalorder %v1696, %v473
          %vm1755 = vcmp.eq.s32.totalorder %v1692, %v474
          %vm1756 = vcmp.eq.s32.totalorder %v1696, %v474
          %vm1757 = vcmp.eq.s32.totalorder %v1692, %v475
          %vm1758 = vcmp.eq.s32.totalorder %v1696, %v475
          %vm1759 = vcmp.eq.s32.totalorder %v1692, %v476
          %vm1760 = vcmp.eq.s32.totalorder %v1696, %v476
          %v1762 = vlaneseq
          %v1763 = vshrl.u32 %v1762, 7
          %v1764 = vsub.s32 0, %v1763
          %v1765 = vrot.slane %v1688, %v1764
          %v1766 = vlaneseq
          %v1767 = vshrl.u32 %v1766, 7
          %v1768 = vsub.s32 1, %v1767
          %v1769 = vrot.slane %v1688, %v1768
          %v1772 = vsel %vm1697, %v1765, %v1621
          %v1773 = vsel %vm1698, %v1769, %v1622
          %v1774 = vsel %vm1699, %v1765, %v1623
          %v1775 = vsel %vm1700, %v1769, %v1624
          %v1776 = vsel %vm1701, %v1765, %v1625
          %v1777 = vsel %vm1702, %v1769, %v1626
          %v1778 = vsel %vm1703, %v1765, %v1627
          %v1779 = vsel %vm1704, %v1769, %v1628
          %v1780 = vsel %vm1705, %v1765, %v1629
          %v1781 = vsel %vm1706, %v1769, %v1630
          %v1782 = vsel %vm1707, %v1765, %v1631
          %v1783 = vsel %vm1708, %v1769, %v1632
          %v1784 = vsel %vm1709, %v1765, %v1633
          %v1785 = vsel %vm1710, %v1769, %v1634
          %v1786 = vsel %vm1711, %v1765, %v1635
          %v1787 = vsel %vm1712, %v1769, %v1636
          %v1788 = vsel %vm1713, %v1765, %v1637
          %v1789 = vsel %vm1714, %v1769, %v1638
          %v1790 = vsel %vm1715, %v1765, %v1639
          %v1791 = vsel %vm1716, %v1769, %v1640
          %v1792 = vsel %vm1717, %v1765, %v1641
          %v1793 = vsel %vm1718, %v1769, %v1642
          %v1794 = vsel %vm1719, %v1765, %v1643
          %v1795 = vsel %vm1720, %v1769, %v1644
          %v1796 = vsel %vm1721, %v1765, %v1645
          %v1797 = vsel %vm1722, %v1769, %v1646
          %v1798 = vsel %vm1723, %v1765, %v1647
          %v1799 = vsel %vm1724, %v1769, %v1648
          %v1800 = vsel %vm1725, %v1765, %v1649
          %v1801 = vsel %vm1726, %v1769, %v1650
          %v1802 = vsel %vm1727, %v1765, %v1651
          %v1803 = vsel %vm1728, %v1769, %v1652
          %v1804 = vsel %vm1729, %v1765, %v1653
          %v1805 = vsel %vm1730, %v1769, %v1654
          %v1806 = vsel %vm1731, %v1765, %v1655
          %v1807 = vsel %vm1732, %v1769, %v1656
          %v1808 = vsel %vm1733, %v1765, %v1657
          %v1809 = vsel %vm1734, %v1769, %v1658
          %v1810 = vsel %vm1735, %v1765, %v1659
          %v1811 = vsel %vm1736, %v1769, %v1660
          %v1812 = vsel %vm1737, %v1765, %v1661
          %v1813 = vsel %vm1738, %v1769, %v1662
          %v1814 = vsel %vm1739, %v1765, %v1663
          %v1815 = vsel %vm1740, %v1769, %v1664
          %v1816 = vsel %vm1741, %v1765, %v1665
          %v1817 = vsel %vm1742, %v1769, %v1666
          %v1818 = vsel %vm1743, %v1765, %v1667
          %v1819 = vsel %vm1744, %v1769, %v1668
          %v1820 = vsel %vm1745, %v1765, %v1669
          %v1821 = vsel %vm1746, %v1769, %v1670
          %v1822 = vsel %vm1747, %v1765, %v1671
          %v1823 = vsel %vm1748, %v1769, %v1672
          %v1824 = vsel %vm1749, %v1765, %v1673
          %v1825 = vsel %vm1750, %v1769, %v1674
          %v1826 = vsel %vm1751, %v1765, %v1675
          %v1827 = vsel %vm1752, %v1769, %v1676
          %v1828 = vsel %vm1753, %v1765, %v1677
          %v1829 = vsel %vm1754, %v1769, %v1678
          %v1830 = vsel %vm1755, %v1765, %v1679
          %v1831 = vsel %vm1756, %v1769, %v1680
          %v1832 = vsel %vm1757, %v1765, %v1681
          %v1833 = vsel %vm1758, %v1769, %v1682
          %v1834 = vsel %vm1759, %v1765, %v1683
          %v1835 = vsel %vm1760, %v1769, %v1684
          %vm1836 = vmand %vm378, %vm425
          %v1837 = vadd.s32 %v432, %v364
          %v1838 = vsel %vm1836, %v1837, 4294967295
          %v1839 = vmul.f32 %v382, %v430
          %v1840 = vlaneseq
          %v1841 = vshrl.u32 %v1840, 7
          %v1842 = vsub.s32 0, %v1841
          %v1843 = vrot.slane %v1838, %v1842
          %v1844 = vlaneseq
          %v1845 = vshrl.u32 %v1844, 7
          %v1846 = vsub.s32 1, %v1845
          %v1847 = vrot.slane %v1838, %v1846
          %vm1848 = vcmp.eq.s32.totalorder %v1843, %v445
          %vm1849 = vcmp.eq.s32.totalorder %v1847, %v445
          %vm1850 = vcmp.eq.s32.totalorder %v1843, %v446
          %vm1851 = vcmp.eq.s32.totalorder %v1847, %v446
          %vm1852 = vcmp.eq.s32.totalorder %v1843, %v447
          %vm1853 = vcmp.eq.s32.totalorder %v1847, %v447
          %vm1854 = vcmp.eq.s32.totalorder %v1843, %v448
          %vm1855 = vcmp.eq.s32.totalorder %v1847, %v448
          %vm1856 = vcmp.eq.s32.totalorder %v1843, %v449
          %vm1857 = vcmp.eq.s32.totalorder %v1847, %v449
          %vm1858 = vcmp.eq.s32.totalorder %v1843, %v450
          %vm1859 = vcmp.eq.s32.totalorder %v1847, %v450
          %vm1860 = vcmp.eq.s32.totalorder %v1843, %v451
          %vm1861 = vcmp.eq.s32.totalorder %v1847, %v451
          %vm1862 = vcmp.eq.s32.totalorder %v1843, %v452
          %vm1863 = vcmp.eq.s32.totalorder %v1847, %v452
          %vm1864 = vcmp.eq.s32.totalorder %v1843, %v453
          %vm1865 = vcmp.eq.s32.totalorder %v1847, %v453
          %vm1866 = vcmp.eq.s32.totalorder %v1843, %v454
          %vm1867 = vcmp.eq.s32.totalorder %v1847, %v454
          %vm1868 = vcmp.eq.s32.totalorder %v1843, %v455
          %vm1869 = vcmp.eq.s32.totalorder %v1847, %v455
          %vm1870 = vcmp.eq.s32.totalorder %v1843, %v456
          %vm1871 = vcmp.eq.s32.totalorder %v1847, %v456
          %vm1872 = vcmp.eq.s32.totalorder %v1843, %v457
          %vm1873 = vcmp.eq.s32.totalorder %v1847, %v457
          %vm1874 = vcmp.eq.s32.totalorder %v1843, %v458
          %vm1875 = vcmp.eq.s32.totalorder %v1847, %v458
          %vm1876 = vcmp.eq.s32.totalorder %v1843, %v459
          %vm1877 = vcmp.eq.s32.totalorder %v1847, %v459
          %vm1878 = vcmp.eq.s32.totalorder %v1843, %v460
          %vm1879 = vcmp.eq.s32.totalorder %v1847, %v460
          %vm1880 = vcmp.eq.s32.totalorder %v1843, %v461
          %vm1881 = vcmp.eq.s32.totalorder %v1847, %v461
          %vm1882 = vcmp.eq.s32.totalorder %v1843, %v462
          %vm1883 = vcmp.eq.s32.totalorder %v1847, %v462
          %vm1884 = vcmp.eq.s32.totalorder %v1843, %v463
          %vm1885 = vcmp.eq.s32.totalorder %v1847, %v463
          %vm1886 = vcmp.eq.s32.totalorder %v1843, %v464
          %vm1887 = vcmp.eq.s32.totalorder %v1847, %v464
          %vm1888 = vcmp.eq.s32.totalorder %v1843, %v465
          %vm1889 = vcmp.eq.s32.totalorder %v1847, %v465
          %vm1890 = vcmp.eq.s32.totalorder %v1843, %v466
          %vm1891 = vcmp.eq.s32.totalorder %v1847, %v466
          %vm1892 = vcmp.eq.s32.totalorder %v1843, %v467
          %vm1893 = vcmp.eq.s32.totalorder %v1847, %v467
          %vm1894 = vcmp.eq.s32.totalorder %v1843, %v468
          %vm1895 = vcmp.eq.s32.totalorder %v1847, %v468
          %vm1896 = vcmp.eq.s32.totalorder %v1843, %v469
          %vm1897 = vcmp.eq.s32.totalorder %v1847, %v469
          %vm1898 = vcmp.eq.s32.totalorder %v1843, %v470
          %vm1899 = vcmp.eq.s32.totalorder %v1847, %v470
          %vm1900 = vcmp.eq.s32.totalorder %v1843, %v471
          %vm1901 = vcmp.eq.s32.totalorder %v1847, %v471
          %vm1902 = vcmp.eq.s32.totalorder %v1843, %v472
          %vm1903 = vcmp.eq.s32.totalorder %v1847, %v472
          %vm1904 = vcmp.eq.s32.totalorder %v1843, %v473
          %vm1905 = vcmp.eq.s32.totalorder %v1847, %v473
          %vm1906 = vcmp.eq.s32.totalorder %v1843, %v474
          %vm1907 = vcmp.eq.s32.totalorder %v1847, %v474
          %vm1908 = vcmp.eq.s32.totalorder %v1843, %v475
          %vm1909 = vcmp.eq.s32.totalorder %v1847, %v475
          %vm1910 = vcmp.eq.s32.totalorder %v1843, %v476
          %vm1911 = vcmp.eq.s32.totalorder %v1847, %v476
          %v1913 = vlaneseq
          %v1914 = vshrl.u32 %v1913, 7
          %v1915 = vsub.s32 0, %v1914
          %v1916 = vrot.slane %v1839, %v1915
          %v1917 = vlaneseq
          %v1918 = vshrl.u32 %v1917, 7
          %v1919 = vsub.s32 1, %v1918
          %v1920 = vrot.slane %v1839, %v1919
          %v1923 = vsel %vm1848, %v1916, %v1772
          %v1924 = vsel %vm1849, %v1920, %v1773
          %v1925 = vsel %vm1850, %v1916, %v1774
          %v1926 = vsel %vm1851, %v1920, %v1775
          %v1927 = vsel %vm1852, %v1916, %v1776
          %v1928 = vsel %vm1853, %v1920, %v1777
          %v1929 = vsel %vm1854, %v1916, %v1778
          %v1930 = vsel %vm1855, %v1920, %v1779
          %v1931 = vsel %vm1856, %v1916, %v1780
          %v1932 = vsel %vm1857, %v1920, %v1781
          %v1933 = vsel %vm1858, %v1916, %v1782
          %v1934 = vsel %vm1859, %v1920, %v1783
          %v1935 = vsel %vm1860, %v1916, %v1784
          %v1936 = vsel %vm1861, %v1920, %v1785
          %v1937 = vsel %vm1862, %v1916, %v1786
          %v1938 = vsel %vm1863, %v1920, %v1787
          %v1939 = vsel %vm1864, %v1916, %v1788
          %v1940 = vsel %vm1865, %v1920, %v1789
          %v1941 = vsel %vm1866, %v1916, %v1790
          %v1942 = vsel %vm1867, %v1920, %v1791
          %v1943 = vsel %vm1868, %v1916, %v1792
          %v1944 = vsel %vm1869, %v1920, %v1793
          %v1945 = vsel %vm1870, %v1916, %v1794
          %v1946 = vsel %vm1871, %v1920, %v1795
          %v1947 = vsel %vm1872, %v1916, %v1796
          %v1948 = vsel %vm1873, %v1920, %v1797
          %v1949 = vsel %vm1874, %v1916, %v1798
          %v1950 = vsel %vm1875, %v1920, %v1799
          %v1951 = vsel %vm1876, %v1916, %v1800
          %v1952 = vsel %vm1877, %v1920, %v1801
          %v1953 = vsel %vm1878, %v1916, %v1802
          %v1954 = vsel %vm1879, %v1920, %v1803
          %v1955 = vsel %vm1880, %v1916, %v1804
          %v1956 = vsel %vm1881, %v1920, %v1805
          %v1957 = vsel %vm1882, %v1916, %v1806
          %v1958 = vsel %vm1883, %v1920, %v1807
          %v1959 = vsel %vm1884, %v1916, %v1808
          %v1960 = vsel %vm1885, %v1920, %v1809
          %v1961 = vsel %vm1886, %v1916, %v1810
          %v1962 = vsel %vm1887, %v1920, %v1811
          %v1963 = vsel %vm1888, %v1916, %v1812
          %v1964 = vsel %vm1889, %v1920, %v1813
          %v1965 = vsel %vm1890, %v1916, %v1814
          %v1966 = vsel %vm1891, %v1920, %v1815
          %v1967 = vsel %vm1892, %v1916, %v1816
          %v1968 = vsel %vm1893, %v1920, %v1817
          %v1969 = vsel %vm1894, %v1916, %v1818
          %v1970 = vsel %vm1895, %v1920, %v1819
          %v1971 = vsel %vm1896, %v1916, %v1820
          %v1972 = vsel %vm1897, %v1920, %v1821
          %v1973 = vsel %vm1898, %v1916, %v1822
          %v1974 = vsel %vm1899, %v1920, %v1823
          %v1975 = vsel %vm1900, %v1916, %v1824
          %v1976 = vsel %vm1901, %v1920, %v1825
          %v1977 = vsel %vm1902, %v1916, %v1826
          %v1978 = vsel %vm1903, %v1920, %v1827
          %v1979 = vsel %vm1904, %v1916, %v1828
          %v1980 = vsel %vm1905, %v1920, %v1829
          %v1981 = vsel %vm1906, %v1916, %v1830
          %v1982 = vsel %vm1907, %v1920, %v1831
          %v1983 = vsel %vm1908, %v1916, %v1832
          %v1984 = vsel %vm1909, %v1920, %v1833
          %v1985 = vsel %vm1910, %v1916, %v1834
          %v1986 = vsel %vm1911, %v1920, %v1835
          %vm1987 = vmand %vm386, %vm425
          %v1988 = vadd.s32 %v432, %v383
          %v1989 = vsel %vm1987, %v1988, 4294967295
          %v1990 = vmul.f32 %v391, %v430
          %v1991 = vlaneseq
          %v1992 = vshrl.u32 %v1991, 7
          %v1993 = vsub.s32 0, %v1992
          %v1994 = vrot.slane %v1989, %v1993
          %v1995 = vlaneseq
          %v1996 = vshrl.u32 %v1995, 7
          %v1997 = vsub.s32 1, %v1996
          %v1998 = vrot.slane %v1989, %v1997
          %vm1999 = vcmp.eq.s32.totalorder %v1994, %v445
          %vm2000 = vcmp.eq.s32.totalorder %v1998, %v445
          %vm2001 = vcmp.eq.s32.totalorder %v1994, %v446
          %vm2002 = vcmp.eq.s32.totalorder %v1998, %v446
          %vm2003 = vcmp.eq.s32.totalorder %v1994, %v447
          %vm2004 = vcmp.eq.s32.totalorder %v1998, %v447
          %vm2005 = vcmp.eq.s32.totalorder %v1994, %v448
          %vm2006 = vcmp.eq.s32.totalorder %v1998, %v448
          %vm2007 = vcmp.eq.s32.totalorder %v1994, %v449
          %vm2008 = vcmp.eq.s32.totalorder %v1998, %v449
          %vm2009 = vcmp.eq.s32.totalorder %v1994, %v450
          %vm2010 = vcmp.eq.s32.totalorder %v1998, %v450
          %vm2011 = vcmp.eq.s32.totalorder %v1994, %v451
          %vm2012 = vcmp.eq.s32.totalorder %v1998, %v451
          %vm2013 = vcmp.eq.s32.totalorder %v1994, %v452
          %vm2014 = vcmp.eq.s32.totalorder %v1998, %v452
          %vm2015 = vcmp.eq.s32.totalorder %v1994, %v453
          %vm2016 = vcmp.eq.s32.totalorder %v1998, %v453
          %vm2017 = vcmp.eq.s32.totalorder %v1994, %v454
          %vm2018 = vcmp.eq.s32.totalorder %v1998, %v454
          %vm2019 = vcmp.eq.s32.totalorder %v1994, %v455
          %vm2020 = vcmp.eq.s32.totalorder %v1998, %v455
          %vm2021 = vcmp.eq.s32.totalorder %v1994, %v456
          %vm2022 = vcmp.eq.s32.totalorder %v1998, %v456
          %vm2023 = vcmp.eq.s32.totalorder %v1994, %v457
          %vm2024 = vcmp.eq.s32.totalorder %v1998, %v457
          %vm2025 = vcmp.eq.s32.totalorder %v1994, %v458
          %vm2026 = vcmp.eq.s32.totalorder %v1998, %v458
          %vm2027 = vcmp.eq.s32.totalorder %v1994, %v459
          %vm2028 = vcmp.eq.s32.totalorder %v1998, %v459
          %vm2029 = vcmp.eq.s32.totalorder %v1994, %v460
          %vm2030 = vcmp.eq.s32.totalorder %v1998, %v460
          %vm2031 = vcmp.eq.s32.totalorder %v1994, %v461
          %vm2032 = vcmp.eq.s32.totalorder %v1998, %v461
          %vm2033 = vcmp.eq.s32.totalorder %v1994, %v462
          %vm2034 = vcmp.eq.s32.totalorder %v1998, %v462
          %vm2035 = vcmp.eq.s32.totalorder %v1994, %v463
          %vm2036 = vcmp.eq.s32.totalorder %v1998, %v463
          %vm2037 = vcmp.eq.s32.totalorder %v1994, %v464
          %vm2038 = vcmp.eq.s32.totalorder %v1998, %v464
          %vm2039 = vcmp.eq.s32.totalorder %v1994, %v465
          %vm2040 = vcmp.eq.s32.totalorder %v1998, %v465
          %vm2041 = vcmp.eq.s32.totalorder %v1994, %v466
          %vm2042 = vcmp.eq.s32.totalorder %v1998, %v466
          %vm2043 = vcmp.eq.s32.totalorder %v1994, %v467
          %vm2044 = vcmp.eq.s32.totalorder %v1998, %v467
          %vm2045 = vcmp.eq.s32.totalorder %v1994, %v468
          %vm2046 = vcmp.eq.s32.totalorder %v1998, %v468
          %vm2047 = vcmp.eq.s32.totalorder %v1994, %v469
          %vm2048 = vcmp.eq.s32.totalorder %v1998, %v469
          %vm2049 = vcmp.eq.s32.totalorder %v1994, %v470
          %vm2050 = vcmp.eq.s32.totalorder %v1998, %v470
          %vm2051 = vcmp.eq.s32.totalorder %v1994, %v471
          %vm2052 = vcmp.eq.s32.totalorder %v1998, %v471
          %vm2053 = vcmp.eq.s32.totalorder %v1994, %v472
          %vm2054 = vcmp.eq.s32.totalorder %v1998, %v472
          %vm2055 = vcmp.eq.s32.totalorder %v1994, %v473
          %vm2056 = vcmp.eq.s32.totalorder %v1998, %v473
          %vm2057 = vcmp.eq.s32.totalorder %v1994, %v474
          %vm2058 = vcmp.eq.s32.totalorder %v1998, %v474
          %vm2059 = vcmp.eq.s32.totalorder %v1994, %v475
          %vm2060 = vcmp.eq.s32.totalorder %v1998, %v475
          %vm2061 = vcmp.eq.s32.totalorder %v1994, %v476
          %vm2062 = vcmp.eq.s32.totalorder %v1998, %v476
          %v2064 = vlaneseq
          %v2065 = vshrl.u32 %v2064, 7
          %v2066 = vsub.s32 0, %v2065
          %v2067 = vrot.slane %v1990, %v2066
          %v2068 = vlaneseq
          %v2069 = vshrl.u32 %v2068, 7
          %v2070 = vsub.s32 1, %v2069
          %v2071 = vrot.slane %v1990, %v2070
          %v2074 = vsel %vm1999, %v2067, %v1923
          %v2075 = vsel %vm2000, %v2071, %v1924
          %v2076 = vsel %vm2001, %v2067, %v1925
          %v2077 = vsel %vm2002, %v2071, %v1926
          %v2078 = vsel %vm2003, %v2067, %v1927
          %v2079 = vsel %vm2004, %v2071, %v1928
          %v2080 = vsel %vm2005, %v2067, %v1929
          %v2081 = vsel %vm2006, %v2071, %v1930
          %v2082 = vsel %vm2007, %v2067, %v1931
          %v2083 = vsel %vm2008, %v2071, %v1932
          %v2084 = vsel %vm2009, %v2067, %v1933
          %v2085 = vsel %vm2010, %v2071, %v1934
          %v2086 = vsel %vm2011, %v2067, %v1935
          %v2087 = vsel %vm2012, %v2071, %v1936
          %v2088 = vsel %vm2013, %v2067, %v1937
          %v2089 = vsel %vm2014, %v2071, %v1938
          %v2090 = vsel %vm2015, %v2067, %v1939
          %v2091 = vsel %vm2016, %v2071, %v1940
          %v2092 = vsel %vm2017, %v2067, %v1941
          %v2093 = vsel %vm2018, %v2071, %v1942
          %v2094 = vsel %vm2019, %v2067, %v1943
          %v2095 = vsel %vm2020, %v2071, %v1944
          %v2096 = vsel %vm2021, %v2067, %v1945
          %v2097 = vsel %vm2022, %v2071, %v1946
          %v2098 = vsel %vm2023, %v2067, %v1947
          %v2099 = vsel %vm2024, %v2071, %v1948
          %v2100 = vsel %vm2025, %v2067, %v1949
          %v2101 = vsel %vm2026, %v2071, %v1950
          %v2102 = vsel %vm2027, %v2067, %v1951
          %v2103 = vsel %vm2028, %v2071, %v1952
          %v2104 = vsel %vm2029, %v2067, %v1953
          %v2105 = vsel %vm2030, %v2071, %v1954
          %v2106 = vsel %vm2031, %v2067, %v1955
          %v2107 = vsel %vm2032, %v2071, %v1956
          %v2108 = vsel %vm2033, %v2067, %v1957
          %v2109 = vsel %vm2034, %v2071, %v1958
          %v2110 = vsel %vm2035, %v2067, %v1959
          %v2111 = vsel %vm2036, %v2071, %v1960
          %v2112 = vsel %vm2037, %v2067, %v1961
          %v2113 = vsel %vm2038, %v2071, %v1962
          %v2114 = vsel %vm2039, %v2067, %v1963
          %v2115 = vsel %vm2040, %v2071, %v1964
          %v2116 = vsel %vm2041, %v2067, %v1965
          %v2117 = vsel %vm2042, %v2071, %v1966
          %v2118 = vsel %vm2043, %v2067, %v1967
          %v2119 = vsel %vm2044, %v2071, %v1968
          %v2120 = vsel %vm2045, %v2067, %v1969
          %v2121 = vsel %vm2046, %v2071, %v1970
          %v2122 = vsel %vm2047, %v2067, %v1971
          %v2123 = vsel %vm2048, %v2071, %v1972
          %v2124 = vsel %vm2049, %v2067, %v1973
          %v2125 = vsel %vm2050, %v2071, %v1974
          %v2126 = vsel %vm2051, %v2067, %v1975
          %v2127 = vsel %vm2052, %v2071, %v1976
          %v2128 = vsel %vm2053, %v2067, %v1977
          %v2129 = vsel %vm2054, %v2071, %v1978
          %v2130 = vsel %vm2055, %v2067, %v1979
          %v2131 = vsel %vm2056, %v2071, %v1980
          %v2132 = vsel %vm2057, %v2067, %v1981
          %v2133 = vsel %vm2058, %v2071, %v1982
          %v2134 = vsel %vm2059, %v2067, %v1983
          %v2135 = vsel %vm2060, %v2071, %v1984
          %v2136 = vsel %vm2061, %v2067, %v1985
          %v2137 = vsel %vm2062, %v2071, %v1986
          %vm2138 = vmand %vm395, %vm425
          %v2139 = vadd.s32 %v432, %v392
          %v2140 = vsel %vm2138, %v2139, 4294967295
          %v2141 = vmul.f32 %v400, %v430
          %v2142 = vlaneseq
          %v2143 = vshrl.u32 %v2142, 7
          %v2144 = vsub.s32 0, %v2143
          %v2145 = vrot.slane %v2140, %v2144
          %v2146 = vlaneseq
          %v2147 = vshrl.u32 %v2146, 7
          %v2148 = vsub.s32 1, %v2147
          %v2149 = vrot.slane %v2140, %v2148
          %vm2150 = vcmp.eq.s32.totalorder %v2145, %v445
          %vm2151 = vcmp.eq.s32.totalorder %v2149, %v445
          %vm2152 = vcmp.eq.s32.totalorder %v2145, %v446
          %vm2153 = vcmp.eq.s32.totalorder %v2149, %v446
          %vm2154 = vcmp.eq.s32.totalorder %v2145, %v447
          %vm2155 = vcmp.eq.s32.totalorder %v2149, %v447
          %vm2156 = vcmp.eq.s32.totalorder %v2145, %v448
          %vm2157 = vcmp.eq.s32.totalorder %v2149, %v448
          %vm2158 = vcmp.eq.s32.totalorder %v2145, %v449
          %vm2159 = vcmp.eq.s32.totalorder %v2149, %v449
          %vm2160 = vcmp.eq.s32.totalorder %v2145, %v450
          %vm2161 = vcmp.eq.s32.totalorder %v2149, %v450
          %vm2162 = vcmp.eq.s32.totalorder %v2145, %v451
          %vm2163 = vcmp.eq.s32.totalorder %v2149, %v451
          %vm2164 = vcmp.eq.s32.totalorder %v2145, %v452
          %vm2165 = vcmp.eq.s32.totalorder %v2149, %v452
          %vm2166 = vcmp.eq.s32.totalorder %v2145, %v453
          %vm2167 = vcmp.eq.s32.totalorder %v2149, %v453
          %vm2168 = vcmp.eq.s32.totalorder %v2145, %v454
          %vm2169 = vcmp.eq.s32.totalorder %v2149, %v454
          %vm2170 = vcmp.eq.s32.totalorder %v2145, %v455
          %vm2171 = vcmp.eq.s32.totalorder %v2149, %v455
          %vm2172 = vcmp.eq.s32.totalorder %v2145, %v456
          %vm2173 = vcmp.eq.s32.totalorder %v2149, %v456
          %vm2174 = vcmp.eq.s32.totalorder %v2145, %v457
          %vm2175 = vcmp.eq.s32.totalorder %v2149, %v457
          %vm2176 = vcmp.eq.s32.totalorder %v2145, %v458
          %vm2177 = vcmp.eq.s32.totalorder %v2149, %v458
          %vm2178 = vcmp.eq.s32.totalorder %v2145, %v459
          %vm2179 = vcmp.eq.s32.totalorder %v2149, %v459
          %vm2180 = vcmp.eq.s32.totalorder %v2145, %v460
          %vm2181 = vcmp.eq.s32.totalorder %v2149, %v460
          %vm2182 = vcmp.eq.s32.totalorder %v2145, %v461
          %vm2183 = vcmp.eq.s32.totalorder %v2149, %v461
          %vm2184 = vcmp.eq.s32.totalorder %v2145, %v462
          %vm2185 = vcmp.eq.s32.totalorder %v2149, %v462
          %vm2186 = vcmp.eq.s32.totalorder %v2145, %v463
          %vm2187 = vcmp.eq.s32.totalorder %v2149, %v463
          %vm2188 = vcmp.eq.s32.totalorder %v2145, %v464
          %vm2189 = vcmp.eq.s32.totalorder %v2149, %v464
          %vm2190 = vcmp.eq.s32.totalorder %v2145, %v465
          %vm2191 = vcmp.eq.s32.totalorder %v2149, %v465
          %vm2192 = vcmp.eq.s32.totalorder %v2145, %v466
          %vm2193 = vcmp.eq.s32.totalorder %v2149, %v466
          %vm2194 = vcmp.eq.s32.totalorder %v2145, %v467
          %vm2195 = vcmp.eq.s32.totalorder %v2149, %v467
          %vm2196 = vcmp.eq.s32.totalorder %v2145, %v468
          %vm2197 = vcmp.eq.s32.totalorder %v2149, %v468
          %vm2198 = vcmp.eq.s32.totalorder %v2145, %v469
          %vm2199 = vcmp.eq.s32.totalorder %v2149, %v469
          %vm2200 = vcmp.eq.s32.totalorder %v2145, %v470
          %vm2201 = vcmp.eq.s32.totalorder %v2149, %v470
          %vm2202 = vcmp.eq.s32.totalorder %v2145, %v471
          %vm2203 = vcmp.eq.s32.totalorder %v2149, %v471
          %vm2204 = vcmp.eq.s32.totalorder %v2145, %v472
          %vm2205 = vcmp.eq.s32.totalorder %v2149, %v472
          %vm2206 = vcmp.eq.s32.totalorder %v2145, %v473
          %vm2207 = vcmp.eq.s32.totalorder %v2149, %v473
          %vm2208 = vcmp.eq.s32.totalorder %v2145, %v474
          %vm2209 = vcmp.eq.s32.totalorder %v2149, %v474
          %vm2210 = vcmp.eq.s32.totalorder %v2145, %v475
          %vm2211 = vcmp.eq.s32.totalorder %v2149, %v475
          %vm2212 = vcmp.eq.s32.totalorder %v2145, %v476
          %vm2213 = vcmp.eq.s32.totalorder %v2149, %v476
          %v2215 = vlaneseq
          %v2216 = vshrl.u32 %v2215, 7
          %v2217 = vsub.s32 0, %v2216
          %v2218 = vrot.slane %v2141, %v2217
          %v2219 = vlaneseq
          %v2220 = vshrl.u32 %v2219, 7
          %v2221 = vsub.s32 1, %v2220
          %v2222 = vrot.slane %v2141, %v2221
          %v2225 = vsel %vm2150, %v2218, %v2074
          %v2226 = vsel %vm2151, %v2222, %v2075
          %v2227 = vsel %vm2152, %v2218, %v2076
          %v2228 = vsel %vm2153, %v2222, %v2077
          %v2229 = vsel %vm2154, %v2218, %v2078
          %v2230 = vsel %vm2155, %v2222, %v2079
          %v2231 = vsel %vm2156, %v2218, %v2080
          %v2232 = vsel %vm2157, %v2222, %v2081
          %v2233 = vsel %vm2158, %v2218, %v2082
          %v2234 = vsel %vm2159, %v2222, %v2083
          %v2235 = vsel %vm2160, %v2218, %v2084
          %v2236 = vsel %vm2161, %v2222, %v2085
          %v2237 = vsel %vm2162, %v2218, %v2086
          %v2238 = vsel %vm2163, %v2222, %v2087
          %v2239 = vsel %vm2164, %v2218, %v2088
          %v2240 = vsel %vm2165, %v2222, %v2089
          %v2241 = vsel %vm2166, %v2218, %v2090
          %v2242 = vsel %vm2167, %v2222, %v2091
          %v2243 = vsel %vm2168, %v2218, %v2092
          %v2244 = vsel %vm2169, %v2222, %v2093
          %v2245 = vsel %vm2170, %v2218, %v2094
          %v2246 = vsel %vm2171, %v2222, %v2095
          %v2247 = vsel %vm2172, %v2218, %v2096
          %v2248 = vsel %vm2173, %v2222, %v2097
          %v2249 = vsel %vm2174, %v2218, %v2098
          %v2250 = vsel %vm2175, %v2222, %v2099
          %v2251 = vsel %vm2176, %v2218, %v2100
          %v2252 = vsel %vm2177, %v2222, %v2101
          %v2253 = vsel %vm2178, %v2218, %v2102
          %v2254 = vsel %vm2179, %v2222, %v2103
          %v2255 = vsel %vm2180, %v2218, %v2104
          %v2256 = vsel %vm2181, %v2222, %v2105
          %v2257 = vsel %vm2182, %v2218, %v2106
          %v2258 = vsel %vm2183, %v2222, %v2107
          %v2259 = vsel %vm2184, %v2218, %v2108
          %v2260 = vsel %vm2185, %v2222, %v2109
          %v2261 = vsel %vm2186, %v2218, %v2110
          %v2262 = vsel %vm2187, %v2222, %v2111
          %v2263 = vsel %vm2188, %v2218, %v2112
          %v2264 = vsel %vm2189, %v2222, %v2113
          %v2265 = vsel %vm2190, %v2218, %v2114
          %v2266 = vsel %vm2191, %v2222, %v2115
          %v2267 = vsel %vm2192, %v2218, %v2116
          %v2268 = vsel %vm2193, %v2222, %v2117
          %v2269 = vsel %vm2194, %v2218, %v2118
          %v2270 = vsel %vm2195, %v2222, %v2119
          %v2271 = vsel %vm2196, %v2218, %v2120
          %v2272 = vsel %vm2197, %v2222, %v2121
          %v2273 = vsel %vm2198, %v2218, %v2122
          %v2274 = vsel %vm2199, %v2222, %v2123
          %v2275 = vsel %vm2200, %v2218, %v2124
          %v2276 = vsel %vm2201, %v2222, %v2125
          %v2277 = vsel %vm2202, %v2218, %v2126
          %v2278 = vsel %vm2203, %v2222, %v2127
          %v2279 = vsel %vm2204, %v2218, %v2128
          %v2280 = vsel %vm2205, %v2222, %v2129
          %v2281 = vsel %vm2206, %v2218, %v2130
          %v2282 = vsel %vm2207, %v2222, %v2131
          %v2283 = vsel %vm2208, %v2218, %v2132
          %v2284 = vsel %vm2209, %v2222, %v2133
          %v2285 = vsel %vm2210, %v2218, %v2134
          %v2286 = vsel %vm2211, %v2222, %v2135
          %v2287 = vsel %vm2212, %v2218, %v2136
          %v2288 = vsel %vm2213, %v2222, %v2137
          %vm2289 = vmand %vm370, %vm436
          %v2290 = vadd.s32 %v443, %v367
          %v2291 = vsel %vm2289, %v2290, 4294967295
          %v2292 = vmul.f32 %v375, %v441
          %v2293 = vlaneseq
          %v2294 = vshrl.u32 %v2293, 7
          %v2295 = vsub.s32 0, %v2294
          %v2296 = vrot.slane %v2291, %v2295
          %v2297 = vlaneseq
          %v2298 = vshrl.u32 %v2297, 7
          %v2299 = vsub.s32 1, %v2298
          %v2300 = vrot.slane %v2291, %v2299
          %vm2301 = vcmp.eq.s32.totalorder %v2296, %v445
          %vm2302 = vcmp.eq.s32.totalorder %v2300, %v445
          %vm2303 = vcmp.eq.s32.totalorder %v2296, %v446
          %vm2304 = vcmp.eq.s32.totalorder %v2300, %v446
          %vm2305 = vcmp.eq.s32.totalorder %v2296, %v447
          %vm2306 = vcmp.eq.s32.totalorder %v2300, %v447
          %vm2307 = vcmp.eq.s32.totalorder %v2296, %v448
          %vm2308 = vcmp.eq.s32.totalorder %v2300, %v448
          %vm2309 = vcmp.eq.s32.totalorder %v2296, %v449
          %vm2310 = vcmp.eq.s32.totalorder %v2300, %v449
          %vm2311 = vcmp.eq.s32.totalorder %v2296, %v450
          %vm2312 = vcmp.eq.s32.totalorder %v2300, %v450
          %vm2313 = vcmp.eq.s32.totalorder %v2296, %v451
          %vm2314 = vcmp.eq.s32.totalorder %v2300, %v451
          %vm2315 = vcmp.eq.s32.totalorder %v2296, %v452
          %vm2316 = vcmp.eq.s32.totalorder %v2300, %v452
          %vm2317 = vcmp.eq.s32.totalorder %v2296, %v453
          %vm2318 = vcmp.eq.s32.totalorder %v2300, %v453
          %vm2319 = vcmp.eq.s32.totalorder %v2296, %v454
          %vm2320 = vcmp.eq.s32.totalorder %v2300, %v454
          %vm2321 = vcmp.eq.s32.totalorder %v2296, %v455
          %vm2322 = vcmp.eq.s32.totalorder %v2300, %v455
          %vm2323 = vcmp.eq.s32.totalorder %v2296, %v456
          %vm2324 = vcmp.eq.s32.totalorder %v2300, %v456
          %vm2325 = vcmp.eq.s32.totalorder %v2296, %v457
          %vm2326 = vcmp.eq.s32.totalorder %v2300, %v457
          %vm2327 = vcmp.eq.s32.totalorder %v2296, %v458
          %vm2328 = vcmp.eq.s32.totalorder %v2300, %v458
          %vm2329 = vcmp.eq.s32.totalorder %v2296, %v459
          %vm2330 = vcmp.eq.s32.totalorder %v2300, %v459
          %vm2331 = vcmp.eq.s32.totalorder %v2296, %v460
          %vm2332 = vcmp.eq.s32.totalorder %v2300, %v460
          %vm2333 = vcmp.eq.s32.totalorder %v2296, %v461
          %vm2334 = vcmp.eq.s32.totalorder %v2300, %v461
          %vm2335 = vcmp.eq.s32.totalorder %v2296, %v462
          %vm2336 = vcmp.eq.s32.totalorder %v2300, %v462
          %vm2337 = vcmp.eq.s32.totalorder %v2296, %v463
          %vm2338 = vcmp.eq.s32.totalorder %v2300, %v463
          %vm2339 = vcmp.eq.s32.totalorder %v2296, %v464
          %vm2340 = vcmp.eq.s32.totalorder %v2300, %v464
          %vm2341 = vcmp.eq.s32.totalorder %v2296, %v465
          %vm2342 = vcmp.eq.s32.totalorder %v2300, %v465
          %vm2343 = vcmp.eq.s32.totalorder %v2296, %v466
          %vm2344 = vcmp.eq.s32.totalorder %v2300, %v466
          %vm2345 = vcmp.eq.s32.totalorder %v2296, %v467
          %vm2346 = vcmp.eq.s32.totalorder %v2300, %v467
          %vm2347 = vcmp.eq.s32.totalorder %v2296, %v468
          %vm2348 = vcmp.eq.s32.totalorder %v2300, %v468
          %vm2349 = vcmp.eq.s32.totalorder %v2296, %v469
          %vm2350 = vcmp.eq.s32.totalorder %v2300, %v469
          %vm2351 = vcmp.eq.s32.totalorder %v2296, %v470
          %vm2352 = vcmp.eq.s32.totalorder %v2300, %v470
          %vm2353 = vcmp.eq.s32.totalorder %v2296, %v471
          %vm2354 = vcmp.eq.s32.totalorder %v2300, %v471
          %vm2355 = vcmp.eq.s32.totalorder %v2296, %v472
          %vm2356 = vcmp.eq.s32.totalorder %v2300, %v472
          %vm2357 = vcmp.eq.s32.totalorder %v2296, %v473
          %vm2358 = vcmp.eq.s32.totalorder %v2300, %v473
          %vm2359 = vcmp.eq.s32.totalorder %v2296, %v474
          %vm2360 = vcmp.eq.s32.totalorder %v2300, %v474
          %vm2361 = vcmp.eq.s32.totalorder %v2296, %v475
          %vm2362 = vcmp.eq.s32.totalorder %v2300, %v475
          %vm2363 = vcmp.eq.s32.totalorder %v2296, %v476
          %vm2364 = vcmp.eq.s32.totalorder %v2300, %v476
          %v2366 = vlaneseq
          %v2367 = vshrl.u32 %v2366, 7
          %v2368 = vsub.s32 0, %v2367
          %v2369 = vrot.slane %v2292, %v2368
          %v2370 = vlaneseq
          %v2371 = vshrl.u32 %v2370, 7
          %v2372 = vsub.s32 1, %v2371
          %v2373 = vrot.slane %v2292, %v2372
          %v2376 = vsel %vm2301, %v2369, %v2225
          %v2377 = vsel %vm2302, %v2373, %v2226
          %v2378 = vsel %vm2303, %v2369, %v2227
          %v2379 = vsel %vm2304, %v2373, %v2228
          %v2380 = vsel %vm2305, %v2369, %v2229
          %v2381 = vsel %vm2306, %v2373, %v2230
          %v2382 = vsel %vm2307, %v2369, %v2231
          %v2383 = vsel %vm2308, %v2373, %v2232
          %v2384 = vsel %vm2309, %v2369, %v2233
          %v2385 = vsel %vm2310, %v2373, %v2234
          %v2386 = vsel %vm2311, %v2369, %v2235
          %v2387 = vsel %vm2312, %v2373, %v2236
          %v2388 = vsel %vm2313, %v2369, %v2237
          %v2389 = vsel %vm2314, %v2373, %v2238
          %v2390 = vsel %vm2315, %v2369, %v2239
          %v2391 = vsel %vm2316, %v2373, %v2240
          %v2392 = vsel %vm2317, %v2369, %v2241
          %v2393 = vsel %vm2318, %v2373, %v2242
          %v2394 = vsel %vm2319, %v2369, %v2243
          %v2395 = vsel %vm2320, %v2373, %v2244
          %v2396 = vsel %vm2321, %v2369, %v2245
          %v2397 = vsel %vm2322, %v2373, %v2246
          %v2398 = vsel %vm2323, %v2369, %v2247
          %v2399 = vsel %vm2324, %v2373, %v2248
          %v2400 = vsel %vm2325, %v2369, %v2249
          %v2401 = vsel %vm2326, %v2373, %v2250
          %v2402 = vsel %vm2327, %v2369, %v2251
          %v2403 = vsel %vm2328, %v2373, %v2252
          %v2404 = vsel %vm2329, %v2369, %v2253
          %v2405 = vsel %vm2330, %v2373, %v2254
          %v2406 = vsel %vm2331, %v2369, %v2255
          %v2407 = vsel %vm2332, %v2373, %v2256
          %v2408 = vsel %vm2333, %v2369, %v2257
          %v2409 = vsel %vm2334, %v2373, %v2258
          %v2410 = vsel %vm2335, %v2369, %v2259
          %v2411 = vsel %vm2336, %v2373, %v2260
          %v2412 = vsel %vm2337, %v2369, %v2261
          %v2413 = vsel %vm2338, %v2373, %v2262
          %v2414 = vsel %vm2339, %v2369, %v2263
          %v2415 = vsel %vm2340, %v2373, %v2264
          %v2416 = vsel %vm2341, %v2369, %v2265
          %v2417 = vsel %vm2342, %v2373, %v2266
          %v2418 = vsel %vm2343, %v2369, %v2267
          %v2419 = vsel %vm2344, %v2373, %v2268
          %v2420 = vsel %vm2345, %v2369, %v2269
          %v2421 = vsel %vm2346, %v2373, %v2270
          %v2422 = vsel %vm2347, %v2369, %v2271
          %v2423 = vsel %vm2348, %v2373, %v2272
          %v2424 = vsel %vm2349, %v2369, %v2273
          %v2425 = vsel %vm2350, %v2373, %v2274
          %v2426 = vsel %vm2351, %v2369, %v2275
          %v2427 = vsel %vm2352, %v2373, %v2276
          %v2428 = vsel %vm2353, %v2369, %v2277
          %v2429 = vsel %vm2354, %v2373, %v2278
          %v2430 = vsel %vm2355, %v2369, %v2279
          %v2431 = vsel %vm2356, %v2373, %v2280
          %v2432 = vsel %vm2357, %v2369, %v2281
          %v2433 = vsel %vm2358, %v2373, %v2282
          %v2434 = vsel %vm2359, %v2369, %v2283
          %v2435 = vsel %vm2360, %v2373, %v2284
          %v2436 = vsel %vm2361, %v2369, %v2285
          %v2437 = vsel %vm2362, %v2373, %v2286
          %v2438 = vsel %vm2363, %v2369, %v2287
          %v2439 = vsel %vm2364, %v2373, %v2288
          %vm2440 = vmand %vm378, %vm436
          %v2441 = vadd.s32 %v443, %v364
          %v2442 = vsel %vm2440, %v2441, 4294967295
          %v2443 = vmul.f32 %v382, %v441
          %v2444 = vlaneseq
          %v2445 = vshrl.u32 %v2444, 7
          %v2446 = vsub.s32 0, %v2445
          %v2447 = vrot.slane %v2442, %v2446
          %v2448 = vlaneseq
          %v2449 = vshrl.u32 %v2448, 7
          %v2450 = vsub.s32 1, %v2449
          %v2451 = vrot.slane %v2442, %v2450
          %vm2452 = vcmp.eq.s32.totalorder %v2447, %v445
          %vm2453 = vcmp.eq.s32.totalorder %v2451, %v445
          %vm2454 = vcmp.eq.s32.totalorder %v2447, %v446
          %vm2455 = vcmp.eq.s32.totalorder %v2451, %v446
          %vm2456 = vcmp.eq.s32.totalorder %v2447, %v447
          %vm2457 = vcmp.eq.s32.totalorder %v2451, %v447
          %vm2458 = vcmp.eq.s32.totalorder %v2447, %v448
          %vm2459 = vcmp.eq.s32.totalorder %v2451, %v448
          %vm2460 = vcmp.eq.s32.totalorder %v2447, %v449
          %vm2461 = vcmp.eq.s32.totalorder %v2451, %v449
          %vm2462 = vcmp.eq.s32.totalorder %v2447, %v450
          %vm2463 = vcmp.eq.s32.totalorder %v2451, %v450
          %vm2464 = vcmp.eq.s32.totalorder %v2447, %v451
          %vm2465 = vcmp.eq.s32.totalorder %v2451, %v451
          %vm2466 = vcmp.eq.s32.totalorder %v2447, %v452
          %vm2467 = vcmp.eq.s32.totalorder %v2451, %v452
          %vm2468 = vcmp.eq.s32.totalorder %v2447, %v453
          %vm2469 = vcmp.eq.s32.totalorder %v2451, %v453
          %vm2470 = vcmp.eq.s32.totalorder %v2447, %v454
          %vm2471 = vcmp.eq.s32.totalorder %v2451, %v454
          %vm2472 = vcmp.eq.s32.totalorder %v2447, %v455
          %vm2473 = vcmp.eq.s32.totalorder %v2451, %v455
          %vm2474 = vcmp.eq.s32.totalorder %v2447, %v456
          %vm2475 = vcmp.eq.s32.totalorder %v2451, %v456
          %vm2476 = vcmp.eq.s32.totalorder %v2447, %v457
          %vm2477 = vcmp.eq.s32.totalorder %v2451, %v457
          %vm2478 = vcmp.eq.s32.totalorder %v2447, %v458
          %vm2479 = vcmp.eq.s32.totalorder %v2451, %v458
          %vm2480 = vcmp.eq.s32.totalorder %v2447, %v459
          %vm2481 = vcmp.eq.s32.totalorder %v2451, %v459
          %vm2482 = vcmp.eq.s32.totalorder %v2447, %v460
          %vm2483 = vcmp.eq.s32.totalorder %v2451, %v460
          %vm2484 = vcmp.eq.s32.totalorder %v2447, %v461
          %vm2485 = vcmp.eq.s32.totalorder %v2451, %v461
          %vm2486 = vcmp.eq.s32.totalorder %v2447, %v462
          %vm2487 = vcmp.eq.s32.totalorder %v2451, %v462
          %vm2488 = vcmp.eq.s32.totalorder %v2447, %v463
          %vm2489 = vcmp.eq.s32.totalorder %v2451, %v463
          %vm2490 = vcmp.eq.s32.totalorder %v2447, %v464
          %vm2491 = vcmp.eq.s32.totalorder %v2451, %v464
          %vm2492 = vcmp.eq.s32.totalorder %v2447, %v465
          %vm2493 = vcmp.eq.s32.totalorder %v2451, %v465
          %vm2494 = vcmp.eq.s32.totalorder %v2447, %v466
          %vm2495 = vcmp.eq.s32.totalorder %v2451, %v466
          %vm2496 = vcmp.eq.s32.totalorder %v2447, %v467
          %vm2497 = vcmp.eq.s32.totalorder %v2451, %v467
          %vm2498 = vcmp.eq.s32.totalorder %v2447, %v468
          %vm2499 = vcmp.eq.s32.totalorder %v2451, %v468
          %vm2500 = vcmp.eq.s32.totalorder %v2447, %v469
          %vm2501 = vcmp.eq.s32.totalorder %v2451, %v469
          %vm2502 = vcmp.eq.s32.totalorder %v2447, %v470
          %vm2503 = vcmp.eq.s32.totalorder %v2451, %v470
          %vm2504 = vcmp.eq.s32.totalorder %v2447, %v471
          %vm2505 = vcmp.eq.s32.totalorder %v2451, %v471
          %vm2506 = vcmp.eq.s32.totalorder %v2447, %v472
          %vm2507 = vcmp.eq.s32.totalorder %v2451, %v472
          %vm2508 = vcmp.eq.s32.totalorder %v2447, %v473
          %vm2509 = vcmp.eq.s32.totalorder %v2451, %v473
          %vm2510 = vcmp.eq.s32.totalorder %v2447, %v474
          %vm2511 = vcmp.eq.s32.totalorder %v2451, %v474
          %vm2512 = vcmp.eq.s32.totalorder %v2447, %v475
          %vm2513 = vcmp.eq.s32.totalorder %v2451, %v475
          %vm2514 = vcmp.eq.s32.totalorder %v2447, %v476
          %vm2515 = vcmp.eq.s32.totalorder %v2451, %v476
          %v2517 = vlaneseq
          %v2518 = vshrl.u32 %v2517, 7
          %v2519 = vsub.s32 0, %v2518
          %v2520 = vrot.slane %v2443, %v2519
          %v2521 = vlaneseq
          %v2522 = vshrl.u32 %v2521, 7
          %v2523 = vsub.s32 1, %v2522
          %v2524 = vrot.slane %v2443, %v2523
          %v2527 = vsel %vm2452, %v2520, %v2376
          %v2528 = vsel %vm2453, %v2524, %v2377
          %v2529 = vsel %vm2454, %v2520, %v2378
          %v2530 = vsel %vm2455, %v2524, %v2379
          %v2531 = vsel %vm2456, %v2520, %v2380
          %v2532 = vsel %vm2457, %v2524, %v2381
          %v2533 = vsel %vm2458, %v2520, %v2382
          %v2534 = vsel %vm2459, %v2524, %v2383
          %v2535 = vsel %vm2460, %v2520, %v2384
          %v2536 = vsel %vm2461, %v2524, %v2385
          %v2537 = vsel %vm2462, %v2520, %v2386
          %v2538 = vsel %vm2463, %v2524, %v2387
          %v2539 = vsel %vm2464, %v2520, %v2388
          %v2540 = vsel %vm2465, %v2524, %v2389
          %v2541 = vsel %vm2466, %v2520, %v2390
          %v2542 = vsel %vm2467, %v2524, %v2391
          %v2543 = vsel %vm2468, %v2520, %v2392
          %v2544 = vsel %vm2469, %v2524, %v2393
          %v2545 = vsel %vm2470, %v2520, %v2394
          %v2546 = vsel %vm2471, %v2524, %v2395
          %v2547 = vsel %vm2472, %v2520, %v2396
          %v2548 = vsel %vm2473, %v2524, %v2397
          %v2549 = vsel %vm2474, %v2520, %v2398
          %v2550 = vsel %vm2475, %v2524, %v2399
          %v2551 = vsel %vm2476, %v2520, %v2400
          %v2552 = vsel %vm2477, %v2524, %v2401
          %v2553 = vsel %vm2478, %v2520, %v2402
          %v2554 = vsel %vm2479, %v2524, %v2403
          %v2555 = vsel %vm2480, %v2520, %v2404
          %v2556 = vsel %vm2481, %v2524, %v2405
          %v2557 = vsel %vm2482, %v2520, %v2406
          %v2558 = vsel %vm2483, %v2524, %v2407
          %v2559 = vsel %vm2484, %v2520, %v2408
          %v2560 = vsel %vm2485, %v2524, %v2409
          %v2561 = vsel %vm2486, %v2520, %v2410
          %v2562 = vsel %vm2487, %v2524, %v2411
          %v2563 = vsel %vm2488, %v2520, %v2412
          %v2564 = vsel %vm2489, %v2524, %v2413
          %v2565 = vsel %vm2490, %v2520, %v2414
          %v2566 = vsel %vm2491, %v2524, %v2415
          %v2567 = vsel %vm2492, %v2520, %v2416
          %v2568 = vsel %vm2493, %v2524, %v2417
          %v2569 = vsel %vm2494, %v2520, %v2418
          %v2570 = vsel %vm2495, %v2524, %v2419
          %v2571 = vsel %vm2496, %v2520, %v2420
          %v2572 = vsel %vm2497, %v2524, %v2421
          %v2573 = vsel %vm2498, %v2520, %v2422
          %v2574 = vsel %vm2499, %v2524, %v2423
          %v2575 = vsel %vm2500, %v2520, %v2424
          %v2576 = vsel %vm2501, %v2524, %v2425
          %v2577 = vsel %vm2502, %v2520, %v2426
          %v2578 = vsel %vm2503, %v2524, %v2427
          %v2579 = vsel %vm2504, %v2520, %v2428
          %v2580 = vsel %vm2505, %v2524, %v2429
          %v2581 = vsel %vm2506, %v2520, %v2430
          %v2582 = vsel %vm2507, %v2524, %v2431
          %v2583 = vsel %vm2508, %v2520, %v2432
          %v2584 = vsel %vm2509, %v2524, %v2433
          %v2585 = vsel %vm2510, %v2520, %v2434
          %v2586 = vsel %vm2511, %v2524, %v2435
          %v2587 = vsel %vm2512, %v2520, %v2436
          %v2588 = vsel %vm2513, %v2524, %v2437
          %v2589 = vsel %vm2514, %v2520, %v2438
          %v2590 = vsel %vm2515, %v2524, %v2439
          %vm2591 = vmand %vm386, %vm436
          %v2592 = vadd.s32 %v443, %v383
          %v2593 = vsel %vm2591, %v2592, 4294967295
          %v2594 = vmul.f32 %v391, %v441
          %v2595 = vlaneseq
          %v2596 = vshrl.u32 %v2595, 7
          %v2597 = vsub.s32 0, %v2596
          %v2598 = vrot.slane %v2593, %v2597
          %v2599 = vlaneseq
          %v2600 = vshrl.u32 %v2599, 7
          %v2601 = vsub.s32 1, %v2600
          %v2602 = vrot.slane %v2593, %v2601
          %vm2603 = vcmp.eq.s32.totalorder %v2598, %v445
          %vm2604 = vcmp.eq.s32.totalorder %v2602, %v445
          %vm2605 = vcmp.eq.s32.totalorder %v2598, %v446
          %vm2606 = vcmp.eq.s32.totalorder %v2602, %v446
          %vm2607 = vcmp.eq.s32.totalorder %v2598, %v447
          %vm2608 = vcmp.eq.s32.totalorder %v2602, %v447
          %vm2609 = vcmp.eq.s32.totalorder %v2598, %v448
          %vm2610 = vcmp.eq.s32.totalorder %v2602, %v448
          %vm2611 = vcmp.eq.s32.totalorder %v2598, %v449
          %vm2612 = vcmp.eq.s32.totalorder %v2602, %v449
          %vm2613 = vcmp.eq.s32.totalorder %v2598, %v450
          %vm2614 = vcmp.eq.s32.totalorder %v2602, %v450
          %vm2615 = vcmp.eq.s32.totalorder %v2598, %v451
          %vm2616 = vcmp.eq.s32.totalorder %v2602, %v451
          %vm2617 = vcmp.eq.s32.totalorder %v2598, %v452
          %vm2618 = vcmp.eq.s32.totalorder %v2602, %v452
          %vm2619 = vcmp.eq.s32.totalorder %v2598, %v453
          %vm2620 = vcmp.eq.s32.totalorder %v2602, %v453
          %vm2621 = vcmp.eq.s32.totalorder %v2598, %v454
          %vm2622 = vcmp.eq.s32.totalorder %v2602, %v454
          %vm2623 = vcmp.eq.s32.totalorder %v2598, %v455
          %vm2624 = vcmp.eq.s32.totalorder %v2602, %v455
          %vm2625 = vcmp.eq.s32.totalorder %v2598, %v456
          %vm2626 = vcmp.eq.s32.totalorder %v2602, %v456
          %vm2627 = vcmp.eq.s32.totalorder %v2598, %v457
          %vm2628 = vcmp.eq.s32.totalorder %v2602, %v457
          %vm2629 = vcmp.eq.s32.totalorder %v2598, %v458
          %vm2630 = vcmp.eq.s32.totalorder %v2602, %v458
          %vm2631 = vcmp.eq.s32.totalorder %v2598, %v459
          %vm2632 = vcmp.eq.s32.totalorder %v2602, %v459
          %vm2633 = vcmp.eq.s32.totalorder %v2598, %v460
          %vm2634 = vcmp.eq.s32.totalorder %v2602, %v460
          %vm2635 = vcmp.eq.s32.totalorder %v2598, %v461
          %vm2636 = vcmp.eq.s32.totalorder %v2602, %v461
          %vm2637 = vcmp.eq.s32.totalorder %v2598, %v462
          %vm2638 = vcmp.eq.s32.totalorder %v2602, %v462
          %vm2639 = vcmp.eq.s32.totalorder %v2598, %v463
          %vm2640 = vcmp.eq.s32.totalorder %v2602, %v463
          %vm2641 = vcmp.eq.s32.totalorder %v2598, %v464
          %vm2642 = vcmp.eq.s32.totalorder %v2602, %v464
          %vm2643 = vcmp.eq.s32.totalorder %v2598, %v465
          %vm2644 = vcmp.eq.s32.totalorder %v2602, %v465
          %vm2645 = vcmp.eq.s32.totalorder %v2598, %v466
          %vm2646 = vcmp.eq.s32.totalorder %v2602, %v466
          %vm2647 = vcmp.eq.s32.totalorder %v2598, %v467
          %vm2648 = vcmp.eq.s32.totalorder %v2602, %v467
          %vm2649 = vcmp.eq.s32.totalorder %v2598, %v468
          %vm2650 = vcmp.eq.s32.totalorder %v2602, %v468
          %vm2651 = vcmp.eq.s32.totalorder %v2598, %v469
          %vm2652 = vcmp.eq.s32.totalorder %v2602, %v469
          %vm2653 = vcmp.eq.s32.totalorder %v2598, %v470
          %vm2654 = vcmp.eq.s32.totalorder %v2602, %v470
          %vm2655 = vcmp.eq.s32.totalorder %v2598, %v471
          %vm2656 = vcmp.eq.s32.totalorder %v2602, %v471
          %vm2657 = vcmp.eq.s32.totalorder %v2598, %v472
          %vm2658 = vcmp.eq.s32.totalorder %v2602, %v472
          %vm2659 = vcmp.eq.s32.totalorder %v2598, %v473
          %vm2660 = vcmp.eq.s32.totalorder %v2602, %v473
          %vm2661 = vcmp.eq.s32.totalorder %v2598, %v474
          %vm2662 = vcmp.eq.s32.totalorder %v2602, %v474
          %vm2663 = vcmp.eq.s32.totalorder %v2598, %v475
          %vm2664 = vcmp.eq.s32.totalorder %v2602, %v475
          %vm2665 = vcmp.eq.s32.totalorder %v2598, %v476
          %vm2666 = vcmp.eq.s32.totalorder %v2602, %v476
          %v2668 = vlaneseq
          %v2669 = vshrl.u32 %v2668, 7
          %v2670 = vsub.s32 0, %v2669
          %v2671 = vrot.slane %v2594, %v2670
          %v2672 = vlaneseq
          %v2673 = vshrl.u32 %v2672, 7
          %v2674 = vsub.s32 1, %v2673
          %v2675 = vrot.slane %v2594, %v2674
          %v2678 = vsel %vm2603, %v2671, %v2527
          %v2679 = vsel %vm2604, %v2675, %v2528
          %v2680 = vsel %vm2605, %v2671, %v2529
          %v2681 = vsel %vm2606, %v2675, %v2530
          %v2682 = vsel %vm2607, %v2671, %v2531
          %v2683 = vsel %vm2608, %v2675, %v2532
          %v2684 = vsel %vm2609, %v2671, %v2533
          %v2685 = vsel %vm2610, %v2675, %v2534
          %v2686 = vsel %vm2611, %v2671, %v2535
          %v2687 = vsel %vm2612, %v2675, %v2536
          %v2688 = vsel %vm2613, %v2671, %v2537
          %v2689 = vsel %vm2614, %v2675, %v2538
          %v2690 = vsel %vm2615, %v2671, %v2539
          %v2691 = vsel %vm2616, %v2675, %v2540
          %v2692 = vsel %vm2617, %v2671, %v2541
          %v2693 = vsel %vm2618, %v2675, %v2542
          %v2694 = vsel %vm2619, %v2671, %v2543
          %v2695 = vsel %vm2620, %v2675, %v2544
          %v2696 = vsel %vm2621, %v2671, %v2545
          %v2697 = vsel %vm2622, %v2675, %v2546
          %v2698 = vsel %vm2623, %v2671, %v2547
          %v2699 = vsel %vm2624, %v2675, %v2548
          %v2700 = vsel %vm2625, %v2671, %v2549
          %v2701 = vsel %vm2626, %v2675, %v2550
          %v2702 = vsel %vm2627, %v2671, %v2551
          %v2703 = vsel %vm2628, %v2675, %v2552
          %v2704 = vsel %vm2629, %v2671, %v2553
          %v2705 = vsel %vm2630, %v2675, %v2554
          %v2706 = vsel %vm2631, %v2671, %v2555
          %v2707 = vsel %vm2632, %v2675, %v2556
          %v2708 = vsel %vm2633, %v2671, %v2557
          %v2709 = vsel %vm2634, %v2675, %v2558
          %v2710 = vsel %vm2635, %v2671, %v2559
          %v2711 = vsel %vm2636, %v2675, %v2560
          %v2712 = vsel %vm2637, %v2671, %v2561
          %v2713 = vsel %vm2638, %v2675, %v2562
          %v2714 = vsel %vm2639, %v2671, %v2563
          %v2715 = vsel %vm2640, %v2675, %v2564
          %v2716 = vsel %vm2641, %v2671, %v2565
          %v2717 = vsel %vm2642, %v2675, %v2566
          %v2718 = vsel %vm2643, %v2671, %v2567
          %v2719 = vsel %vm2644, %v2675, %v2568
          %v2720 = vsel %vm2645, %v2671, %v2569
          %v2721 = vsel %vm2646, %v2675, %v2570
          %v2722 = vsel %vm2647, %v2671, %v2571
          %v2723 = vsel %vm2648, %v2675, %v2572
          %v2724 = vsel %vm2649, %v2671, %v2573
          %v2725 = vsel %vm2650, %v2675, %v2574
          %v2726 = vsel %vm2651, %v2671, %v2575
          %v2727 = vsel %vm2652, %v2675, %v2576
          %v2728 = vsel %vm2653, %v2671, %v2577
          %v2729 = vsel %vm2654, %v2675, %v2578
          %v2730 = vsel %vm2655, %v2671, %v2579
          %v2731 = vsel %vm2656, %v2675, %v2580
          %v2732 = vsel %vm2657, %v2671, %v2581
          %v2733 = vsel %vm2658, %v2675, %v2582
          %v2734 = vsel %vm2659, %v2671, %v2583
          %v2735 = vsel %vm2660, %v2675, %v2584
          %v2736 = vsel %vm2661, %v2671, %v2585
          %v2737 = vsel %vm2662, %v2675, %v2586
          %v2738 = vsel %vm2663, %v2671, %v2587
          %v2739 = vsel %vm2664, %v2675, %v2588
          %v2740 = vsel %vm2665, %v2671, %v2589
          %v2741 = vsel %vm2666, %v2675, %v2590
          %vm2742 = vmand %vm395, %vm436
          %v2743 = vadd.s32 %v443, %v392
          %v2744 = vsel %vm2742, %v2743, 4294967295
          %v2745 = vmul.f32 %v400, %v441
          %v2746 = vlaneseq
          %v2747 = vshrl.u32 %v2746, 7
          %v2748 = vsub.s32 0, %v2747
          %v2749 = vrot.slane %v2744, %v2748
          %v2750 = vlaneseq
          %v2751 = vshrl.u32 %v2750, 7
          %v2752 = vsub.s32 1, %v2751
          %v2753 = vrot.slane %v2744, %v2752
          %vm2754 = vcmp.eq.s32.totalorder %v2749, %v445
          %vm2755 = vcmp.eq.s32.totalorder %v2753, %v445
          %vm2756 = vcmp.eq.s32.totalorder %v2749, %v446
          %vm2757 = vcmp.eq.s32.totalorder %v2753, %v446
          %vm2758 = vcmp.eq.s32.totalorder %v2749, %v447
          %vm2759 = vcmp.eq.s32.totalorder %v2753, %v447
          %vm2760 = vcmp.eq.s32.totalorder %v2749, %v448
          %vm2761 = vcmp.eq.s32.totalorder %v2753, %v448
          %vm2762 = vcmp.eq.s32.totalorder %v2749, %v449
          %vm2763 = vcmp.eq.s32.totalorder %v2753, %v449
          %vm2764 = vcmp.eq.s32.totalorder %v2749, %v450
          %vm2765 = vcmp.eq.s32.totalorder %v2753, %v450
          %vm2766 = vcmp.eq.s32.totalorder %v2749, %v451
          %vm2767 = vcmp.eq.s32.totalorder %v2753, %v451
          %vm2768 = vcmp.eq.s32.totalorder %v2749, %v452
          %vm2769 = vcmp.eq.s32.totalorder %v2753, %v452
          %vm2770 = vcmp.eq.s32.totalorder %v2749, %v453
          %vm2771 = vcmp.eq.s32.totalorder %v2753, %v453
          %vm2772 = vcmp.eq.s32.totalorder %v2749, %v454
          %vm2773 = vcmp.eq.s32.totalorder %v2753, %v454
          %vm2774 = vcmp.eq.s32.totalorder %v2749, %v455
          %vm2775 = vcmp.eq.s32.totalorder %v2753, %v455
          %vm2776 = vcmp.eq.s32.totalorder %v2749, %v456
          %vm2777 = vcmp.eq.s32.totalorder %v2753, %v456
          %vm2778 = vcmp.eq.s32.totalorder %v2749, %v457
          %vm2779 = vcmp.eq.s32.totalorder %v2753, %v457
          %vm2780 = vcmp.eq.s32.totalorder %v2749, %v458
          %vm2781 = vcmp.eq.s32.totalorder %v2753, %v458
          %vm2782 = vcmp.eq.s32.totalorder %v2749, %v459
          %vm2783 = vcmp.eq.s32.totalorder %v2753, %v459
          %vm2784 = vcmp.eq.s32.totalorder %v2749, %v460
          %vm2785 = vcmp.eq.s32.totalorder %v2753, %v460
          %vm2786 = vcmp.eq.s32.totalorder %v2749, %v461
          %vm2787 = vcmp.eq.s32.totalorder %v2753, %v461
          %vm2788 = vcmp.eq.s32.totalorder %v2749, %v462
          %vm2789 = vcmp.eq.s32.totalorder %v2753, %v462
          %vm2790 = vcmp.eq.s32.totalorder %v2749, %v463
          %vm2791 = vcmp.eq.s32.totalorder %v2753, %v463
          %vm2792 = vcmp.eq.s32.totalorder %v2749, %v464
          %vm2793 = vcmp.eq.s32.totalorder %v2753, %v464
          %vm2794 = vcmp.eq.s32.totalorder %v2749, %v465
          %vm2795 = vcmp.eq.s32.totalorder %v2753, %v465
          %vm2796 = vcmp.eq.s32.totalorder %v2749, %v466
          %vm2797 = vcmp.eq.s32.totalorder %v2753, %v466
          %vm2798 = vcmp.eq.s32.totalorder %v2749, %v467
          %vm2799 = vcmp.eq.s32.totalorder %v2753, %v467
          %vm2800 = vcmp.eq.s32.totalorder %v2749, %v468
          %vm2801 = vcmp.eq.s32.totalorder %v2753, %v468
          %vm2802 = vcmp.eq.s32.totalorder %v2749, %v469
          %vm2803 = vcmp.eq.s32.totalorder %v2753, %v469
          %vm2804 = vcmp.eq.s32.totalorder %v2749, %v470
          %vm2805 = vcmp.eq.s32.totalorder %v2753, %v470
          %vm2806 = vcmp.eq.s32.totalorder %v2749, %v471
          %vm2807 = vcmp.eq.s32.totalorder %v2753, %v471
          %vm2808 = vcmp.eq.s32.totalorder %v2749, %v472
          %vm2809 = vcmp.eq.s32.totalorder %v2753, %v472
          %vm2810 = vcmp.eq.s32.totalorder %v2749, %v473
          %vm2811 = vcmp.eq.s32.totalorder %v2753, %v473
          %vm2812 = vcmp.eq.s32.totalorder %v2749, %v474
          %vm2813 = vcmp.eq.s32.totalorder %v2753, %v474
          %vm2814 = vcmp.eq.s32.totalorder %v2749, %v475
          %vm2815 = vcmp.eq.s32.totalorder %v2753, %v475
          %vm2816 = vcmp.eq.s32.totalorder %v2749, %v476
          %vm2817 = vcmp.eq.s32.totalorder %v2753, %v476
          %v2819 = vlaneseq
          %v2820 = vshrl.u32 %v2819, 7
          %v2821 = vsub.s32 0, %v2820
          %v2822 = vrot.slane %v2745, %v2821
          %v2823 = vlaneseq
          %v2824 = vshrl.u32 %v2823, 7
          %v2825 = vsub.s32 1, %v2824
          %v2826 = vrot.slane %v2745, %v2825
          %v2829 = vsel %vm2754, %v2822, %v2678
          %v2830 = vsel %vm2755, %v2826, %v2679
          %v2831 = vsel %vm2756, %v2822, %v2680
          %v2832 = vsel %vm2757, %v2826, %v2681
          %v2833 = vsel %vm2758, %v2822, %v2682
          %v2834 = vsel %vm2759, %v2826, %v2683
          %v2835 = vsel %vm2760, %v2822, %v2684
          %v2836 = vsel %vm2761, %v2826, %v2685
          %v2837 = vsel %vm2762, %v2822, %v2686
          %v2838 = vsel %vm2763, %v2826, %v2687
          %v2839 = vsel %vm2764, %v2822, %v2688
          %v2840 = vsel %vm2765, %v2826, %v2689
          %v2841 = vsel %vm2766, %v2822, %v2690
          %v2842 = vsel %vm2767, %v2826, %v2691
          %v2843 = vsel %vm2768, %v2822, %v2692
          %v2844 = vsel %vm2769, %v2826, %v2693
          %v2845 = vsel %vm2770, %v2822, %v2694
          %v2846 = vsel %vm2771, %v2826, %v2695
          %v2847 = vsel %vm2772, %v2822, %v2696
          %v2848 = vsel %vm2773, %v2826, %v2697
          %v2849 = vsel %vm2774, %v2822, %v2698
          %v2850 = vsel %vm2775, %v2826, %v2699
          %v2851 = vsel %vm2776, %v2822, %v2700
          %v2852 = vsel %vm2777, %v2826, %v2701
          %v2853 = vsel %vm2778, %v2822, %v2702
          %v2854 = vsel %vm2779, %v2826, %v2703
          %v2855 = vsel %vm2780, %v2822, %v2704
          %v2856 = vsel %vm2781, %v2826, %v2705
          %v2857 = vsel %vm2782, %v2822, %v2706
          %v2858 = vsel %vm2783, %v2826, %v2707
          %v2859 = vsel %vm2784, %v2822, %v2708
          %v2860 = vsel %vm2785, %v2826, %v2709
          %v2861 = vsel %vm2786, %v2822, %v2710
          %v2862 = vsel %vm2787, %v2826, %v2711
          %v2863 = vsel %vm2788, %v2822, %v2712
          %v2864 = vsel %vm2789, %v2826, %v2713
          %v2865 = vsel %vm2790, %v2822, %v2714
          %v2866 = vsel %vm2791, %v2826, %v2715
          %v2867 = vsel %vm2792, %v2822, %v2716
          %v2868 = vsel %vm2793, %v2826, %v2717
          %v2869 = vsel %vm2794, %v2822, %v2718
          %v2870 = vsel %vm2795, %v2826, %v2719
          %v2871 = vsel %vm2796, %v2822, %v2720
          %v2872 = vsel %vm2797, %v2826, %v2721
          %v2873 = vsel %vm2798, %v2822, %v2722
          %v2874 = vsel %vm2799, %v2826, %v2723
          %v2875 = vsel %vm2800, %v2822, %v2724
          %v2876 = vsel %vm2801, %v2826, %v2725
          %v2877 = vsel %vm2802, %v2822, %v2726
          %v2878 = vsel %vm2803, %v2826, %v2727
          %v2879 = vsel %vm2804, %v2822, %v2728
          %v2880 = vsel %vm2805, %v2826, %v2729
          %v2881 = vsel %vm2806, %v2822, %v2730
          %v2882 = vsel %vm2807, %v2826, %v2731
          %v2883 = vsel %vm2808, %v2822, %v2732
          %v2884 = vsel %vm2809, %v2826, %v2733
          %v2885 = vsel %vm2810, %v2822, %v2734
          %v2886 = vsel %vm2811, %v2826, %v2735
          %v2887 = vsel %vm2812, %v2822, %v2736
          %v2888 = vsel %vm2813, %v2826, %v2737
          %v2889 = vsel %vm2814, %v2822, %v2738
          %v2890 = vsel %vm2815, %v2826, %v2739
          %v2891 = vsel %vm2816, %v2822, %v2740
          %v2892 = vsel %vm2817, %v2826, %v2741
          %2893 = vmatprep.subr.mxu0 %v2830
          %2894 = vmatpush1.xpose.msra.mxu0 %v2829
          %2895 = vmatprep.subr.mxu0 %v2832
          %2896 = vmatpush1.xpose.msra.mxu0 %v2831
          %2897 = vmatprep.subr.mxu0 %v2834
          %2898 = vmatpush1.xpose.msra.mxu0 %v2833
          %2899 = vmatprep.subr.mxu0 %v2836
          %2900 = vmatpush1.xpose.msra.mxu0 %v2835
          %2901 = vmatprep.subr.mxu0 %v2838
          %2902 = vmatpush1.xpose.msra.mxu0 %v2837
          %2903 = vmatprep.subr.mxu0 %v2840
          %2904 = vmatpush1.xpose.msra.mxu0 %v2839
          %2905 = vmatprep.subr.mxu0 %v2842
          %2906 = vmatpush1.xpose.msra.mxu0 %v2841
          %2907 = vmatprep.subr.mxu0 %v2844
          %2908 = vmatpush1.xpose.msra.mxu0 %v2843
          %2909 = vmatprep.subr.mxu0 %v2846
          %2910 = vmatpush1.xpose.msra.mxu0 %v2845
          %2911 = vmatprep.subr.mxu0 %v2848
          %2912 = vmatpush1.xpose.msra.mxu0 %v2847
          %2913 = vmatprep.subr.mxu0 %v2850
          %2914 = vmatpush1.xpose.msra.mxu0 %v2849
          %2915 = vmatprep.subr.mxu0 %v2852
          %2916 = vmatpush1.xpose.msra.mxu0 %v2851
          %2917 = vmatprep.subr.mxu0 %v2854
          %2918 = vmatpush1.xpose.msra.mxu0 %v2853
          %2919 = vmatprep.subr.mxu0 %v2856
          %2920 = vmatpush1.xpose.msra.mxu0 %v2855
          %2921 = vmatprep.subr.mxu0 %v2858
          %2922 = vmatpush1.xpose.msra.mxu0 %v2857
          %2923 = vmatprep.subr.mxu0 %v2860
          %2924 = vmatpush1.xpose.msra.mxu0 %v2859
          %2925 = vmatprep.subr.mxu0 %v2862
          %2926 = vmatpush1.xpose.msra.mxu0 %v2861
          %2927 = vmatprep.subr.mxu0 %v2864
          %2928 = vmatpush1.xpose.msra.mxu0 %v2863
          %2929 = vmatprep.subr.mxu0 %v2866
          %2930 = vmatpush1.xpose.msra.mxu0 %v2865
          %2931 = vmatprep.subr.mxu0 %v2868
          %2932 = vmatpush1.xpose.msra.mxu0 %v2867
          %2933 = vmatprep.subr.mxu0 %v2870
          %2934 = vmatpush1.xpose.msra.mxu0 %v2869
          %2935 = vmatprep.subr.mxu0 %v2872
          %2936 = vmatpush1.xpose.msra.mxu0 %v2871
          %2937 = vmatprep.subr.mxu0 %v2874
          %2938 = vmatpush1.xpose.msra.mxu0 %v2873
          %2939 = vmatprep.subr.mxu0 %v2876
          %2940 = vmatpush1.xpose.msra.mxu0 %v2875
          %2941 = vmatprep.subr.mxu0 %v2878
          %2942 = vmatpush1.xpose.msra.mxu0 %v2877
          %2943 = vmatprep.subr.mxu0 %v2880
          %2944 = vmatpush1.xpose.msra.mxu0 %v2879
          %2945 = vmatprep.subr.mxu0 %v2882
          %2946 = vmatpush1.xpose.msra.mxu0 %v2881
          %2947 = vmatprep.subr.mxu0 %v2884
          %2948 = vmatpush1.xpose.msra.mxu0 %v2883
          %2949 = vmatprep.subr.mxu0 %v2886
          %2950 = vmatpush1.xpose.msra.mxu0 %v2885
          %2951 = vmatprep.subr.mxu0 %v2888
          %2952 = vmatpush1.xpose.msra.mxu0 %v2887
          %2953 = vmatprep.subr.mxu0 %v2890
          %2954 = vmatpush1.xpose.msra.mxu0 %v2889
          %2955 = vmatprep.subr.mxu0 %v2892
          %2956 = vmatpush1.xpose.msra.mxu0 %v2891
          %2957 = vmatprep.mubr.f32.mxu0 %v359
          %2958 = vmatmul.mubr.f32.gmra.mrb[0].mxu0 %v358
          %v2959 = vpop.f32.mrb[0].mxu0
          %v2960 = vadd.f32 0.0, %v2959
          %v2961 = vpop.f32.mrb[0].mxu0
          %v2962 = vadd.f32 0.0, %v2961
          %2963 = vdwg.mxu0
          %v2964 = vld [vmem:[%s308] sm:$0xff]
          %v2965 = vld [vmem:[%s308 + $0x8] sm:$0xff]
          %v2966 = vadd.f32 %v2964, %v2960
          %v2967 = vadd.f32 %v2965, %v2962
          %2968 = vst [vmem:[%s308] sm:$0xff] %v2966
          %2969 = vst [vmem:[%s308 + $0x8] sm:$0xff] %v2967
        $region44: #{tpu_custom_call.1} parent=31 // pred_fallthru
          _
        %s2970 = sand.u32 %s161, 1
        %s2971 = scalar_lea.sflag [#allocation7], %s2970
        %s2972 = sand.u32 %s161, 1
        %s2973 = smul.addr %s2972, 16
        %s2974 = scalar_lea.vmem [#allocation8], %s2973
        // Predicated region
        $region45: #{tpu_custom_call.1} parent=31 // pred_check
          %p2975 = pneg %p171
        $region46: #{tpu_custom_call.1} parent=31 // pred_check_branch
          %2977 = sbr.rel (%p2975) target = $region48
        $region47: #{tpu_custom_call.1} parent=31 // pred_region
          %s2978 = smul.u32 2, %s36
          %s2980 = ssub.s32 256, 256
          %2981 = vsyncadd %s2971, %s2980
          %s2982 = smul.addr %s35, 2
          %s2983 = sadd.s32 %s2978, %s2982
          %s2984 = smul.addr %s2983, 128
          %s2985 = scalar_lea.hbm %s5, %s2984
          %s2987 = sshll.u32 %s2974, 4
          %s2988 = int_to_ptr.vmem [resolvable:$true] %s2987
          %2990 = dma.vmem_to_hbm [thread:$0]  %s2988, 256, %s2985, %s2971
        $region48: #{tpu_custom_call.1} parent=31 // pred_fallthru
          _
      $region32: #{tpu_custom_call.1} parent=5 // pred_fallthru
        _
      %p2991 = scmp.le.s32.totalorder 2, %s25
      // Predicated region
      $region49: #{tpu_custom_call.1} parent=5 // pred_check
        %p2992 = pneg %p2991
      $region50: #{tpu_custom_call.1} parent=5 // pred_check_branch
        %2994 = sbr.rel (%p2992) target = $region52
      $region51: #{tpu_custom_call.1} parent=5 // pred_region
        %s2995 = ssub.s32 %s25, 2
        // Predicated region
        $region53: #{tpu_custom_call.1} parent=51 // pred_check
          %p2996 = pneg %p177
        $region54: #{tpu_custom_call.1} parent=51 // pred_check_branch
          %2998 = sbr.rel (%p2996) target = $region56
        $region55: #{tpu_custom_call.1} parent=51 // pred_region
          %s2999 = sand.u32 %s162, 1
          %s3000 = scalar_lea.sflag [#allocation7], %s2999
          %s3001 = sand.u32 %s162, 1
          %s3002 = smul.addr %s3001, 16
          %s3003 = scalar_lea.vmem [#allocation8], %s3002
          %3004 = dma.done %s3000, 256
        $region56: #{tpu_custom_call.1} parent=51 // pred_fallthru
          _
      $region52: #{tpu_custom_call.1} parent=5 // pred_fallthru
        _
    $region6: #{tpu_custom_call.1} parent=1 // loop_footer
      %s29 = sadd.s32 1, %s25
    $region7: #{tpu_custom_call.1} parent=1 // loop_footer_branch
      %24 = sbr.rel target = $region3
    $region8: #{tpu_custom_call.1} parent=1 // loop_exit
      _
    %3005 = vsyncpa [#allocation6], 1
    %s3006 = scalar_lea.sflag [#allocation6], 1
    %3007 = vsyncpa %s3006, 1
    %3008 = vsyncpa [#allocation7], 1
    %s3009 = scalar_lea.sflag [#allocation7], 1
    %3010 = vsyncpa %s3009, 1

</llo_original>
